<compile_context>
chip_gen: v6e
topology: v6e:2x2x1
jax: 0.10.0
libtpu: 0.0.40
codegen_flags: <defaults>
</compile_context>

<pallas_src>
import math
from functools import partial

import jax
import jax.numpy as jnp
from jax.experimental import pallas as pl
from jax.experimental.pallas import tpu as pltpu


# ----------------------------------------------------------------------------
# Kernel: one decoder layer (grid axis 1) for one block of batch elems (axis 0).
# The residual stream is carried across layers in a VMEM scratch.
# ----------------------------------------------------------------------------
def _decoder_stack_kernel(num_heads, compute_dtype,
                          tgt_ref, enc_ref, mask_ref, pad_ref,
                          wsqkv_ref, bsqkv_ref, wso_ref, bso_ref,
                          wcqkv_ref, bcqkv_ref, wco_ref, bco_ref,
                          ln1g_ref, ln1b_ref, ln2g_ref, ln2b_ref,
                          ln3g_ref, ln3b_ref,
                          wf1_ref, bf1_ref, wf2_ref, bf2_ref,
                          out_ref, x_scr):
    Bb, T, D = tgt_ref.shape
    S = enc_ref.shape[1]
    H = num_heads
    dh = D // H
    scale = 1.0 / math.sqrt(dh)
    cd = compute_dtype
    l = pl.program_id(1)

    # Seed the carried residual stream with the input at the first layer.
    @pl.when(l == 0)
    def _():
        x_scr[...] = tgt_ref[...]

    def layer_norm(x2, g_ref, b_ref, eps=1e-5):
        mu = jnp.mean(x2, axis=-1, keepdims=True)
        var = jnp.mean(jnp.square(x2 - mu), axis=-1, keepdims=True)
        return (x2 - mu) * jax.lax.rsqrt(var + eps) * g_ref[0, :] + b_ref[0, :]

    def softmax_rows(s):
        m = jnp.max(s, axis=-1, keepdims=True)
        p = jnp.exp(s - m)
        return p * pl.reciprocal(jnp.sum(p, axis=-1, keepdims=True), approx=True)

    def mha_context(q3, k3, v3, add_mask):
        # q3: (Bb, Tq, D), k3/v3: (Bb, Tk, D) f32; add_mask broadcastable to (Bb, Tq, Tk).
        # Returns the concatenated per-head context, flattened to (Bb*Tq, D), f32.
        ctx_heads = []
        for h in range(H):                                   # static loop over heads
            cols = slice(h * dh, (h + 1) * dh)
            s = jnp.einsum('bqd,bkd->bqk',
                           q3[:, :, cols].astype(cd), k3[:, :, cols].astype(cd),
                           preferred_element_type=jnp.float32) * scale + add_mask
            p = softmax_rows(s)
            ctx_heads.append(jnp.einsum('bqk,bkd->bqd',
                                        p.astype(cd), v3[:, :, cols].astype(cd),
                                        preferred_element_type=jnp.float32))
        ctx = ctx_heads[0] if H == 1 else jnp.concatenate(ctx_heads, axis=-1)
        return ctx.reshape(Bb * q3.shape[1], D)

    x = x_scr[...].reshape(Bb * T, D)          # residual stream, f32
    enc = enc_ref[...].reshape(Bb * S, D)
    self_mask = mask_ref[...][None, :, :]      # (1, T, T)  additive
    pad_mask = pad_ref[...]                    # (Bb, 1, S) additive

    # ---- 1) masked self-attention: fused QKV matmul over all Bb*T rows ------
    qkv = jnp.dot(x.astype(cd), wsqkv_ref[...].astype(cd),
                  preferred_element_type=jnp.float32) + bsqkv_ref[0, :]
    qkv3 = qkv.reshape(Bb, T, 3 * D)
    ctx = mha_context(qkv3[:, :, 0:D], qkv3[:, :, D:2 * D], qkv3[:, :, 2 * D:3 * D],
                      self_mask)
    sa = jnp.dot(ctx.astype(cd), wso_ref[...].astype(cd),
                 preferred_element_type=jnp.float32) + bso_ref[0, :]
    x = layer_norm(x + sa, ln1g_ref, ln1b_ref)

    # ---- 2) cross-attention to encoder memory (Q + fused KV projections) ----
    wqkv_c = wcqkv_ref[...].astype(cd)
    q = jnp.dot(x.astype(cd), wqkv_c[:, 0:D],
                preferred_element_type=jnp.float32) + bcqkv_ref[0, 0:D]
    kv = jnp.dot(enc.astype(cd), wqkv_c[:, D:3 * D],
                 preferred_element_type=jnp.float32) + bcqkv_ref[0, D:3 * D]
    q3 = q.reshape(Bb, T, D)
    kv3 = kv.reshape(Bb, S, 2 * D)
    ctx = mha_context(q3, kv3[:, :, 0:D], kv3[:, :, D:2 * D], pad_mask)
    ca = jnp.dot(ctx.astype(cd), wco_ref[...].astype(cd),
                 preferred_element_type=jnp.float32) + bco_ref[0, :]
    x = layer_norm(x + ca, ln2g_ref, ln2b_ref)

    # ---- 3) position-wise FFN on the flattened row slab ----------------------
    h1 = jnp.maximum(
        jnp.dot(x.astype(cd), wf1_ref[...].astype(cd),
                preferred_element_type=jnp.float32) + bf1_ref[0, :], 0.0)
    ff = jnp.dot(h1.astype(cd), wf2_ref[...].astype(cd),
                 preferred_element_type=jnp.float32) + bf2_ref[0, :]
    x = layer_norm(x + ff, ln3g_ref, ln3b_ref)

    x3 = x.reshape(Bb, T, D)
    x_scr[...] = x3                            # carry to the next layer

    @pl.when(l == pl.num_programs(1) - 1)
    def _():
        out_ref[...] = x3


# ----------------------------------------------------------------------------
# Wrapper: single pallas_call for the whole decoder stack.
# ----------------------------------------------------------------------------
def decoder_forward_pallas(padding_mask, mask, tgt, encoder_out, layer_params,
                           num_heads, compute_dtype=jnp.bfloat16,
                           batch_block=None, vmem_limit_bytes=None):
    B, T, D = tgt.shape
    S = encoder_out.shape[1]
    L = len(layer_params)

    # Pick a batch block so the projection matmuls have >=128 rows when possible.
    if batch_block is None:
        batch_block = B
        for bb in range(1, B + 1):
            if B % bb == 0 and bb * T >= 128:
                batch_block = bb
                break
    assert B % batch_block == 0, "batch_block must divide B"
    nb = B // batch_block

    names = ["w_self_qkv", "b_self_qkv", "w_self_o", "b_self_o",
             "w_cross_qkv", "b_cross_qkv", "w_cross_o", "b_cross_o",
             "ln1_g", "ln1_b", "ln2_g", "ln2_b", "ln3_g", "ln3_b",
             "w_ffn1", "b_ffn1", "w_ffn2", "b_ffn2"]
    # Weight matrices pre-cast to the MXU compute dtype (halves their HBM DMA);
    # biases / LN params stay f32 (added to f32 accumulations).
    weight_mats = {"w_self_qkv", "w_self_o", "w_cross_qkv", "w_cross_o",
                   "w_ffn1", "w_ffn2"}
    stacked = []
    for n in names:
        a = jnp.stack([p[n] for p in layer_params], axis=0)
        if n in weight_mats:
            a = a.astype(compute_dtype)
        stacked.append(a)

    def wspec(arr):  # (L, r, c) stacked param -> one layer slice per grid step
        return pl.BlockSpec((None,) + arr.shape[1:], lambda b, l: (l, 0, 0))

    in_specs = [
        pl.BlockSpec((batch_block, T, D), lambda b, l: (b, 0, 0)),   # tgt
        pl.BlockSpec((batch_block, S, D), lambda b, l: (b, 0, 0)),   # encoder_out
        pl.BlockSpec((T, T), lambda b, l: (0, 0)),                   # self-attn mask
        pl.BlockSpec((batch_block, 1, S), lambda b, l: (b, 0, 0)),   # padding mask
    ] + [wspec(a) for a in stacked]

    kernel = partial(_decoder_stack_kernel, num_heads, compute_dtype)

    return pl.pallas_call(
        kernel,
        out_shape=jax.ShapeDtypeStruct((B, T, D), jnp.float32),
        grid_spec=pltpu.PrefetchScalarGridSpec(
            num_scalar_prefetch=0,
            grid=(nb, L),                       # layer axis innermost
            in_specs=in_specs,
            out_specs=pl.BlockSpec((batch_block, T, D), lambda b, l: (b, 0, 0)),
            scratch_shapes=[pltpu.VMEM((batch_block, T, D), jnp.float32)],
        ),
        compiler_params=pltpu.CompilerParams(
            dimension_semantics=("parallel", "arbitrary"),
            vmem_limit_bytes=vmem_limit_bytes,
        ),
    )(tgt, encoder_out, mask, padding_mask, *stacked)


# ----------------------------------------------------------------------------
# Pure-JAX reference (same math) for the correctness check.
# ----------------------------------------------------------------------------
def _ref_layer(padding_mask, mask, x, enc, p, H):
    D = x.shape[-1]
    dh = D // H
    scale = 1.0 / math.sqrt(dh)

    def ln(x, g, b, eps=1e-5):
        mu = jnp.mean(x, -1, keepdims=True)
        var = jnp.mean(jnp.square(x - mu), -1, keepdims=True)
        return (x - mu) * jax.lax.rsqrt(var + eps) * g[0] + b[0]

    def mha(q_in, kv_in, wqkv, bqkv, wo, bo, add_mask):
        q = q_in @ wqkv[:, 0:D] + bqkv[0, 0:D]
        k = kv_in @ wqkv[:, D:2 * D] + bqkv[0, D:2 * D]
        v = kv_in @ wqkv[:, 2 * D:3 * D] + bqkv[0, 2 * D:3 * D]
        rs = lambda a: a.reshape(a.shape[0], -1, H, dh).transpose(0, 2, 1, 3)
        qh, kh, vh = rs(q), rs(k), rs(v)
        s = jnp.einsum("bhqd,bhkd->bhqk", qh, kh) * scale + add_mask
        pr = jax.nn.softmax(s, axis=-1)
        o = jnp.einsum("bhqk,bhkd->bhqd", pr, vh).transpose(0, 2, 1, 3).reshape(q.shape)
        return o @ wo + bo[0]

    sa = mha(x, x, p["w_self_qkv"], p["b_self_qkv"], p["w_self_o"], p["b_self_o"],
             mask[None, None, :, :])
    x = ln(x + sa, p["ln1_g"], p["ln1_b"])
    ca = mha(x, enc, p["w_cross_qkv"], p["b_cross_qkv"], p["w_cross_o"], p["b_cross_o"],
             padding_mask[:, None, :, :])
    x = ln(x + ca, p["ln2_g"], p["ln2_b"])
    ff = jnp.maximum(x @ p["w_ffn1"] + p["b_ffn1"][0], 0.0) @ p["w_ffn2"] + p["b_ffn2"][0]
    return ln(x + ff, p["ln3_g"], p["ln3_b"])


def _ref_decoder(padding_mask, mask, tgt, enc, layer_params, H):
    x = tgt
    for p in layer_params:
        x = _ref_layer(padding_mask, mask, x, enc, p, H)
    return x


# ----------------------------------------------------------------------------
# Deterministic parameter init.
# ----------------------------------------------------------------------------
def init_layer_params(key, d_model, d_ffn):
    D, F = d_model, d_ffn
    ks = jax.random.split(key, 8)
    n = lambda k, shape: (0.05 * jax.random.normal(k, shape)).astype(jnp.float32)
    return {
        "w_self_qkv": n(ks[0], (D, 3 * D)), "b_self_qkv": n(ks[1], (1, 3 * D)),
        "w_self_o": n(ks[2], (D, D)),       "b_self_o": jnp.zeros((1, D), jnp.float32),
        "w_cross_qkv": n(ks[3], (D, 3 * D)), "b_cross_qkv": n(ks[4], (1, 3 * D)),
        "w_cross_o": n(ks[5], (D, D)),       "b_cross_o": jnp.zeros((1, D), jnp.float32),
        "ln1_g": jnp.ones((1, D), jnp.float32), "ln1_b": jnp.zeros((1, D), jnp.float32),
        "ln2_g": jnp.ones((1, D), jnp.float32), "ln2_b": jnp.zeros((1, D), jnp.float32),
        "ln3_g": jnp.ones((1, D), jnp.float32), "ln3_b": jnp.zeros((1, D), jnp.float32),
        "w_ffn1": n(ks[6], (D, F)), "b_ffn1": jnp.zeros((1, F), jnp.float32),
        "w_ffn2": n(ks[7], (F, D)), "b_ffn2": jnp.zeros((1, D), jnp.float32),
    }


if __name__ == "__main__":
    num_layers, num_heads, d_model, d_ffn = 2, 4, 32, 64
    B, T, S = 2, 8, 8

    key = jax.random.PRNGKey(0)
    k_tgt, k_enc, k_par = jax.random.split(key, 3)

    tgt = jax.random.normal(k_tgt, (B, T, d_model), jnp.float32)
    encoder_out = jax.random.normal(k_enc, (B, S, d_model), jnp.float32)

    # causal additive mask for self-attention
    causal = jnp.tril(jnp.ones((T, T), jnp.float32))
    mask = jnp.where(causal > 0, 0.0, -1e9).astype(jnp.float32)

    # additive padding mask for cross-attention: batch 1 has last 2 src tokens padded
    valid = jnp.ones((B, S), jnp.float32).at[1, S - 2:].set(0.0)
    padding_mask = jnp.where(valid > 0, 0.0, -1e9).astype(jnp.float32)[:, None, :]  # (B,1,S)

    layer_params = [init_layer_params(k, d_model, d_ffn)
                    for k in jax.random.split(k_par, num_layers)]

    out = decoder_forward_pallas(padding_mask, mask, tgt, encoder_out,
                                 layer_params, num_heads)
    out = jax.block_until_ready(out)

    ref = _ref_decoder(padding_mask, mask, tgt, encoder_out, layer_params, num_heads)
    assert out.shape == (B, T, d_model)
    assert bool(jnp.all(jnp.isfinite(out)))
    # 2e-2 bound accounts for bf16 MXU operands (f32 accumulation) in the kernel.
    assert bool(jnp.allclose(out, ref, atol=2e-2, rtol=2e-2)), \
        f"max err {float(jnp.max(jnp.abs(out - ref)))}"

    print("KERNEL_OK")
</pallas_src>

<mosaic_0001>
module attributes {stable_mosaic.version = 11 : i64} {
  func.func @_decoder_stack_kernel(%arg0: i32, %arg1: i32, %arg2: memref<2x8x32xf32, #tpu.memory_space<vmem>>, %arg3: memref<2x8x32xf32, #tpu.memory_space<vmem>>, %arg4: memref<8x8xf32, #tpu.memory_space<vmem>>, %arg5: memref<2x1x8xf32, #tpu.memory_space<vmem>>, %arg6: memref<1x32x96xbf16, #tpu.memory_space<vmem>>, %arg7: memref<1x1x96xf32, #tpu.memory_space<vmem>>, %arg8: memref<1x32x32xbf16, #tpu.memory_space<vmem>>, %arg9: memref<1x1x32xf32, #tpu.memory_space<vmem>>, %arg10: memref<1x32x96xbf16, #tpu.memory_space<vmem>>, %arg11: memref<1x1x96xf32, #tpu.memory_space<vmem>>, %arg12: memref<1x32x32xbf16, #tpu.memory_space<vmem>>, %arg13: memref<1x1x32xf32, #tpu.memory_space<vmem>>, %arg14: memref<1x1x32xf32, #tpu.memory_space<vmem>>, %arg15: memref<1x1x32xf32, #tpu.memory_space<vmem>>, %arg16: memref<1x1x32xf32, #tpu.memory_space<vmem>>, %arg17: memref<1x1x32xf32, #tpu.memory_space<vmem>>, %arg18: memref<1x1x32xf32, #tpu.memory_space<vmem>>, %arg19: memref<1x1x32xf32, #tpu.memory_space<vmem>>, %arg20: memref<1x32x64xbf16, #tpu.memory_space<vmem>>, %arg21: memref<1x1x64xf32, #tpu.memory_space<vmem>>, %arg22: memref<1x64x32xbf16, #tpu.memory_space<vmem>>, %arg23: memref<1x1x32xf32, #tpu.memory_space<vmem>>, %arg24: memref<2x8x32xf32, #tpu.memory_space<vmem>>, %arg25: memref<2x8x32xf32, #tpu.memory_space<vmem>>) attributes {dimension_semantics = [#tpu.dimension_semantics<parallel>, #tpu.dimension_semantics<arbitrary>], iteration_bounds = array<i64: 1, 2>, scalar_prefetch = 0 : i64, scratch_operands = 1 : i64, tpu.core_type = #tpu.core_type<tc>, window_params = [{transform_indices = @transform_0, window_bounds = array<i64: 2, 8, 32>}, {transform_indices = @transform_1, window_bounds = array<i64: 2, 8, 32>}, {pipeline_mode = #tpu.pipeline_mode<synchronous>, transform_indices = @transform_2, window_bounds = array<i64: 8, 8>}, {transform_indices = @transform_3, window_bounds = array<i64: 2, 1, 8>}, {transform_indices = @transform_4, window_bounds = array<i64: 1, 32, 96>}, {transform_indices = @transform_5, window_bounds = array<i64: 1, 1, 96>}, {transform_indices = @transform_6, window_bounds = array<i64: 1, 32, 32>}, {transform_indices = @transform_7, window_bounds = array<i64: 1, 1, 32>}, {transform_indices = @transform_8, window_bounds = array<i64: 1, 32, 96>}, {transform_indices = @transform_9, window_bounds = array<i64: 1, 1, 96>}, {transform_indices = @transform_10, window_bounds = array<i64: 1, 32, 32>}, {transform_indices = @transform_11, window_bounds = array<i64: 1, 1, 32>}, {transform_indices = @transform_12, window_bounds = array<i64: 1, 1, 32>}, {transform_indices = @transform_13, window_bounds = array<i64: 1, 1, 32>}, {transform_indices = @transform_14, window_bounds = array<i64: 1, 1, 32>}, {transform_indices = @transform_15, window_bounds = array<i64: 1, 1, 32>}, {transform_indices = @transform_16, window_bounds = array<i64: 1, 1, 32>}, {transform_indices = @transform_17, window_bounds = array<i64: 1, 1, 32>}, {transform_indices = @transform_18, window_bounds = array<i64: 1, 32, 64>}, {transform_indices = @transform_19, window_bounds = array<i64: 1, 1, 64>}, {transform_indices = @transform_20, window_bounds = array<i64: 1, 64, 32>}, {transform_indices = @transform_21, window_bounds = array<i64: 1, 1, 32>}, {transform_indices = @transform_22, window_bounds = array<i64: 2, 8, 32>}]} {
    %c0_i32 = arith.constant 0 : i32
    %0 = arith.cmpi eq, %arg1, %c0_i32 : i32
    %1 = arith.extui %0 : i1 to i32
    %c0_i32_0 = arith.constant 0 : i32
    %2 = arith.cmpi ne, %1, %c0_i32_0 : i32
    scf.if %2 {
      %c0_133 = arith.constant 0 : index
      %c0_134 = arith.constant 0 : index
      %c0_135 = arith.constant 0 : index
      %363 = vector.load %arg2[%c0_133, %c0_134, %c0_135] : memref<2x8x32xf32, #tpu.memory_space<vmem>>, vector<2x8x32xf32>
      %c0_136 = arith.constant 0 : index
      %c0_137 = arith.constant 0 : index
      %c0_138 = arith.constant 0 : index
      %364 = vector.load %arg25[%c0_136, %c0_137, %c0_138] : memref<2x8x32xf32, #tpu.memory_space<vmem>>, vector<2x8x32xf32>
      tpu.vector_store %arg25[%c0_136, %c0_137, %c0_138], %363 {strides = array<i32>} : memref<2x8x32xf32, #tpu.memory_space<vmem>>, vector<2x8x32xf32>,
    } else {
    }
    %c0 = arith.constant 0 : index
    %c0_1 = arith.constant 0 : index
    %c0_2 = arith.constant 0 : index
    %3 = vector.load %arg25[%c0, %c0_1, %c0_2] : memref<2x8x32xf32, #tpu.memory_space<vmem>>, vector<2x8x32xf32>
    %4 = vector.shape_cast %3 : vector<2x8x32xf32> to vector<16x32xf32>
    %c0_3 = arith.constant 0 : index
    %c0_4 = arith.constant 0 : index
    %c0_5 = arith.constant 0 : index
    %5 = vector.load %arg3[%c0_3, %c0_4, %c0_5] : memref<2x8x32xf32, #tpu.memory_space<vmem>>, vector<2x8x32xf32>
    %6 = vector.shape_cast %5 : vector<2x8x32xf32> to vector<16x32xf32>
    %c0_6 = arith.constant 0 : index
    %c0_7 = arith.constant 0 : index
    %7 = vector.load %arg4[%c0_6, %c0_7] : memref<8x8xf32, #tpu.memory_space<vmem>>, vector<8x8xf32>
    %8 = vector.shape_cast %7 : vector<8x8xf32> to vector<1x8x8xf32>
    %c0_8 = arith.constant 0 : index
    %c0_9 = arith.constant 0 : index
    %c0_10 = arith.constant 0 : index
    %9 = vector.load %arg5[%c0_8, %c0_9, %c0_10] : memref<2x1x8xf32, #tpu.memory_space<vmem>>, vector<2x1x8xf32>
    %10 = arith.truncf %4 : vector<16x32xf32> to vector<16x32xbf16>
    %c0_11 = arith.constant 0 : index
    %c0_12 = arith.constant 0 : index
    %c0_13 = arith.constant 0 : index
    %11 = vector.load %arg6[%c0_11, %c0_12, %c0_13] : memref<1x32x96xbf16, #tpu.memory_space<vmem>>, vector<1x32x96xbf16>
    %12 = vector.shape_cast %11 : vector<1x32x96xbf16> to vector<32x96xbf16>
    %cst = arith.constant dense<0.000000e+00> : vector<16x96xf32>
    %13 = tpu.matmul %10, %12, %cst {dimension_numbers = #tpu.dot_dimension_numbers<[1], [0], [0], [1], [0, 0, 1, 1], [], []>} : vector<16x32xbf16>, vector<32x96xbf16>, vector<16x96xf32> -> vector<16x96xf32>
    %c0_14 = arith.constant 0 : index
    %c0_15 = arith.constant 0 : index
    %c0_16 = arith.constant 0 : index
    %14 = vector.load %arg7[%c0_14, %c0_15, %c0_16] : memref<1x1x96xf32, #tpu.memory_space<vmem>>, vector<1x1x96xf32>
    %15 = vector.shape_cast %14 : vector<1x1x96xf32> to vector<96xf32>
    %16 = vector.shape_cast %15 : vector<96xf32> to vector<1x96xf32>
    %17 = vector.broadcast %16 : vector<1x96xf32> to vector<16x96xf32>
    %18 = arith.addf %13, %17 : vector<16x96xf32>
    %19 = vector.shape_cast %18 : vector<16x96xf32> to vector<2x8x96xf32>
    %20 = vector.extract_strided_slice %19 {offsets = [0, 0, 0], sizes = [2, 8, 32], strides = [1, 1, 1]} : vector<2x8x96xf32> to vector<2x8x32xf32>
    %21 = vector.extract_strided_slice %19 {offsets = [0, 0, 32], sizes = [2, 8, 32], strides = [1, 1, 1]} : vector<2x8x96xf32> to vector<2x8x32xf32>
    %22 = vector.extract_strided_slice %19 {offsets = [0, 0, 64], sizes = [2, 8, 32], strides = [1, 1, 1]} : vector<2x8x96xf32> to vector<2x8x32xf32>
    %23 = vector.extract_strided_slice %20 {offsets = [0, 0, 0], sizes = [2, 8, 8], strides = [1, 1, 1]} : vector<2x8x32xf32> to vector<2x8x8xf32>
    %24 = arith.truncf %23 : vector<2x8x8xf32> to vector<2x8x8xbf16>
    %25 = vector.extract_strided_slice %21 {offsets = [0, 0, 0], sizes = [2, 8, 8], strides = [1, 1, 1]} : vector<2x8x32xf32> to vector<2x8x8xf32>
    %26 = arith.truncf %25 : vector<2x8x8xf32> to vector<2x8x8xbf16>
    "tpu.trace_start"() <{level = 10 : i32, message = "bqd,bkd->bqk"}> : () -> ()
    %cst_17 = arith.constant dense<0.000000e+00> : vector<2x8x8xf32>
    %27 = tpu.matmul %24, %26, %cst_17 {dimension_numbers = #tpu.dot_dimension_numbers<[2], [2], [1], [1], [0, 0, 0, 1, 1, 1], [0], [0]>} : vector<2x8x8xbf16>, vector<2x8x8xbf16>, vector<2x8x8xf32> -> vector<2x8x8xf32>
    "tpu.trace_stop"() : () -> ()
    %cst_18 = arith.constant 0.353553385 : f32
    %28 = vector.broadcast %cst_18 : f32 to vector<2x8x8xf32>
    %29 = arith.mulf %27, %28 : vector<2x8x8xf32>
    %30 = vector.broadcast %8 : vector<1x8x8xf32> to vector<2x8x8xf32>
    %31 = arith.addf %29, %30 : vector<2x8x8xf32>
    %cst_19 = arith.constant dense<0xFF800000> : vector<2x8xf32>
    %32 = vector.multi_reduction <maximumf>, %31, %cst_19 [2] : vector<2x8x8xf32> to vector<2x8xf32>
    %33 = vector.shape_cast %32 : vector<2x8xf32> to vector<2x8x1xf32>
    %34 = vector.broadcast %33 : vector<2x8x1xf32> to vector<2x8x8xf32>
    %35 = arith.subf %31, %34 : vector<2x8x8xf32>
    %36 = math.exp %35 : vector<2x8x8xf32>
    %cst_20 = arith.constant dense<0.000000e+00> : vector<2x8xf32>
    %37 = vector.multi_reduction <add>, %36, %cst_20 [2] : vector<2x8x8xf32> to vector<2x8xf32>
    %38 = vector.shape_cast %37 : vector<2x8xf32> to vector<2x8x1xf32>
    %39 = tpu.reciprocal %38 {approx = true} : vector<2x8x1xf32> -> vector<2x8x1xf32>
    %40 = vector.broadcast %39 : vector<2x8x1xf32> to vector<2x8x8xf32>
    %41 = arith.mulf %36, %40 : vector<2x8x8xf32>
    %42 = arith.truncf %41 : vector<2x8x8xf32> to vector<2x8x8xbf16>
    %43 = vector.extract_strided_slice %22 {offsets = [0, 0, 0], sizes = [2, 8, 8], strides = [1, 1, 1]} : vector<2x8x32xf32> to vector<2x8x8xf32>
    %44 = arith.truncf %43 : vector<2x8x8xf32> to vector<2x8x8xbf16>
    "tpu.trace_start"() <{level = 10 : i32, message = "bqk,bkd->bqd"}> : () -> ()
    %cst_21 = arith.constant dense<0.000000e+00> : vector<2x8x8xf32>
    %45 = tpu.matmul %42, %44, %cst_21 {dimension_numbers = #tpu.dot_dimension_numbers<[2], [1], [1], [2], [0, 0, 0, 1, 1, 2], [0], [0]>} : vector<2x8x8xbf16>, vector<2x8x8xbf16>, vector<2x8x8xf32> -> vector<2x8x8xf32>
    "tpu.trace_stop"() : () -> ()
    %46 = vector.extract_strided_slice %20 {offsets = [0, 0, 8], sizes = [2, 8, 8], strides = [1, 1, 1]} : vector<2x8x32xf32> to vector<2x8x8xf32>
    %47 = arith.truncf %46 : vector<2x8x8xf32> to vector<2x8x8xbf16>
    %48 = vector.extract_strided_slice %21 {offsets = [0, 0, 8], sizes = [2, 8, 8], strides = [1, 1, 1]} : vector<2x8x32xf32> to vector<2x8x8xf32>
    %49 = arith.truncf %48 : vector<2x8x8xf32> to vector<2x8x8xbf16>
    "tpu.trace_start"() <{level = 10 : i32, message = "bqd,bkd->bqk"}> : () -> ()
    %cst_22 = arith.constant dense<0.000000e+00> : vector<2x8x8xf32>
    %50 = tpu.matmul %47, %49, %cst_22 {dimension_numbers = #tpu.dot_dimension_numbers<[2], [2], [1], [1], [0, 0, 0, 1, 1, 1], [0], [0]>} : vector<2x8x8xbf16>, vector<2x8x8xbf16>, vector<2x8x8xf32> -> vector<2x8x8xf32>
    "tpu.trace_stop"() : () -> ()
    %cst_23 = arith.constant 0.353553385 : f32
    %51 = vector.broadcast %cst_23 : f32 to vector<2x8x8xf32>
    %52 = arith.mulf %50, %51 : vector<2x8x8xf32>
    %53 = vector.broadcast %8 : vector<1x8x8xf32> to vector<2x8x8xf32>
    %54 = arith.addf %52, %53 : vector<2x8x8xf32>
    %cst_24 = arith.constant dense<0xFF800000> : vector<2x8xf32>
    %55 = vector.multi_reduction <maximumf>, %54, %cst_24 [2] : vector<2x8x8xf32> to vector<2x8xf32>
    %56 = vector.shape_cast %55 : vector<2x8xf32> to vector<2x8x1xf32>
    %57 = vector.broadcast %56 : vector<2x8x1xf32> to vector<2x8x8xf32>
    %58 = arith.subf %54, %57 : vector<2x8x8xf32>
    %59 = math.exp %58 : vector<2x8x8xf32>
    %cst_25 = arith.constant dense<0.000000e+00> : vector<2x8xf32>
    %60 = vector.multi_reduction <add>, %59, %cst_25 [2] : vector<2x8x8xf32> to vector<2x8xf32>
    %61 = vector.shape_cast %60 : vector<2x8xf32> to vector<2x8x1xf32>
    %62 = tpu.reciprocal %61 {approx = true} : vector<2x8x1xf32> -> vector<2x8x1xf32>
    %63 = vector.broadcast %62 : vector<2x8x1xf32> to vector<2x8x8xf32>
    %64 = arith.mulf %59, %63 : vector<2x8x8xf32>
    %65 = arith.truncf %64 : vector<2x8x8xf32> to vector<2x8x8xbf16>
    %66 = vector.extract_strided_slice %22 {offsets = [0, 0, 8], sizes = [2, 8, 8], strides = [1, 1, 1]} : vector<2x8x32xf32> to vector<2x8x8xf32>
    %67 = arith.truncf %66 : vector<2x8x8xf32> to vector<2x8x8xbf16>
    "tpu.trace_start"() <{level = 10 : i32, message = "bqk,bkd->bqd"}> : () -> ()
    %cst_26 = arith.constant dense<0.000000e+00> : vector<2x8x8xf32>
    %68 = tpu.matmul %65, %67, %cst_26 {dimension_numbers = #tpu.dot_dimension_numbers<[2], [1], [1], [2], [0, 0, 0, 1, 1, 2], [0], [0]>} : vector<2x8x8xbf16>, vector<2x8x8xbf16>, vector<2x8x8xf32> -> vector<2x8x8xf32>
    "tpu.trace_stop"() : () -> ()
    %69 = vector.extract_strided_slice %20 {offsets = [0, 0, 16], sizes = [2, 8, 8], strides = [1, 1, 1]} : vector<2x8x32xf32> to vector<2x8x8xf32>
    %70 = arith.truncf %69 : vector<2x8x8xf32> to vector<2x8x8xbf16>
    %71 = vector.extract_strided_slice %21 {offsets = [0, 0, 16], sizes = [2, 8, 8], strides = [1, 1, 1]} : vector<2x8x32xf32> to vector<2x8x8xf32>
    %72 = arith.truncf %71 : vector<2x8x8xf32> to vector<2x8x8xbf16>
    "tpu.trace_start"() <{level = 10 : i32, message = "bqd,bkd->bqk"}> : () -> ()
    %cst_27 = arith.constant dense<0.000000e+00> : vector<2x8x8xf32>
    %73 = tpu.matmul %70, %72, %cst_27 {dimension_numbers = #tpu.dot_dimension_numbers<[2], [2], [1], [1], [0, 0, 0, 1, 1, 1], [0], [0]>} : vector<2x8x8xbf16>, vector<2x8x8xbf16>, vector<2x8x8xf32> -> vector<2x8x8xf32>
    "tpu.trace_stop"() : () -> ()
    %cst_28 = arith.constant 0.353553385 : f32
    %74 = vector.broadcast %cst_28 : f32 to vector<2x8x8xf32>
    %75 = arith.mulf %73, %74 : vector<2x8x8xf32>
    %76 = vector.broadcast %8 : vector<1x8x8xf32> to vector<2x8x8xf32>
    %77 = arith.addf %75, %76 : vector<2x8x8xf32>
    %cst_29 = arith.constant dense<0xFF800000> : vector<2x8xf32>
    %78 = vector.multi_reduction <maximumf>, %77, %cst_29 [2] : vector<2x8x8xf32> to vector<2x8xf32>
    %79 = vector.shape_cast %78 : vector<2x8xf32> to vector<2x8x1xf32>
    %80 = vector.broadcast %79 : vector<2x8x1xf32> to vector<2x8x8xf32>
    %81 = arith.subf %77, %80 : vector<2x8x8xf32>
    %82 = math.exp %81 : vector<2x8x8xf32>
    %cst_30 = arith.constant dense<0.000000e+00> : vector<2x8xf32>
    %83 = vector.multi_reduction <add>, %82, %cst_30 [2] : vector<2x8x8xf32> to vector<2x8xf32>
    %84 = vector.shape_cast %83 : vector<2x8xf32> to vector<2x8x1xf32>
    %85 = tpu.reciprocal %84 {approx = true} : vector<2x8x1xf32> -> vector<2x8x1xf32>
    %86 = vector.broadcast %85 : vector<2x8x1xf32> to vector<2x8x8xf32>
    %87 = arith.mulf %82, %86 : vector<2x8x8xf32>
    %88 = arith.truncf %87 : vector<2x8x8xf32> to vector<2x8x8xbf16>
    %89 = vector.extract_strided_slice %22 {offsets = [0, 0, 16], sizes = [2, 8, 8], strides = [1, 1, 1]} : vector<2x8x32xf32> to vector<2x8x8xf32>
    %90 = arith.truncf %89 : vector<2x8x8xf32> to vector<2x8x8xbf16>
    "tpu.trace_start"() <{level = 10 : i32, message = "bqk,bkd->bqd"}> : () -> ()
    %cst_31 = arith.constant dense<0.000000e+00> : vector<2x8x8xf32>
    %91 = tpu.matmul %88, %90, %cst_31 {dimension_numbers = #tpu.dot_dimension_numbers<[2], [1], [1], [2], [0, 0, 0, 1, 1, 2], [0], [0]>} : vector<2x8x8xbf16>, vector<2x8x8xbf16>, vector<2x8x8xf32> -> vector<2x8x8xf32>
    "tpu.trace_stop"() : () -> ()
    %92 = vector.extract_strided_slice %20 {offsets = [0, 0, 24], sizes = [2, 8, 8], strides = [1, 1, 1]} : vector<2x8x32xf32> to vector<2x8x8xf32>
    %93 = arith.truncf %92 : vector<2x8x8xf32> to vector<2x8x8xbf16>
    %94 = vector.extract_strided_slice %21 {offsets = [0, 0, 24], sizes = [2, 8, 8], strides = [1, 1, 1]} : vector<2x8x32xf32> to vector<2x8x8xf32>
    %95 = arith.truncf %94 : vector<2x8x8xf32> to vector<2x8x8xbf16>
    "tpu.trace_start"() <{level = 10 : i32, message = "bqd,bkd->bqk"}> : () -> ()
    %cst_32 = arith.constant dense<0.000000e+00> : vector<2x8x8xf32>
    %96 = tpu.matmul %93, %95, %cst_32 {dimension_numbers = #tpu.dot_dimension_numbers<[2], [2], [1], [1], [0, 0, 0, 1, 1, 1], [0], [0]>} : vector<2x8x8xbf16>, vector<2x8x8xbf16>, vector<2x8x8xf32> -> vector<2x8x8xf32>
    "tpu.trace_stop"() : () -> ()
    %cst_33 = arith.constant 0.353553385 : f32
    %97 = vector.broadcast %cst_33 : f32 to vector<2x8x8xf32>
    %98 = arith.mulf %96, %97 : vector<2x8x8xf32>
    %99 = vector.broadcast %8 : vector<1x8x8xf32> to vector<2x8x8xf32>
    %100 = arith.addf %98, %99 : vector<2x8x8xf32>
    %cst_34 = arith.constant dense<0xFF800000> : vector<2x8xf32>
    %101 = vector.multi_reduction <maximumf>, %100, %cst_34 [2] : vector<2x8x8xf32> to vector<2x8xf32>
    %102 = vector.shape_cast %101 : vector<2x8xf32> to vector<2x8x1xf32>
    %103 = vector.broadcast %102 : vector<2x8x1xf32> to vector<2x8x8xf32>
    %104 = arith.subf %100, %103 : vector<2x8x8xf32>
    %105 = math.exp %104 : vector<2x8x8xf32>
    %cst_35 = arith.constant dense<0.000000e+00> : vector<2x8xf32>
    %106 = vector.multi_reduction <add>, %105, %cst_35 [2] : vector<2x8x8xf32> to vector<2x8xf32>
    %107 = vector.shape_cast %106 : vector<2x8xf32> to vector<2x8x1xf32>
    %108 = tpu.reciprocal %107 {approx = true} : vector<2x8x1xf32> -> vector<2x8x1xf32>
    %109 = vector.broadcast %108 : vector<2x8x1xf32> to vector<2x8x8xf32>
    %110 = arith.mulf %105, %109 : vector<2x8x8xf32>
    %111 = arith.truncf %110 : vector<2x8x8xf32> to vector<2x8x8xbf16>
    %112 = vector.extract_strided_slice %22 {offsets = [0, 0, 24], sizes = [2, 8, 8], strides = [1, 1, 1]} : vector<2x8x32xf32> to vector<2x8x8xf32>
    %113 = arith.truncf %112 : vector<2x8x8xf32> to vector<2x8x8xbf16>
    "tpu.trace_start"() <{level = 10 : i32, message = "bqk,bkd->bqd"}> : () -> ()
    %cst_36 = arith.constant dense<0.000000e+00> : vector<2x8x8xf32>
    %114 = tpu.matmul %111, %113, %cst_36 {dimension_numbers = #tpu.dot_dimension_numbers<[2], [1], [1], [2], [0, 0, 0, 1, 1, 2], [0], [0]>} : vector<2x8x8xbf16>, vector<2x8x8xbf16>, vector<2x8x8xf32> -> vector<2x8x8xf32>
    "tpu.trace_stop"() : () -> ()
    %115 = tpu.concatenate %45, %68, %91, %114 in 2 : vector<2x8x8xf32>, vector<2x8x8xf32>, vector<2x8x8xf32>, vector<2x8x8xf32> -> vector<2x8x32xf32>
    %116 = vector.shape_cast %115 : vector<2x8x32xf32> to vector<16x32xf32>
    %117 = arith.truncf %116 : vector<16x32xf32> to vector<16x32xbf16>
    %c0_37 = arith.constant 0 : index
    %c0_38 = arith.constant 0 : index
    %c0_39 = arith.constant 0 : index
    %118 = vector.load %arg8[%c0_37, %c0_38, %c0_39] : memref<1x32x32xbf16, #tpu.memory_space<vmem>>, vector<1x32x32xbf16>
    %119 = vector.shape_cast %118 : vector<1x32x32xbf16> to vector<32x32xbf16>
    %cst_40 = arith.constant dense<0.000000e+00> : vector<16x32xf32>
    %120 = tpu.matmul %117, %119, %cst_40 {dimension_numbers = #tpu.dot_dimension_numbers<[1], [0], [0], [1], [0, 0, 1, 1], [], []>} : vector<16x32xbf16>, vector<32x32xbf16>, vector<16x32xf32> -> vector<16x32xf32>
    %c0_41 = arith.constant 0 : index
    %c0_42 = arith.constant 0 : index
    %c0_43 = arith.constant 0 : index
    %121 = vector.load %arg9[%c0_41, %c0_42, %c0_43] : memref<1x1x32xf32, #tpu.memory_space<vmem>>, vector<1x1x32xf32>
    %122 = vector.shape_cast %121 : vector<1x1x32xf32> to vector<32xf32>
    %123 = vector.shape_cast %122 : vector<32xf32> to vector<1x32xf32>
    %124 = vector.broadcast %123 : vector<1x32xf32> to vector<16x32xf32>
    %125 = arith.addf %120, %124 : vector<16x32xf32>
    %126 = arith.addf %4, %125 : vector<16x32xf32>
    %cst_44 = arith.constant dense<0.000000e+00> : vector<16xf32>
    %127 = vector.multi_reduction <add>, %126, %cst_44 [1] : vector<16x32xf32> to vector<16xf32>
    %128 = vector.shape_cast %127 : vector<16xf32> to vector<16x1xf32>
    %cst_45 = arith.constant 3.200000e+01 : f32
    %129 = vector.broadcast %cst_45 : f32 to vector<16x1xf32>
    %130 = arith.divf %128, %129 : vector<16x1xf32>
    %131 = vector.broadcast %130 : vector<16x1xf32> to vector<16x32xf32>
    %132 = arith.subf %126, %131 : vector<16x32xf32>
    %133 = arith.mulf %132, %132 : vector<16x32xf32>
    %cst_46 = arith.constant dense<0.000000e+00> : vector<16xf32>
    %134 = vector.multi_reduction <add>, %133, %cst_46 [1] : vector<16x32xf32> to vector<16xf32>
    %135 = vector.shape_cast %134 : vector<16xf32> to vector<16x1xf32>
    %cst_47 = arith.constant 3.200000e+01 : f32
    %136 = vector.broadcast %cst_47 : f32 to vector<16x1xf32>
    %137 = arith.divf %135, %136 : vector<16x1xf32>
    %138 = vector.broadcast %130 : vector<16x1xf32> to vector<16x32xf32>
    %139 = arith.subf %126, %138 : vector<16x32xf32>
    %cst_48 = arith.constant 9.99999974E-6 : f32
    %140 = vector.broadcast %cst_48 : f32 to vector<16x1xf32>
    %141 = arith.addf %137, %140 : vector<16x1xf32>
    %142 = math.rsqrt %141 : vector<16x1xf32>
    %143 = vector.broadcast %142 : vector<16x1xf32> to vector<16x32xf32>
    %144 = arith.mulf %139, %143 : vector<16x32xf32>
    %c0_49 = arith.constant 0 : index
    %c0_50 = arith.constant 0 : index
    %c0_51 = arith.constant 0 : index
    %145 = vector.load %arg14[%c0_49, %c0_50, %c0_51] : memref<1x1x32xf32, #tpu.memory_space<vmem>>, vector<1x1x32xf32>
    %146 = vector.shape_cast %145 : vector<1x1x32xf32> to vector<32xf32>
    %147 = vector.shape_cast %146 : vector<32xf32> to vector<1x32xf32>
    %148 = vector.broadcast %147 : vector<1x32xf32> to vector<16x32xf32>
    %149 = arith.mulf %144, %148 : vector<16x32xf32>
    %c0_52 = arith.constant 0 : index
    %c0_53 = arith.constant 0 : index
    %c0_54 = arith.constant 0 : index
    %150 = vector.load %arg15[%c0_52, %c0_53, %c0_54] : memref<1x1x32xf32, #tpu.memory_space<vmem>>, vector<1x1x32xf32>
    %151 = vector.shape_cast %150 : vector<1x1x32xf32> to vector<32xf32>
    %152 = vector.shape_cast %151 : vector<32xf32> to vector<1x32xf32>
    %153 = vector.broadcast %152 : vector<1x32xf32> to vector<16x32xf32>
    %154 = arith.addf %149, %153 : vector<16x32xf32>
    %c0_55 = arith.constant 0 : index
    %c0_56 = arith.constant 0 : index
    %c0_57 = arith.constant 0 : index
    %155 = vector.load %arg10[%c0_55, %c0_56, %c0_57] : memref<1x32x96xbf16, #tpu.memory_space<vmem>>, vector<1x32x96xbf16>
    %156 = vector.shape_cast %155 : vector<1x32x96xbf16> to vector<32x96xbf16>
    %157 = arith.truncf %154 : vector<16x32xf32> to vector<16x32xbf16>
    %158 = vector.extract_strided_slice %156 {offsets = [0, 0], sizes = [32, 32], strides = [1, 1]} : vector<32x96xbf16> to vector<32x32xbf16>
    %cst_58 = arith.constant dense<0.000000e+00> : vector<16x32xf32>
    %159 = tpu.matmul %157, %158, %cst_58 {dimension_numbers = #tpu.dot_dimension_numbers<[1], [0], [0], [1], [0, 0, 1, 1], [], []>} : vector<16x32xbf16>, vector<32x32xbf16>, vector<16x32xf32> -> vector<16x32xf32>
    %c0_59 = arith.constant 0 : index
    %c0_60 = arith.constant 0 : index
    %c0_61 = arith.constant 0 : index
    %160 = vector.load %arg11[%c0_59, %c0_60, %c0_61] : memref<1x1x96xf32, #tpu.memory_space<vmem>>, vector<1x1x32xf32>
    %161 = vector.shape_cast %160 : vector<1x1x32xf32> to vector<32xf32>
    %162 = vector.shape_cast %161 : vector<32xf32> to vector<1x32xf32>
    %163 = vector.broadcast %162 : vector<1x32xf32> to vector<16x32xf32>
    %164 = arith.addf %159, %163 : vector<16x32xf32>
    %165 = arith.truncf %6 : vector<16x32xf32> to vector<16x32xbf16>
    %166 = vector.extract_strided_slice %156 {offsets = [0, 32], sizes = [32, 64], strides = [1, 1]} : vector<32x96xbf16> to vector<32x64xbf16>
    %cst_62 = arith.constant dense<0.000000e+00> : vector<16x64xf32>
    %167 = tpu.matmul %165, %166, %cst_62 {dimension_numbers = #tpu.dot_dimension_numbers<[1], [0], [0], [1], [0, 0, 1, 1], [], []>} : vector<16x32xbf16>, vector<32x64xbf16>, vector<16x64xf32> -> vector<16x64xf32>
    %c0_63 = arith.constant 0 : index
    %c0_64 = arith.constant 0 : index
    %c32 = arith.constant 32 : index
    %168 = vector.load %arg11[%c0_63, %c0_64, %c32] : memref<1x1x96xf32, #tpu.memory_space<vmem>>, vector<1x1x64xf32>
    %169 = vector.shape_cast %168 : vector<1x1x64xf32> to vector<64xf32>
    %170 = vector.shape_cast %169 : vector<64xf32> to vector<1x64xf32>
    %171 = vector.broadcast %170 : vector<1x64xf32> to vector<16x64xf32>
    %172 = arith.addf %167, %171 : vector<16x64xf32>
    %173 = vector.shape_cast %164 : vector<16x32xf32> to vector<2x8x32xf32>
    %174 = vector.shape_cast %172 : vector<16x64xf32> to vector<2x8x64xf32>
    %175 = vector.extract_strided_slice %174 {offsets = [0, 0, 0], sizes = [2, 8, 32], strides = [1, 1, 1]} : vector<2x8x64xf32> to vector<2x8x32xf32>
    %176 = vector.extract_strided_slice %174 {offsets = [0, 0, 32], sizes = [2, 8, 32], strides = [1, 1, 1]} : vector<2x8x64xf32> to vector<2x8x32xf32>
    %177 = vector.extract_strided_slice %173 {offsets = [0, 0, 0], sizes = [2, 8, 8], strides = [1, 1, 1]} : vector<2x8x32xf32> to vector<2x8x8xf32>
    %178 = arith.truncf %177 : vector<2x8x8xf32> to vector<2x8x8xbf16>
    %179 = vector.extract_strided_slice %175 {offsets = [0, 0, 0], sizes = [2, 8, 8], strides = [1, 1, 1]} : vector<2x8x32xf32> to vector<2x8x8xf32>
    %180 = arith.truncf %179 : vector<2x8x8xf32> to vector<2x8x8xbf16>
    "tpu.trace_start"() <{level = 10 : i32, message = "bqd,bkd->bqk"}> : () -> ()
    %cst_65 = arith.constant dense<0.000000e+00> : vector<2x8x8xf32>
    %181 = tpu.matmul %178, %180, %cst_65 {dimension_numbers = #tpu.dot_dimension_numbers<[2], [2], [1], [1], [0, 0, 0, 1, 1, 1], [0], [0]>} : vector<2x8x8xbf16>, vector<2x8x8xbf16>, vector<2x8x8xf32> -> vector<2x8x8xf32>
    "tpu.trace_stop"() : () -> ()
    %cst_66 = arith.constant 0.353553385 : f32
    %182 = vector.broadcast %cst_66 : f32 to vector<2x8x8xf32>
    %183 = arith.mulf %181, %182 : vector<2x8x8xf32>
    %184 = vector.broadcast %9 : vector<2x1x8xf32> to vector<2x8x8xf32>
    %185 = arith.addf %183, %184 : vector<2x8x8xf32>
    %cst_67 = arith.constant dense<0xFF800000> : vector<2x8xf32>
    %186 = vector.multi_reduction <maximumf>, %185, %cst_67 [2] : vector<2x8x8xf32> to vector<2x8xf32>
    %187 = vector.shape_cast %186 : vector<2x8xf32> to vector<2x8x1xf32>
    %188 = vector.broadcast %187 : vector<2x8x1xf32> to vector<2x8x8xf32>
    %189 = arith.subf %185, %188 : vector<2x8x8xf32>
    %190 = math.exp %189 : vector<2x8x8xf32>
    %cst_68 = arith.constant dense<0.000000e+00> : vector<2x8xf32>
    %191 = vector.multi_reduction <add>, %190, %cst_68 [2] : vector<2x8x8xf32> to vector<2x8xf32>
    %192 = vector.shape_cast %191 : vector<2x8xf32> to vector<2x8x1xf32>
    %193 = tpu.reciprocal %192 {approx = true} : vector<2x8x1xf32> -> vector<2x8x1xf32>
    %194 = vector.broadcast %193 : vector<2x8x1xf32> to vector<2x8x8xf32>
    %195 = arith.mulf %190, %194 : vector<2x8x8xf32>
    %196 = arith.truncf %195 : vector<2x8x8xf32> to vector<2x8x8xbf16>
    %197 = vector.extract_strided_slice %176 {offsets = [0, 0, 0], sizes = [2, 8, 8], strides = [1, 1, 1]} : vector<2x8x32xf32> to vector<2x8x8xf32>
    %198 = arith.truncf %197 : vector<2x8x8xf32> to vector<2x8x8xbf16>
    "tpu.trace_start"() <{level = 10 : i32, message = "bqk,bkd->bqd"}> : () -> ()
    %cst_69 = arith.constant dense<0.000000e+00> : vector<2x8x8xf32>
    %199 = tpu.matmul %196, %198, %cst_69 {dimension_numbers = #tpu.dot_dimension_numbers<[2], [1], [1], [2], [0, 0, 0, 1, 1, 2], [0], [0]>} : vector<2x8x8xbf16>, vector<2x8x8xbf16>, vector<2x8x8xf32> -> vector<2x8x8xf32>
    "tpu.trace_stop"() : () -> ()
    %200 = vector.extract_strided_slice %173 {offsets = [0, 0, 8], sizes = [2, 8, 8], strides = [1, 1, 1]} : vector<2x8x32xf32> to vector<2x8x8xf32>
    %201 = arith.truncf %200 : vector<2x8x8xf32> to vector<2x8x8xbf16>
    %202 = vector.extract_strided_slice %175 {offsets = [0, 0, 8], sizes = [2, 8, 8], strides = [1, 1, 1]} : vector<2x8x32xf32> to vector<2x8x8xf32>
    %203 = arith.truncf %202 : vector<2x8x8xf32> to vector<2x8x8xbf16>
    "tpu.trace_start"() <{level = 10 : i32, message = "bqd,bkd->bqk"}> : () -> ()
    %cst_70 = arith.constant dense<0.000000e+00> : vector<2x8x8xf32>
    %204 = tpu.matmul %201, %203, %cst_70 {dimension_numbers = #tpu.dot_dimension_numbers<[2], [2], [1], [1], [0, 0, 0, 1, 1, 1], [0], [0]>} : vector<2x8x8xbf16>, vector<2x8x8xbf16>, vector<2x8x8xf32> -> vector<2x8x8xf32>
    "tpu.trace_stop"() : () -> ()
    %cst_71 = arith.constant 0.353553385 : f32
    %205 = vector.broadcast %cst_71 : f32 to vector<2x8x8xf32>
    %206 = arith.mulf %204, %205 : vector<2x8x8xf32>
    %207 = vector.broadcast %9 : vector<2x1x8xf32> to vector<2x8x8xf32>
    %208 = arith.addf %206, %207 : vector<2x8x8xf32>
    %cst_72 = arith.constant dense<0xFF800000> : vector<2x8xf32>
    %209 = vector.multi_reduction <maximumf>, %208, %cst_72 [2] : vector<2x8x8xf32> to vector<2x8xf32>
    %210 = vector.shape_cast %209 : vector<2x8xf32> to vector<2x8x1xf32>
    %211 = vector.broadcast %210 : vector<2x8x1xf32> to vector<2x8x8xf32>
    %212 = arith.subf %208, %211 : vector<2x8x8xf32>
    %213 = math.exp %212 : vector<2x8x8xf32>
    %cst_73 = arith.constant dense<0.000000e+00> : vector<2x8xf32>
    %214 = vector.multi_reduction <add>, %213, %cst_73 [2] : vector<2x8x8xf32> to vector<2x8xf32>
    %215 = vector.shape_cast %214 : vector<2x8xf32> to vector<2x8x1xf32>
    %216 = tpu.reciprocal %215 {approx = true} : vector<2x8x1xf32> -> vector<2x8x1xf32>
    %217 = vector.broadcast %216 : vector<2x8x1xf32> to vector<2x8x8xf32>
    %218 = arith.mulf %213, %217 : vector<2x8x8xf32>
    %219 = arith.truncf %218 : vector<2x8x8xf32> to vector<2x8x8xbf16>
    %220 = vector.extract_strided_slice %176 {offsets = [0, 0, 8], sizes = [2, 8, 8], strides = [1, 1, 1]} : vector<2x8x32xf32> to vector<2x8x8xf32>
    %221 = arith.truncf %220 : vector<2x8x8xf32> to vector<2x8x8xbf16>
    "tpu.trace_start"() <{level = 10 : i32, message = "bqk,bkd->bqd"}> : () -> ()
    %cst_74 = arith.constant dense<0.000000e+00> : vector<2x8x8xf32>
    %222 = tpu.matmul %219, %221, %cst_74 {dimension_numbers = #tpu.dot_dimension_numbers<[2], [1], [1], [2], [0, 0, 0, 1, 1, 2], [0], [0]>} : vector<2x8x8xbf16>, vector<2x8x8xbf16>, vector<2x8x8xf32> -> vector<2x8x8xf32>
    "tpu.trace_stop"() : () -> ()
    %223 = vector.extract_strided_slice %173 {offsets = [0, 0, 16], sizes = [2, 8, 8], strides = [1, 1, 1]} : vector<2x8x32xf32> to vector<2x8x8xf32>
    %224 = arith.truncf %223 : vector<2x8x8xf32> to vector<2x8x8xbf16>
    %225 = vector.extract_strided_slice %175 {offsets = [0, 0, 16], sizes = [2, 8, 8], strides = [1, 1, 1]} : vector<2x8x32xf32> to vector<2x8x8xf32>
    %226 = arith.truncf %225 : vector<2x8x8xf32> to vector<2x8x8xbf16>
    "tpu.trace_start"() <{level = 10 : i32, message = "bqd,bkd->bqk"}> : () -> ()
    %cst_75 = arith.constant dense<0.000000e+00> : vector<2x8x8xf32>
    %227 = tpu.matmul %224, %226, %cst_75 {dimension_numbers = #tpu.dot_dimension_numbers<[2], [2], [1], [1], [0, 0, 0, 1, 1, 1], [0], [0]>} : vector<2x8x8xbf16>, vector<2x8x8xbf16>, vector<2x8x8xf32> -> vector<2x8x8xf32>
    "tpu.trace_stop"() : () -> ()
    %cst_76 = arith.constant 0.353553385 : f32
    %228 = vector.broadcast %cst_76 : f32 to vector<2x8x8xf32>
    %229 = arith.mulf %227, %228 : vector<2x8x8xf32>
    %230 = vector.broadcast %9 : vector<2x1x8xf32> to vector<2x8x8xf32>
    %231 = arith.addf %229, %230 : vector<2x8x8xf32>
    %cst_77 = arith.constant dense<0xFF800000> : vector<2x8xf32>
    %232 = vector.multi_reduction <maximumf>, %231, %cst_77 [2] : vector<2x8x8xf32> to vector<2x8xf32>
    %233 = vector.shape_cast %232 : vector<2x8xf32> to vector<2x8x1xf32>
    %234 = vector.broadcast %233 : vector<2x8x1xf32> to vector<2x8x8xf32>
    %235 = arith.subf %231, %234 : vector<2x8x8xf32>
    %236 = math.exp %235 : vector<2x8x8xf32>
    %cst_78 = arith.constant dense<0.000000e+00> : vector<2x8xf32>
    %237 = vector.multi_reduction <add>, %236, %cst_78 [2] : vector<2x8x8xf32> to vector<2x8xf32>
    %238 = vector.shape_cast %237 : vector<2x8xf32> to vector<2x8x1xf32>
    %239 = tpu.reciprocal %238 {approx = true} : vector<2x8x1xf32> -> vector<2x8x1xf32>
    %240 = vector.broadcast %239 : vector<2x8x1xf32> to vector<2x8x8xf32>
    %241 = arith.mulf %236, %240 : vector<2x8x8xf32>
    %242 = arith.truncf %241 : vector<2x8x8xf32> to vector<2x8x8xbf16>
    %243 = vector.extract_strided_slice %176 {offsets = [0, 0, 16], sizes = [2, 8, 8], strides = [1, 1, 1]} : vector<2x8x32xf32> to vector<2x8x8xf32>
    %244 = arith.truncf %243 : vector<2x8x8xf32> to vector<2x8x8xbf16>
    "tpu.trace_start"() <{level = 10 : i32, message = "bqk,bkd->bqd"}> : () -> ()
    %cst_79 = arith.constant dense<0.000000e+00> : vector<2x8x8xf32>
    %245 = tpu.matmul %242, %244, %cst_79 {dimension_numbers = #tpu.dot_dimension_numbers<[2], [1], [1], [2], [0, 0, 0, 1, 1, 2], [0], [0]>} : vector<2x8x8xbf16>, vector<2x8x8xbf16>, vector<2x8x8xf32> -> vector<2x8x8xf32>
    "tpu.trace_stop"() : () -> ()
    %246 = vector.extract_strided_slice %173 {offsets = [0, 0, 24], sizes = [2, 8, 8], strides = [1, 1, 1]} : vector<2x8x32xf32> to vector<2x8x8xf32>
    %247 = arith.truncf %246 : vector<2x8x8xf32> to vector<2x8x8xbf16>
    %248 = vector.extract_strided_slice %175 {offsets = [0, 0, 24], sizes = [2, 8, 8], strides = [1, 1, 1]} : vector<2x8x32xf32> to vector<2x8x8xf32>
    %249 = arith.truncf %248 : vector<2x8x8xf32> to vector<2x8x8xbf16>
    "tpu.trace_start"() <{level = 10 : i32, message = "bqd,bkd->bqk"}> : () -> ()
    %cst_80 = arith.constant dense<0.000000e+00> : vector<2x8x8xf32>
    %250 = tpu.matmul %247, %249, %cst_80 {dimension_numbers = #tpu.dot_dimension_numbers<[2], [2], [1], [1], [0, 0, 0, 1, 1, 1], [0], [0]>} : vector<2x8x8xbf16>, vector<2x8x8xbf16>, vector<2x8x8xf32> -> vector<2x8x8xf32>
    "tpu.trace_stop"() : () -> ()
    %cst_81 = arith.constant 0.353553385 : f32
    %251 = vector.broadcast %cst_81 : f32 to vector<2x8x8xf32>
    %252 = arith.mulf %250, %251 : vector<2x8x8xf32>
    %253 = vector.broadcast %9 : vector<2x1x8xf32> to vector<2x8x8xf32>
    %254 = arith.addf %252, %253 : vector<2x8x8xf32>
    %cst_82 = arith.constant dense<0xFF800000> : vector<2x8xf32>
    %255 = vector.multi_reduction <maximumf>, %254, %cst_82 [2] : vector<2x8x8xf32> to vector<2x8xf32>
    %256 = vector.shape_cast %255 : vector<2x8xf32> to vector<2x8x1xf32>
    %257 = vector.broadcast %256 : vector<2x8x1xf32> to vector<2x8x8xf32>
    %258 = arith.subf %254, %257 : vector<2x8x8xf32>
    %259 = math.exp %258 : vector<2x8x8xf32>
    %cst_83 = arith.constant dense<0.000000e+00> : vector<2x8xf32>
    %260 = vector.multi_reduction <add>, %259, %cst_83 [2] : vector<2x8x8xf32> to vector<2x8xf32>
    %261 = vector.shape_cast %260 : vector<2x8xf32> to vector<2x8x1xf32>
    %262 = tpu.reciprocal %261 {approx = true} : vector<2x8x1xf32> -> vector<2x8x1xf32>
    %263 = vector.broadcast %262 : vector<2x8x1xf32> to vector<2x8x8xf32>
    %264 = arith.mulf %259, %263 : vector<2x8x8xf32>
    %265 = arith.truncf %264 : vector<2x8x8xf32> to vector<2x8x8xbf16>
    %266 = vector.extract_strided_slice %176 {offsets = [0, 0, 24], sizes = [2, 8, 8], strides = [1, 1, 1]} : vector<2x8x32xf32> to vector<2x8x8xf32>
    %267 = arith.truncf %266 : vector<2x8x8xf32> to vector<2x8x8xbf16>
    "tpu.trace_start"() <{level = 10 : i32, message = "bqk,bkd->bqd"}> : () -> ()
    %cst_84 = arith.constant dense<0.000000e+00> : vector<2x8x8xf32>
    %268 = tpu.matmul %265, %267, %cst_84 {dimension_numbers = #tpu.dot_dimension_numbers<[2], [1], [1], [2], [0, 0, 0, 1, 1, 2], [0], [0]>} : vector<2x8x8xbf16>, vector<2x8x8xbf16>, vector<2x8x8xf32> -> vector<2x8x8xf32>
    "tpu.trace_stop"() : () -> ()
    %269 = tpu.concatenate %199, %222, %245, %268 in 2 : vector<2x8x8xf32>, vector<2x8x8xf32>, vector<2x8x8xf32>, vector<2x8x8xf32> -> vector<2x8x32xf32>
    %270 = vector.shape_cast %269 : vector<2x8x32xf32> to vector<16x32xf32>
    %271 = arith.truncf %270 : vector<16x32xf32> to vector<16x32xbf16>
    %c0_85 = arith.constant 0 : index
    %c0_86 = arith.constant 0 : index
    %c0_87 = arith.constant 0 : index
    %272 = vector.load %arg12[%c0_85, %c0_86, %c0_87] : memref<1x32x32xbf16, #tpu.memory_space<vmem>>, vector<1x32x32xbf16>
    %273 = vector.shape_cast %272 : vector<1x32x32xbf16> to vector<32x32xbf16>
    %cst_88 = arith.constant dense<0.000000e+00> : vector<16x32xf32>
    %274 = tpu.matmul %271, %273, %cst_88 {dimension_numbers = #tpu.dot_dimension_numbers<[1], [0], [0], [1], [0, 0, 1, 1], [], []>} : vector<16x32xbf16>, vector<32x32xbf16>, vector<16x32xf32> -> vector<16x32xf32>
    %c0_89 = arith.constant 0 : index
    %c0_90 = arith.constant 0 : index
    %c0_91 = arith.constant 0 : index
    %275 = vector.load %arg13[%c0_89, %c0_90, %c0_91] : memref<1x1x32xf32, #tpu.memory_space<vmem>>, vector<1x1x32xf32>
    %276 = vector.shape_cast %275 : vector<1x1x32xf32> to vector<32xf32>
    %277 = vector.shape_cast %276 : vector<32xf32> to vector<1x32xf32>
    %278 = vector.broadcast %277 : vector<1x32xf32> to vector<16x32xf32>
    %279 = arith.addf %274, %278 : vector<16x32xf32>
    %280 = arith.addf %154, %279 : vector<16x32xf32>
    %cst_92 = arith.constant dense<0.000000e+00> : vector<16xf32>
    %281 = vector.multi_reduction <add>, %280, %cst_92 [1] : vector<16x32xf32> to vector<16xf32>
    %282 = vector.shape_cast %281 : vector<16xf32> to vector<16x1xf32>
    %cst_93 = arith.constant 3.200000e+01 : f32
    %283 = vector.broadcast %cst_93 : f32 to vector<16x1xf32>
    %284 = arith.divf %282, %283 : vector<16x1xf32>
    %285 = vector.broadcast %284 : vector<16x1xf32> to vector<16x32xf32>
    %286 = arith.subf %280, %285 : vector<16x32xf32>
    %287 = arith.mulf %286, %286 : vector<16x32xf32>
    %cst_94 = arith.constant dense<0.000000e+00> : vector<16xf32>
    %288 = vector.multi_reduction <add>, %287, %cst_94 [1] : vector<16x32xf32> to vector<16xf32>
    %289 = vector.shape_cast %288 : vector<16xf32> to vector<16x1xf32>
    %cst_95 = arith.constant 3.200000e+01 : f32
    %290 = vector.broadcast %cst_95 : f32 to vector<16x1xf32>
    %291 = arith.divf %289, %290 : vector<16x1xf32>
    %292 = vector.broadcast %284 : vector<16x1xf32> to vector<16x32xf32>
    %293 = arith.subf %280, %292 : vector<16x32xf32>
    %cst_96 = arith.constant 9.99999974E-6 : f32
    %294 = vector.broadcast %cst_96 : f32 to vector<16x1xf32>
    %295 = arith.addf %291, %294 : vector<16x1xf32>
    %296 = math.rsqrt %295 : vector<16x1xf32>
    %297 = vector.broadcast %296 : vector<16x1xf32> to vector<16x32xf32>
    %298 = arith.mulf %293, %297 : vector<16x32xf32>
    %c0_97 = arith.constant 0 : index
    %c0_98 = arith.constant 0 : index
    %c0_99 = arith.constant 0 : index
    %299 = vector.load %arg16[%c0_97, %c0_98, %c0_99] : memref<1x1x32xf32, #tpu.memory_space<vmem>>, vector<1x1x32xf32>
    %300 = vector.shape_cast %299 : vector<1x1x32xf32> to vector<32xf32>
    %301 = vector.shape_cast %300 : vector<32xf32> to vector<1x32xf32>
    %302 = vector.broadcast %301 : vector<1x32xf32> to vector<16x32xf32>
    %303 = arith.mulf %298, %302 : vector<16x32xf32>
    %c0_100 = arith.constant 0 : index
    %c0_101 = arith.constant 0 : index
    %c0_102 = arith.constant 0 : index
    %304 = vector.load %arg17[%c0_100, %c0_101, %c0_102] : memref<1x1x32xf32, #tpu.memory_space<vmem>>, vector<1x1x32xf32>
    %305 = vector.shape_cast %304 : vector<1x1x32xf32> to vector<32xf32>
    %306 = vector.shape_cast %305 : vector<32xf32> to vector<1x32xf32>
    %307 = vector.broadcast %306 : vector<1x32xf32> to vector<16x32xf32>
    %308 = arith.addf %303, %307 : vector<16x32xf32>
    %309 = arith.truncf %308 : vector<16x32xf32> to vector<16x32xbf16>
    %c0_103 = arith.constant 0 : index
    %c0_104 = arith.constant 0 : index
    %c0_105 = arith.constant 0 : index
    %310 = vector.load %arg20[%c0_103, %c0_104, %c0_105] : memref<1x32x64xbf16, #tpu.memory_space<vmem>>, vector<1x32x64xbf16>
    %311 = vector.shape_cast %310 : vector<1x32x64xbf16> to vector<32x64xbf16>
    %cst_106 = arith.constant dense<0.000000e+00> : vector<16x64xf32>
    %312 = tpu.matmul %309, %311, %cst_106 {dimension_numbers = #tpu.dot_dimension_numbers<[1], [0], [0], [1], [0, 0, 1, 1], [], []>} : vector<16x32xbf16>, vector<32x64xbf16>, vector<16x64xf32> -> vector<16x64xf32>
    %c0_107 = arith.constant 0 : index
    %c0_108 = arith.constant 0 : index
    %c0_109 = arith.constant 0 : index
    %313 = vector.load %arg21[%c0_107, %c0_108, %c0_109] : memref<1x1x64xf32, #tpu.memory_space<vmem>>, vector<1x1x64xf32>
    %314 = vector.shape_cast %313 : vector<1x1x64xf32> to vector<64xf32>
    %315 = vector.shape_cast %314 : vector<64xf32> to vector<1x64xf32>
    %316 = vector.broadcast %315 : vector<1x64xf32> to vector<16x64xf32>
    %317 = arith.addf %312, %316 : vector<16x64xf32>
    %cst_110 = arith.constant 0.000000e+00 : f32
    %318 = vector.broadcast %cst_110 : f32 to vector<16x64xf32>
    %319 = arith.maximumf %317, %318 : vector<16x64xf32>
    %320 = arith.truncf %319 : vector<16x64xf32> to vector<16x64xbf16>
    %c0_111 = arith.constant 0 : index
    %c0_112 = arith.constant 0 : index
    %c0_113 = arith.constant 0 : index
    %321 = vector.load %arg22[%c0_111, %c0_112, %c0_113] : memref<1x64x32xbf16, #tpu.memory_space<vmem>>, vector<1x64x32xbf16>
    %322 = vector.shape_cast %321 : vector<1x64x32xbf16> to vector<64x32xbf16>
    %cst_114 = arith.constant dense<0.000000e+00> : vector<16x32xf32>
    %323 = tpu.matmul %320, %322, %cst_114 {dimension_numbers = #tpu.dot_dimension_numbers<[1], [0], [0], [1], [0, 0, 1, 1], [], []>} : vector<16x64xbf16>, vector<64x32xbf16>, vector<16x32xf32> -> vector<16x32xf32>
    %c0_115 = arith.constant 0 : index
    %c0_116 = arith.constant 0 : index
    %c0_117 = arith.constant 0 : index
    %324 = vector.load %arg23[%c0_115, %c0_116, %c0_117] : memref<1x1x32xf32, #tpu.memory_space<vmem>>, vector<1x1x32xf32>
    %325 = vector.shape_cast %324 : vector<1x1x32xf32> to vector<32xf32>
    %326 = vector.shape_cast %325 : vector<32xf32> to vector<1x32xf32>
    %327 = vector.broadcast %326 : vector<1x32xf32> to vector<16x32xf32>
    %328 = arith.addf %323, %327 : vector<16x32xf32>
    %329 = arith.addf %308, %328 : vector<16x32xf32>
    %cst_118 = arith.constant dense<0.000000e+00> : vector<16xf32>
    %330 = vector.multi_reduction <add>, %329, %cst_118 [1] : vector<16x32xf32> to vector<16xf32>
    %331 = vector.shape_cast %330 : vector<16xf32> to vector<16x1xf32>
    %cst_119 = arith.constant 3.200000e+01 : f32
    %332 = vector.broadcast %cst_119 : f32 to vector<16x1xf32>
    %333 = arith.divf %331, %332 : vector<16x1xf32>
    %334 = vector.broadcast %333 : vector<16x1xf32> to vector<16x32xf32>
    %335 = arith.subf %329, %334 : vector<16x32xf32>
    %336 = arith.mulf %335, %335 : vector<16x32xf32>
    %cst_120 = arith.constant dense<0.000000e+00> : vector<16xf32>
    %337 = vector.multi_reduction <add>, %336, %cst_120 [1] : vector<16x32xf32> to vector<16xf32>
    %338 = vector.shape_cast %337 : vector<16xf32> to vector<16x1xf32>
    %cst_121 = arith.constant 3.200000e+01 : f32
    %339 = vector.broadcast %cst_121 : f32 to vector<16x1xf32>
    %340 = arith.divf %338, %339 : vector<16x1xf32>
    %341 = vector.broadcast %333 : vector<16x1xf32> to vector<16x32xf32>
    %342 = arith.subf %329, %341 : vector<16x32xf32>
    %cst_122 = arith.constant 9.99999974E-6 : f32
    %343 = vector.broadcast %cst_122 : f32 to vector<16x1xf32>
    %344 = arith.addf %340, %343 : vector<16x1xf32>
    %345 = math.rsqrt %344 : vector<16x1xf32>
    %346 = vector.broadcast %345 : vector<16x1xf32> to vector<16x32xf32>
    %347 = arith.mulf %342, %346 : vector<16x32xf32>
    %c0_123 = arith.constant 0 : index
    %c0_124 = arith.constant 0 : index
    %c0_125 = arith.constant 0 : index
    %348 = vector.load %arg18[%c0_123, %c0_124, %c0_125] : memref<1x1x32xf32, #tpu.memory_space<vmem>>, vector<1x1x32xf32>
    %349 = vector.shape_cast %348 : vector<1x1x32xf32> to vector<32xf32>
    %350 = vector.shape_cast %349 : vector<32xf32> to vector<1x32xf32>
    %351 = vector.broadcast %350 : vector<1x32xf32> to vector<16x32xf32>
    %352 = arith.mulf %347, %351 : vector<16x32xf32>
    %c0_126 = arith.constant 0 : index
    %c0_127 = arith.constant 0 : index
    %c0_128 = arith.constant 0 : index
    %353 = vector.load %arg19[%c0_126, %c0_127, %c0_128] : memref<1x1x32xf32, #tpu.memory_space<vmem>>, vector<1x1x32xf32>
    %354 = vector.shape_cast %353 : vector<1x1x32xf32> to vector<32xf32>
    %355 = vector.shape_cast %354 : vector<32xf32> to vector<1x32xf32>
    %356 = vector.broadcast %355 : vector<1x32xf32> to vector<16x32xf32>
    %357 = arith.addf %352, %356 : vector<16x32xf32>
    %358 = vector.shape_cast %357 : vector<16x32xf32> to vector<2x8x32xf32>
    %c0_129 = arith.constant 0 : index
    %c0_130 = arith.constant 0 : index
    %c0_131 = arith.constant 0 : index
    %359 = vector.load %arg25[%c0_129, %c0_130, %c0_131] : memref<2x8x32xf32, #tpu.memory_space<vmem>>, vector<2x8x32xf32>
    tpu.vector_store %arg25[%c0_129, %c0_130, %c0_131], %358 {strides = array<i32>} : memref<2x8x32xf32, #tpu.memory_space<vmem>>, vector<2x8x32xf32>,
    %c1_i32 = arith.constant 1 : i32
    %360 = arith.cmpi eq, %arg1, %c1_i32 : i32
    %361 = arith.extui %360 : i1 to i32
    %c0_i32_132 = arith.constant 0 : i32
    %362 = arith.cmpi ne, %361, %c0_i32_132 : i32
    scf.if %362 {
      %c0_133 = arith.constant 0 : index
      %c0_134 = arith.constant 0 : index
      %c0_135 = arith.constant 0 : index
      %363 = vector.load %arg24[%c0_133, %c0_134, %c0_135] : memref<2x8x32xf32, #tpu.memory_space<vmem>>, vector<2x8x32xf32>
      tpu.vector_store %arg24[%c0_133, %c0_134, %c0_135], %358 {strides = array<i32>} : memref<2x8x32xf32, #tpu.memory_space<vmem>>, vector<2x8x32xf32>,
    } else {
    }
    return
  }
  func.func @transform_0(%arg0: i32, %arg1: i32) -> (i32, i32, i32) {
    %c0_i32 = arith.constant 0 : i32
    %c0_i32_0 = arith.constant 0 : i32
    %c0_i32_1 = arith.constant 0 : i32
    return %arg0, %c0_i32, %c0_i32_0 : i32, i32, i32
  }
  func.func @transform_1(%arg0: i32, %arg1: i32) -> (i32, i32, i32) {
    %c0_i32 = arith.constant 0 : i32
    %c0_i32_0 = arith.constant 0 : i32
    %c0_i32_1 = arith.constant 0 : i32
    return %arg0, %c0_i32, %c0_i32_0 : i32, i32, i32
  }
  func.func @transform_2(%arg0: i32, %arg1: i32) -> (i32, i32) {
    %c0_i32 = arith.constant 0 : i32
    %c0_i32_0 = arith.constant 0 : i32
    %c0_i32_1 = arith.constant 0 : i32
    return %c0_i32, %c0_i32_0 : i32, i32
  }
  func.func @transform_3(%arg0: i32, %arg1: i32) -> (i32, i32, i32) {
    %c0_i32 = arith.constant 0 : i32
    %c0_i32_0 = arith.constant 0 : i32
    %c0_i32_1 = arith.constant 0 : i32
    return %arg0, %c0_i32, %c0_i32_0 : i32, i32, i32
  }
  func.func @transform_4(%arg0: i32, %arg1: i32) -> (i32, i32, i32) {
    %c0_i32 = arith.constant 0 : i32
    %c0_i32_0 = arith.constant 0 : i32
    %c0_i32_1 = arith.constant 0 : i32
    return %arg1, %c0_i32, %c0_i32_0 : i32, i32, i32
  }
  func.func @transform_5(%arg0: i32, %arg1: i32) -> (i32, i32, i32) {
    %c0_i32 = arith.constant 0 : i32
    %c0_i32_0 = arith.constant 0 : i32
    %c0_i32_1 = arith.constant 0 : i32
    return %arg1, %c0_i32, %c0_i32_0 : i32, i32, i32
  }
  func.func @transform_6(%arg0: i32, %arg1: i32) -> (i32, i32, i32) {
    %c0_i32 = arith.constant 0 : i32
    %c0_i32_0 = arith.constant 0 : i32
    %c0_i32_1 = arith.constant 0 : i32
    return %arg1, %c0_i32, %c0_i32_0 : i32, i32, i32
  }
  func.func @transform_7(%arg0: i32, %arg1: i32) -> (i32, i32, i32) {
    %c0_i32 = arith.constant 0 : i32
    %c0_i32_0 = arith.constant 0 : i32
    %c0_i32_1 = arith.constant 0 : i32
    return %arg1, %c0_i32, %c0_i32_0 : i32, i32, i32
  }
  func.func @transform_8(%arg0: i32, %arg1: i32) -> (i32, i32, i32) {
    %c0_i32 = arith.constant 0 : i32
    %c0_i32_0 = arith.constant 0 : i32
    %c0_i32_1 = arith.constant 0 : i32
    return %arg1, %c0_i32, %c0_i32_0 : i32, i32, i32
  }
  func.func @transform_9(%arg0: i32, %arg1: i32) -> (i32, i32, i32) {
    %c0_i32 = arith.constant 0 : i32
    %c0_i32_0 = arith.constant 0 : i32
    %c0_i32_1 = arith.constant 0 : i32
    return %arg1, %c0_i32, %c0_i32_0 : i32, i32, i32
  }
  func.func @transform_10(%arg0: i32, %arg1: i32) -> (i32, i32, i32) {
    %c0_i32 = arith.constant 0 : i32
    %c0_i32_0 = arith.constant 0 : i32
    %c0_i32_1 = arith.constant 0 : i32
    return %arg1, %c0_i32, %c0_i32_0 : i32, i32, i32
  }
  func.func @transform_11(%arg0: i32, %arg1: i32) -> (i32, i32, i32) {
    %c0_i32 = arith.constant 0 : i32
    %c0_i32_0 = arith.constant 0 : i32
    %c0_i32_1 = arith.constant 0 : i32
    return %arg1, %c0_i32, %c0_i32_0 : i32, i32, i32
  }
  func.func @transform_12(%arg0: i32, %arg1: i32) -> (i32, i32, i32) {
    %c0_i32 = arith.constant 0 : i32
    %c0_i32_0 = arith.constant 0 : i32
    %c0_i32_1 = arith.constant 0 : i32
    return %arg1, %c0_i32, %c0_i32_0 : i32, i32, i32
  }
  func.func @transform_13(%arg0: i32, %arg1: i32) -> (i32, i32, i32) {
    %c0_i32 = arith.constant 0 : i32
    %c0_i32_0 = arith.constant 0 : i32
    %c0_i32_1 = arith.constant 0 : i32
    return %arg1, %c0_i32, %c0_i32_0 : i32, i32, i32
  }
  func.func @transform_14(%arg0: i32, %arg1: i32) -> (i32, i32, i32) {
    %c0_i32 = arith.constant 0 : i32
    %c0_i32_0 = arith.constant 0 : i32
    %c0_i32_1 = arith.constant 0 : i32
    return %arg1, %c0_i32, %c0_i32_0 : i32, i32, i32
  }
  func.func @transform_15(%arg0: i32, %arg1: i32) -> (i32, i32, i32) {
    %c0_i32 = arith.constant 0 : i32
    %c0_i32_0 = arith.constant 0 : i32
    %c0_i32_1 = arith.constant 0 : i32
    return %arg1, %c0_i32, %c0_i32_0 : i32, i32, i32
  }
  func.func @transform_16(%arg0: i32, %arg1: i32) -> (i32, i32, i32) {
    %c0_i32 = arith.constant 0 : i32
    %c0_i32_0 = arith.constant 0 : i32
    %c0_i32_1 = arith.constant 0 : i32
    return %arg1, %c0_i32, %c0_i32_0 : i32, i32, i32
  }
  func.func @transform_17(%arg0: i32, %arg1: i32) -> (i32, i32, i32) {
    %c0_i32 = arith.constant 0 : i32
    %c0_i32_0 = arith.constant 0 : i32
    %c0_i32_1 = arith.constant 0 : i32
    return %arg1, %c0_i32, %c0_i32_0 : i32, i32, i32
  }
  func.func @transform_18(%arg0: i32, %arg1: i32) -> (i32, i32, i32) {
    %c0_i32 = arith.constant 0 : i32
    %c0_i32_0 = arith.constant 0 : i32
    %c0_i32_1 = arith.constant 0 : i32
    return %arg1, %c0_i32, %c0_i32_0 : i32, i32, i32
  }
  func.func @transform_19(%arg0: i32, %arg1: i32) -> (i32, i32, i32) {
    %c0_i32 = arith.constant 0 : i32
    %c0_i32_0 = arith.constant 0 : i32
    %c0_i32_1 = arith.constant 0 : i32
    return %arg1, %c0_i32, %c0_i32_0 : i32, i32, i32
  }
  func.func @transform_20(%arg0: i32, %arg1: i32) -> (i32, i32, i32) {
    %c0_i32 = arith.constant 0 : i32
    %c0_i32_0 = arith.constant 0 : i32
    %c0_i32_1 = arith.constant 0 : i32
    return %arg1, %c0_i32, %c0_i32_0 : i32, i32, i32
  }
  func.func @transform_21(%arg0: i32, %arg1: i32) -> (i32, i32, i32) {
    %c0_i32 = arith.constant 0 : i32
    %c0_i32_0 = arith.constant 0 : i32
    %c0_i32_1 = arith.constant 0 : i32
    return %arg1, %c0_i32, %c0_i32_0 : i32, i32, i32
  }
  func.func @transform_22(%arg0: i32, %arg1: i32) -> (i32, i32, i32) {
    %c0_i32 = arith.constant 0 : i32
    %c0_i32_0 = arith.constant 0 : i32
    %c0_i32_1 = arith.constant 0 : i32
    return %arg0, %c0_i32, %c0_i32_0 : i32, i32, i32
  }
}

</mosaic_0001>

<llo_original>
// kernel: tpu_custom_call.1
$region0: #{tpu_custom_call.1}
  #allocation0 [shape = 'u32[]', space=smem, size = 0x4, offset = 0x4, fixed_abs, tag = 'smem constant byte address 0x4 - core index']
  #allocation1 [shape = 'u32[144,128]{1,0:T(1,128)}', space=vmem, size = 0x12000, scoped, tag = 'internal scratch']
  #allocation2 [shape = 'f32[2,8,32]{2,1,0:T(8,128)}', space=vmem, size = 0x2000, scoped, tag = 'scratch operand']
  %s0 = inlined_call_operand.hbm [shape: f32[2,8,32], index: 0, kind: input, shape index: {}]
  %s1 = inlined_call_operand.hbm [shape: f32[2,8,32], index: 1, kind: input, shape index: {}]
  %s2 = inlined_call_operand.hbm [shape: f32[8,8], index: 2, kind: input, shape index: {}]
  %s3 = inlined_call_operand.hbm [shape: f32[2,1,8], index: 3, kind: input, shape index: {}]
  %s4 = inlined_call_operand.vmem [shape: bf16[2,32,96], index: 4, kind: input, shape index: {}]
  %s5 = inlined_call_operand.hbm [shape: f32[2,1,96], index: 5, kind: input, shape index: {}]
  %s6 = inlined_call_operand.vmem [shape: bf16[2,32,32], index: 6, kind: input, shape index: {}]
  %s7 = inlined_call_operand.hbm [shape: f32[2,1,32], index: 7, kind: input, shape index: {}]
  %s8 = inlined_call_operand.vmem [shape: bf16[2,32,96], index: 8, kind: input, shape index: {}]
  %s9 = inlined_call_operand.hbm [shape: f32[2,1,96], index: 9, kind: input, shape index: {}]
  %s10 = inlined_call_operand.hbm [shape: bf16[2,32,32], index: 10, kind: input, shape index: {}]
  %s11 = inlined_call_operand.hbm [shape: f32[2,1,32], index: 11, kind: input, shape index: {}]
  %s12 = inlined_call_operand.hbm [shape: f32[2,1,32], index: 12, kind: input, shape index: {}]
  %s13 = inlined_call_operand.hbm [shape: f32[2,1,32], index: 13, kind: input, shape index: {}]
  %s14 = inlined_call_operand.hbm [shape: f32[2,1,32], index: 14, kind: input, shape index: {}]
  %s15 = inlined_call_operand.hbm [shape: f32[2,1,32], index: 15, kind: input, shape index: {}]
  %s16 = inlined_call_operand.hbm [shape: f32[2,1,32], index: 16, kind: input, shape index: {}]
  %s17 = inlined_call_operand.hbm [shape: f32[2,1,32], index: 17, kind: input, shape index: {}]
  %s18 = inlined_call_operand.vmem [shape: bf16[2,32,64], index: 18, kind: input, shape index: {}]
  %s19 = inlined_call_operand.vmem [shape: f32[2,1,64], index: 19, kind: input, shape index: {}]
  %s20 = inlined_call_operand.vmem [shape: bf16[2,64,32], index: 20, kind: input, shape index: {}]
  %s21 = inlined_call_operand.vmem [shape: f32[2,1,32], index: 21, kind: input, shape index: {}]
  %s22 = inlined_call_operand.hbm [shape: f32[2,8,32], index: 22, kind: output, shape index: {}]
  %s23 = sld [smem:[#allocation0]]
  $region189: #{tpu_custom_call.1} parent=0
    _
  %s25 = ssub.s32 1, %s23
  %s26 = scalar_select 0, %s25, %s23
  $region1: #{tpu_custom_call.1} parent=0
    #allocation3 [shape = 'u8[8192]{0}', space=vmem, size = 0x2000, scoped, tag = 'input window, operand 0, single buffered']
    #allocation4 [shape = 's32[2]{0}', space=sflag, size = 0x8, scoped, tag = 'scoped memory for tpu_custom_call.1']
    #allocation5 [shape = 's32[2]{0}', space=sflag, size = 0x8, scoped, tag = 'scoped memory for tpu_custom_call.1']
    #allocation6 [shape = 'u8[8192]{0}', space=vmem, size = 0x2000, scoped, tag = 'input window, operand 1, single buffered']
    #allocation7 [shape = 's32[1]{0}', space=sflag, size = 0x4, scoped, tag = 'scoped memory for tpu_custom_call.1']
    #allocation8 [shape = 'u8[4096]{0}', space=vmem, size = 0x1000, scoped, tag = 'input window, operand 2, single buffered']
    #allocation9 [shape = 'u8[1024]{0}', space=vmem, size = 0x400, scoped, tag = 'input window, operand 3, single buffered']
    #allocation10 [shape = 's32[1]{0}', space=sflag, size = 0x4, scoped, tag = 'scoped memory for tpu_custom_call.1']
    #allocation11 [shape = 'u8[1024]{0}', space=vmem, size = 0x400, scoped, tag = 'input window, operand 5']
    #allocation12 [shape = 'u8[1024]{0}', space=vmem, size = 0x400, scoped, tag = 'input window, operand 7']
    #allocation13 [shape = 'u8[1024]{0}', space=vmem, size = 0x400, scoped, tag = 'input window, operand 9']
    #allocation14 [shape = 'u8[16384]{0}', space=vmem, size = 0x4000, scoped, tag = 'input window, operand 10']
    #allocation15 [shape = 'u8[1024]{0}', space=vmem, size = 0x400, scoped, tag = 'input window, operand 11']
    #allocation16 [shape = 'u8[1024]{0}', space=vmem, size = 0x400, scoped, tag = 'input window, operand 12']
    #allocation17 [shape = 'u8[1024]{0}', space=vmem, size = 0x400, scoped, tag = 'input window, operand 13']
    #allocation18 [shape = 'u8[1024]{0}', space=vmem, size = 0x400, scoped, tag = 'input window, operand 14']
    #allocation19 [shape = 'u8[1024]{0}', space=vmem, size = 0x400, scoped, tag = 'input window, operand 15']
    #allocation20 [shape = 'u8[1024]{0}', space=vmem, size = 0x400, scoped, tag = 'input window, operand 16']
    #allocation21 [shape = 'u8[1024]{0}', space=vmem, size = 0x400, scoped, tag = 'input window, operand 17']
    #allocation22 [shape = 'u8[8192]{0}', space=vmem, size = 0x2000, scoped, tag = 'output window, operand 0, single buffered']
    %27 = vsyncpa [#allocation4], 0
    %28 = vsyncpa [#allocation7], 0
    %29 = vsyncpa [#allocation10], 0
    %30 = vsyncpa [#allocation5], 0
    loop: start=0, step=1, limit=4
    $region2: #{tpu_custom_call.1} parent=1 // loop_pre_header
      _
    $region3: #{tpu_custom_call.1} parent=1 // loop_header
      %s32 = sphi 0, %s36
      %p33 = scmp.ge.s32.totalorder %s32, 4
      %s39 = sphi 0, %s51
      %s40 = sphi 0, %s47
      %s41 = sphi 0, %s39
      %s42 = sphi 0, %s40
      %s43 = sphi 0, %s41
      %s44 = sphi 0, %s42
      %s54 = sphi 0, %s56
      %s57 = sphi 0, %s54
      %s58 = sphi 0, %s57
      %s74 = sphi 0, %s58
      %s80 = sphi 0, %s82
      %s83 = sphi 0, %s80
      %s84 = sphi 0, %s83
      %s100 = sphi 0, %s84
      %s104 = sphi 0, %s104
      %s106 = sphi 0, %s104
      %s107 = sphi 0, %s106
      %s121 = sphi 0, %s107
      %s127 = sphi 0, %s129
      %s130 = sphi 0, %s127
      %s131 = sphi 0, %s130
      %s147 = sphi 0, %s131
      %s153 = sphi 0, %s155
      %s156 = sphi 0, %s153
      %s157 = sphi 0, %s156
      %s173 = sphi 0, %s157
      %s179 = sphi 0, %s181
      %s182 = sphi 0, %s179
      %s183 = sphi 0, %s182
      %s199 = sphi 0, %s183
      %s205 = sphi 0, %s207
      %s208 = sphi 0, %s205
      %s209 = sphi 0, %s208
      %s225 = sphi 0, %s209
      %s231 = sphi 0, %s233
      %s234 = sphi 0, %s231
      %s235 = sphi 0, %s234
      %s251 = sphi 0, %s235
      %s257 = sphi 0, %s259
      %s260 = sphi 0, %s257
      %s261 = sphi 0, %s260
      %s277 = sphi 0, %s261
      %s283 = sphi 0, %s285
      %s286 = sphi 0, %s283
      %s287 = sphi 0, %s286
      %s303 = sphi 0, %s287
      %s309 = sphi 0, %s311
      %s312 = sphi 0, %s309
      %s313 = sphi 0, %s312
      %s329 = sphi 0, %s313
      %s335 = sphi 0, %s337
      %s338 = sphi 0, %s335
      %s339 = sphi 0, %s338
      %s355 = sphi 0, %s339
      %s361 = sphi 0, %s363
      %s364 = sphi 0, %s361
      %s365 = sphi 0, %s364
      %s381 = sphi 0, %s365
      %s387 = sphi 0, %s389
      %s390 = sphi 0, %s387
      %s391 = sphi 0, %s390
      %s407 = sphi 0, %s391
      %s413 = sphi 0, %s415
      %s416 = sphi 0, %s413
      %s417 = sphi 0, %s416
      %s433 = sphi 0, %s417
      %s439 = sphi 0, %s441
      %s442 = sphi 0, %s439
      %s443 = sphi 0, %s442
      %s459 = sphi 0, %s443
      %s465 = sphi 0, %s467
      %s468 = sphi 0, %s465
      %s469 = sphi 0, %s468
      %s485 = sphi 0, %s469
      %s491 = sphi 0, %s493
      %s494 = sphi 0, %s491
      %s495 = sphi 0, %s494
      %s511 = sphi 0, %s495
      %s517 = sphi 0, %s519
      %s520 = sphi 0, %s517
      %s521 = sphi 0, %s520
      %s537 = sphi 0, %s521
      %s543 = sphi 0, %s545
      %s546 = sphi 0, %s543
      %s547 = sphi 0, %s546
      %s563 = sphi 0, %s547
      %s569 = sphi 0, %s571
      %s572 = sphi 0, %s569
      %s573 = sphi 0, %s572
      %s589 = sphi 0, %s573
      %s595 = sphi 0, %s597
      %s598 = sphi 0, %s595
      %s599 = sphi 0, %s598
      %s615 = sphi 0, %s599
      %s621 = sphi 0, %s623
      %s624 = sphi 0, %s621
      %s625 = sphi 0, %s624
      %s641 = sphi 0, %s625
    $region4: #{tpu_custom_call.1} parent=1 // loop_header_branch
      %35 = sbr.rel (%p33) target = $region8
    $region5: #{tpu_custom_call.1} parent=1 // loop_body
      %s37 = ssub.s32 %s32, 1
      %s38 = ssub.s32 %s32, 2
      %s45 = sadd.s32 1, %s40
      %p46 = scmp.ge.s32.totalorder %s45, 2
      %s47 = scalar_select %p46, 0, %s45
      %s48 = sadd.s32 1, %s39
      %s49 = scalar_select %p46, %s48, %s39
      %p50 = scmp.ge.s32.totalorder %s49, 1
      %s51 = scalar_select %p50, 0, %s49
      %s52 = ssub.s32 %s39, %s51
      %p53 = scmp.eq.s32.totalorder %s52, 0
      %s55 = sadd.s32 %s54, 1
      %s56 = scalar_select %p53, %s54, %s55
      %p59 = pneg %p53
      %p60 = scmp.eq.s32.totalorder %s32, 1
      %p61 = por %p59, %p60
      %p62 = scmp.ne.s32.totalorder %s54, %s57
      %p63 = scmp.eq.s32.totalorder %s32, 0
      %p64 = por %p62, %p63
      %p65 = scmp.ne.s32.totalorder %s54, %s57
      %p66 = scmp.eq.s32.totalorder %s37, 1
      %p67 = por %p65, %p66
      %p68 = scmp.ne.s32.totalorder %s57, %s58
      %p69 = scmp.eq.s32.totalorder %s37, 0
      %p70 = por %p68, %p69
      %p71 = scmp.ne.s32.totalorder %s57, %s58
      %p72 = scmp.eq.s32.totalorder %s38, 1
      %p73 = por %p71, %p72
      %p75 = scmp.ne.s32.totalorder %s58, %s74
      %p76 = scmp.eq.s32.totalorder %s38, 0
      %p77 = por %p75, %p76
      %s78 = ssub.s32 %s39, %s51
      %p79 = scmp.eq.s32.totalorder %s78, 0
      %s81 = sadd.s32 %s80, 1
      %s82 = scalar_select %p79, %s80, %s81
      %p85 = pneg %p79
      %p86 = scmp.eq.s32.totalorder %s32, 1
      %p87 = por %p85, %p86
      %p88 = scmp.ne.s32.totalorder %s80, %s83
      %p89 = scmp.eq.s32.totalorder %s32, 0
      %p90 = por %p88, %p89
      %p91 = scmp.ne.s32.totalorder %s80, %s83
      %p92 = scmp.eq.s32.totalorder %s37, 1
      %p93 = por %p91, %p92
      %p94 = scmp.ne.s32.totalorder %s83, %s84
      %p95 = scmp.eq.s32.totalorder %s37, 0
      %p96 = por %p94, %p95
      %p97 = scmp.ne.s32.totalorder %s83, %s84
      %p98 = scmp.eq.s32.totalorder %s38, 1
      %p99 = por %p97, %p98
      %p101 = scmp.ne.s32.totalorder %s84, %s100
      %p102 = scmp.eq.s32.totalorder %s38, 0
      %p103 = por %p101, %p102
      %s105 = sadd.s32 %s104, 1
      %p108 = scmp.eq.s32.totalorder %s32, 1
      %p109 = scmp.ne.s32.totalorder %s104, %s106
      %p110 = scmp.eq.s32.totalorder %s32, 0
      %p111 = por %p109, %p110
      %p112 = scmp.ne.s32.totalorder %s104, %s106
      %p113 = scmp.eq.s32.totalorder %s37, 1
      %p114 = por %p112, %p113
      %p115 = scmp.ne.s32.totalorder %s106, %s107
      %p116 = scmp.eq.s32.totalorder %s37, 0
      %p117 = por %p115, %p116
      %p118 = scmp.ne.s32.totalorder %s106, %s107
      %p119 = scmp.eq.s32.totalorder %s38, 1
      %p120 = por %p118, %p119
      %p122 = scmp.ne.s32.totalorder %s107, %s121
      %p123 = scmp.eq.s32.totalorder %s38, 0
      %p124 = por %p122, %p123
      %s125 = ssub.s32 %s39, %s51
      %p126 = scmp.eq.s32.totalorder %s125, 0
      %s128 = sadd.s32 %s127, 1
      %s129 = scalar_select %p126, %s127, %s128
      %p132 = pneg %p126
      %p133 = scmp.eq.s32.totalorder %s32, 1
      %p134 = por %p132, %p133
      %p135 = scmp.ne.s32.totalorder %s127, %s130
      %p136 = scmp.eq.s32.totalorder %s32, 0
      %p137 = por %p135, %p136
      %p138 = scmp.ne.s32.totalorder %s127, %s130
      %p139 = scmp.eq.s32.totalorder %s37, 1
      %p140 = por %p138, %p139
      %p141 = scmp.ne.s32.totalorder %s130, %s131
      %p142 = scmp.eq.s32.totalorder %s37, 0
      %p143 = por %p141, %p142
      %p144 = scmp.ne.s32.totalorder %s130, %s131
      %p145 = scmp.eq.s32.totalorder %s38, 1
      %p146 = por %p144, %p145
      %p148 = scmp.ne.s32.totalorder %s131, %s147
      %p149 = scmp.eq.s32.totalorder %s38, 0
      %p150 = por %p148, %p149
      %s151 = ssub.s32 %s40, %s47
      %p152 = scmp.eq.s32.totalorder %s151, 0
      %s154 = sadd.s32 %s153, 1
      %s155 = scalar_select %p152, %s153, %s154
      %p158 = pneg %p152
      %p159 = scmp.eq.s32.totalorder %s32, 1
      %p160 = por %p158, %p159
      %p161 = scmp.ne.s32.totalorder %s153, %s156
      %p162 = scmp.eq.s32.totalorder %s32, 0
      %p163 = por %p161, %p162
      %p164 = scmp.ne.s32.totalorder %s153, %s156
      %p165 = scmp.eq.s32.totalorder %s37, 1
      %p166 = por %p164, %p165
      %p167 = scmp.ne.s32.totalorder %s156, %s157
      %p168 = scmp.eq.s32.totalorder %s37, 0
      %p169 = por %p167, %p168
      %p170 = scmp.ne.s32.totalorder %s156, %s157
      %p171 = scmp.eq.s32.totalorder %s38, 1
      %p172 = por %p170, %p171
      %p174 = scmp.ne.s32.totalorder %s157, %s173
      %p175 = scmp.eq.s32.totalorder %s38, 0
      %p176 = por %p174, %p175
      %s177 = ssub.s32 %s40, %s47
      %p178 = scmp.eq.s32.totalorder %s177, 0
      %s180 = sadd.s32 %s179, 1
      %s181 = scalar_select %p178, %s179, %s180
      %p184 = pneg %p178
      %p185 = scmp.eq.s32.totalorder %s32, 1
      %p186 = por %p184, %p185
      %p187 = scmp.ne.s32.totalorder %s179, %s182
      %p188 = scmp.eq.s32.totalorder %s32, 0
      %p189 = por %p187, %p188
      %p190 = scmp.ne.s32.totalorder %s179, %s182
      %p191 = scmp.eq.s32.totalorder %s37, 1
      %p192 = por %p190, %p191
      %p193 = scmp.ne.s32.totalorder %s182, %s183
      %p194 = scmp.eq.s32.totalorder %s37, 0
      %p195 = por %p193, %p194
      %p196 = scmp.ne.s32.totalorder %s182, %s183
      %p197 = scmp.eq.s32.totalorder %s38, 1
      %p198 = por %p196, %p197
      %p200 = scmp.ne.s32.totalorder %s183, %s199
      %p201 = scmp.eq.s32.totalorder %s38, 0
      %p202 = por %p200, %p201
      %s203 = ssub.s32 %s40, %s47
      %p204 = scmp.eq.s32.totalorder %s203, 0
      %s206 = sadd.s32 %s205, 1
      %s207 = scalar_select %p204, %s205, %s206
      %p210 = pneg %p204
      %p211 = scmp.eq.s32.totalorder %s32, 1
      %p212 = por %p210, %p211
      %p213 = scmp.ne.s32.totalorder %s205, %s208
      %p214 = scmp.eq.s32.totalorder %s32, 0
      %p215 = por %p213, %p214
      %p216 = scmp.ne.s32.totalorder %s205, %s208
      %p217 = scmp.eq.s32.totalorder %s37, 1
      %p218 = por %p216, %p217
      %p219 = scmp.ne.s32.totalorder %s208, %s209
      %p220 = scmp.eq.s32.totalorder %s37, 0
      %p221 = por %p219, %p220
      %p222 = scmp.ne.s32.totalorder %s208, %s209
      %p223 = scmp.eq.s32.totalorder %s38, 1
      %p224 = por %p222, %p223
      %p226 = scmp.ne.s32.totalorder %s209, %s225
      %p227 = scmp.eq.s32.totalorder %s38, 0
      %p228 = por %p226, %p227
      %s229 = ssub.s32 %s40, %s47
      %p230 = scmp.eq.s32.totalorder %s229, 0
      %s232 = sadd.s32 %s231, 1
      %s233 = scalar_select %p230, %s231, %s232
      %p236 = pneg %p230
      %p237 = scmp.eq.s32.totalorder %s32, 1
      %p238 = por %p236, %p237
      %p239 = scmp.ne.s32.totalorder %s231, %s234
      %p240 = scmp.eq.s32.totalorder %s32, 0
      %p241 = por %p239, %p240
      %p242 = scmp.ne.s32.totalorder %s231, %s234
      %p243 = scmp.eq.s32.totalorder %s37, 1
      %p244 = por %p242, %p243
      %p245 = scmp.ne.s32.totalorder %s234, %s235
      %p246 = scmp.eq.s32.totalorder %s37, 0
      %p247 = por %p245, %p246
      %p248 = scmp.ne.s32.totalorder %s234, %s235
      %p249 = scmp.eq.s32.totalorder %s38, 1
      %p250 = por %p248, %p249
      %p252 = scmp.ne.s32.totalorder %s235, %s251
      %p253 = scmp.eq.s32.totalorder %s38, 0
      %p254 = por %p252, %p253
      %s255 = ssub.s32 %s40, %s47
      %p256 = scmp.eq.s32.totalorder %s255, 0
      %s258 = sadd.s32 %s257, 1
      %s259 = scalar_select %p256, %s257, %s258
      %p262 = pneg %p256
      %p263 = scmp.eq.s32.totalorder %s32, 1
      %p264 = por %p262, %p263
      %p265 = scmp.ne.s32.totalorder %s257, %s260
      %p266 = scmp.eq.s32.totalorder %s32, 0
      %p267 = por %p265, %p266
      %p268 = scmp.ne.s32.totalorder %s257, %s260
      %p269 = scmp.eq.s32.totalorder %s37, 1
      %p270 = por %p268, %p269
      %p271 = scmp.ne.s32.totalorder %s260, %s261
      %p272 = scmp.eq.s32.totalorder %s37, 0
      %p273 = por %p271, %p272
      %p274 = scmp.ne.s32.totalorder %s260, %s261
      %p275 = scmp.eq.s32.totalorder %s38, 1
      %p276 = por %p274, %p275
      %p278 = scmp.ne.s32.totalorder %s261, %s277
      %p279 = scmp.eq.s32.totalorder %s38, 0
      %p280 = por %p278, %p279
      %s281 = ssub.s32 %s40, %s47
      %p282 = scmp.eq.s32.totalorder %s281, 0
      %s284 = sadd.s32 %s283, 1
      %s285 = scalar_select %p282, %s283, %s284
      %p288 = pneg %p282
      %p289 = scmp.eq.s32.totalorder %s32, 1
      %p290 = por %p288, %p289
      %p291 = scmp.ne.s32.totalorder %s283, %s286
      %p292 = scmp.eq.s32.totalorder %s32, 0
      %p293 = por %p291, %p292
      %p294 = scmp.ne.s32.totalorder %s283, %s286
      %p295 = scmp.eq.s32.totalorder %s37, 1
      %p296 = por %p294, %p295
      %p297 = scmp.ne.s32.totalorder %s286, %s287
      %p298 = scmp.eq.s32.totalorder %s37, 0
      %p299 = por %p297, %p298
      %p300 = scmp.ne.s32.totalorder %s286, %s287
      %p301 = scmp.eq.s32.totalorder %s38, 1
      %p302 = por %p300, %p301
      %p304 = scmp.ne.s32.totalorder %s287, %s303
      %p305 = scmp.eq.s32.totalorder %s38, 0
      %p306 = por %p304, %p305
      %s307 = ssub.s32 %s40, %s47
      %p308 = scmp.eq.s32.totalorder %s307, 0
      %s310 = sadd.s32 %s309, 1
      %s311 = scalar_select %p308, %s309, %s310
      %p314 = pneg %p308
      %p315 = scmp.eq.s32.totalorder %s32, 1
      %p316 = por %p314, %p315
      %p317 = scmp.ne.s32.totalorder %s309, %s312
      %p318 = scmp.eq.s32.totalorder %s32, 0
      %p319 = por %p317, %p318
      %p320 = scmp.ne.s32.totalorder %s309, %s312
      %p321 = scmp.eq.s32.totalorder %s37, 1
      %p322 = por %p320, %p321
      %p323 = scmp.ne.s32.totalorder %s312, %s313
      %p324 = scmp.eq.s32.totalorder %s37, 0
      %p325 = por %p323, %p324
      %p326 = scmp.ne.s32.totalorder %s312, %s313
      %p327 = scmp.eq.s32.totalorder %s38, 1
      %p328 = por %p326, %p327
      %p330 = scmp.ne.s32.totalorder %s313, %s329
      %p331 = scmp.eq.s32.totalorder %s38, 0
      %p332 = por %p330, %p331
      %s333 = ssub.s32 %s40, %s47
      %p334 = scmp.eq.s32.totalorder %s333, 0
      %s336 = sadd.s32 %s335, 1
      %s337 = scalar_select %p334, %s335, %s336
      %p340 = pneg %p334
      %p341 = scmp.eq.s32.totalorder %s32, 1
      %p342 = por %p340, %p341
      %p343 = scmp.ne.s32.totalorder %s335, %s338
      %p344 = scmp.eq.s32.totalorder %s32, 0
      %p345 = por %p343, %p344
      %p346 = scmp.ne.s32.totalorder %s335, %s338
      %p347 = scmp.eq.s32.totalorder %s37, 1
      %p348 = por %p346, %p347
      %p349 = scmp.ne.s32.totalorder %s338, %s339
      %p350 = scmp.eq.s32.totalorder %s37, 0
      %p351 = por %p349, %p350
      %p352 = scmp.ne.s32.totalorder %s338, %s339
      %p353 = scmp.eq.s32.totalorder %s38, 1
      %p354 = por %p352, %p353
      %p356 = scmp.ne.s32.totalorder %s339, %s355
      %p357 = scmp.eq.s32.totalorder %s38, 0
      %p358 = por %p356, %p357
      %s359 = ssub.s32 %s40, %s47
      %p360 = scmp.eq.s32.totalorder %s359, 0
      %s362 = sadd.s32 %s361, 1
      %s363 = scalar_select %p360, %s361, %s362
      %p366 = pneg %p360
      %p367 = scmp.eq.s32.totalorder %s32, 1
      %p368 = por %p366, %p367
      %p369 = scmp.ne.s32.totalorder %s361, %s364
      %p370 = scmp.eq.s32.totalorder %s32, 0
      %p371 = por %p369, %p370
      %p372 = scmp.ne.s32.totalorder %s361, %s364
      %p373 = scmp.eq.s32.totalorder %s37, 1
      %p374 = por %p372, %p373
      %p375 = scmp.ne.s32.totalorder %s364, %s365
      %p376 = scmp.eq.s32.totalorder %s37, 0
      %p377 = por %p375, %p376
      %p378 = scmp.ne.s32.totalorder %s364, %s365
      %p379 = scmp.eq.s32.totalorder %s38, 1
      %p380 = por %p378, %p379
      %p382 = scmp.ne.s32.totalorder %s365, %s381
      %p383 = scmp.eq.s32.totalorder %s38, 0
      %p384 = por %p382, %p383
      %s385 = ssub.s32 %s40, %s47
      %p386 = scmp.eq.s32.totalorder %s385, 0
      %s388 = sadd.s32 %s387, 1
      %s389 = scalar_select %p386, %s387, %s388
      %p392 = pneg %p386
      %p393 = scmp.eq.s32.totalorder %s32, 1
      %p394 = por %p392, %p393
      %p395 = scmp.ne.s32.totalorder %s387, %s390
      %p396 = scmp.eq.s32.totalorder %s32, 0
      %p397 = por %p395, %p396
      %p398 = scmp.ne.s32.totalorder %s387, %s390
      %p399 = scmp.eq.s32.totalorder %s37, 1
      %p400 = por %p398, %p399
      %p401 = scmp.ne.s32.totalorder %s390, %s391
      %p402 = scmp.eq.s32.totalorder %s37, 0
      %p403 = por %p401, %p402
      %p404 = scmp.ne.s32.totalorder %s390, %s391
      %p405 = scmp.eq.s32.totalorder %s38, 1
      %p406 = por %p404, %p405
      %p408 = scmp.ne.s32.totalorder %s391, %s407
      %p409 = scmp.eq.s32.totalorder %s38, 0
      %p410 = por %p408, %p409
      %s411 = ssub.s32 %s40, %s47
      %p412 = scmp.eq.s32.totalorder %s411, 0
      %s414 = sadd.s32 %s413, 1
      %s415 = scalar_select %p412, %s413, %s414
      %p418 = pneg %p412
      %p419 = scmp.eq.s32.totalorder %s32, 1
      %p420 = por %p418, %p419
      %p421 = scmp.ne.s32.totalorder %s413, %s416
      %p422 = scmp.eq.s32.totalorder %s32, 0
      %p423 = por %p421, %p422
      %p424 = scmp.ne.s32.totalorder %s413, %s416
      %p425 = scmp.eq.s32.totalorder %s37, 1
      %p426 = por %p424, %p425
      %p427 = scmp.ne.s32.totalorder %s416, %s417
      %p428 = scmp.eq.s32.totalorder %s37, 0
      %p429 = por %p427, %p428
      %p430 = scmp.ne.s32.totalorder %s416, %s417
      %p431 = scmp.eq.s32.totalorder %s38, 1
      %p432 = por %p430, %p431
      %p434 = scmp.ne.s32.totalorder %s417, %s433
      %p435 = scmp.eq.s32.totalorder %s38, 0
      %p436 = por %p434, %p435
      %s437 = ssub.s32 %s40, %s47
      %p438 = scmp.eq.s32.totalorder %s437, 0
      %s440 = sadd.s32 %s439, 1
      %s441 = scalar_select %p438, %s439, %s440
      %p444 = pneg %p438
      %p445 = scmp.eq.s32.totalorder %s32, 1
      %p446 = por %p444, %p445
      %p447 = scmp.ne.s32.totalorder %s439, %s442
      %p448 = scmp.eq.s32.totalorder %s32, 0
      %p449 = por %p447, %p448
      %p450 = scmp.ne.s32.totalorder %s439, %s442
      %p451 = scmp.eq.s32.totalorder %s37, 1
      %p452 = por %p450, %p451
      %p453 = scmp.ne.s32.totalorder %s442, %s443
      %p454 = scmp.eq.s32.totalorder %s37, 0
      %p455 = por %p453, %p454
      %p456 = scmp.ne.s32.totalorder %s442, %s443
      %p457 = scmp.eq.s32.totalorder %s38, 1
      %p458 = por %p456, %p457
      %p460 = scmp.ne.s32.totalorder %s443, %s459
      %p461 = scmp.eq.s32.totalorder %s38, 0
      %p462 = por %p460, %p461
      %s463 = ssub.s32 %s40, %s47
      %p464 = scmp.eq.s32.totalorder %s463, 0
      %s466 = sadd.s32 %s465, 1
      %s467 = scalar_select %p464, %s465, %s466
      %p470 = pneg %p464
      %p471 = scmp.eq.s32.totalorder %s32, 1
      %p472 = por %p470, %p471
      %p473 = scmp.ne.s32.totalorder %s465, %s468
      %p474 = scmp.eq.s32.totalorder %s32, 0
      %p475 = por %p473, %p474
      %p476 = scmp.ne.s32.totalorder %s465, %s468
      %p477 = scmp.eq.s32.totalorder %s37, 1
      %p478 = por %p476, %p477
      %p479 = scmp.ne.s32.totalorder %s468, %s469
      %p480 = scmp.eq.s32.totalorder %s37, 0
      %p481 = por %p479, %p480
      %p482 = scmp.ne.s32.totalorder %s468, %s469
      %p483 = scmp.eq.s32.totalorder %s38, 1
      %p484 = por %p482, %p483
      %p486 = scmp.ne.s32.totalorder %s469, %s485
      %p487 = scmp.eq.s32.totalorder %s38, 0
      %p488 = por %p486, %p487
      %s489 = ssub.s32 %s40, %s47
      %p490 = scmp.eq.s32.totalorder %s489, 0
      %s492 = sadd.s32 %s491, 1
      %s493 = scalar_select %p490, %s491, %s492
      %p496 = pneg %p490
      %p497 = scmp.eq.s32.totalorder %s32, 1
      %p498 = por %p496, %p497
      %p499 = scmp.ne.s32.totalorder %s491, %s494
      %p500 = scmp.eq.s32.totalorder %s32, 0
      %p501 = por %p499, %p500
      %p502 = scmp.ne.s32.totalorder %s491, %s494
      %p503 = scmp.eq.s32.totalorder %s37, 1
      %p504 = por %p502, %p503
      %p505 = scmp.ne.s32.totalorder %s494, %s495
      %p506 = scmp.eq.s32.totalorder %s37, 0
      %p507 = por %p505, %p506
      %p508 = scmp.ne.s32.totalorder %s494, %s495
      %p509 = scmp.eq.s32.totalorder %s38, 1
      %p510 = por %p508, %p509
      %p512 = scmp.ne.s32.totalorder %s495, %s511
      %p513 = scmp.eq.s32.totalorder %s38, 0
      %p514 = por %p512, %p513
      %s515 = ssub.s32 %s40, %s47
      %p516 = scmp.eq.s32.totalorder %s515, 0
      %s518 = sadd.s32 %s517, 1
      %s519 = scalar_select %p516, %s517, %s518
      %p522 = pneg %p516
      %p523 = scmp.eq.s32.totalorder %s32, 1
      %p524 = por %p522, %p523
      %p525 = scmp.ne.s32.totalorder %s517, %s520
      %p526 = scmp.eq.s32.totalorder %s32, 0
      %p527 = por %p525, %p526
      %p528 = scmp.ne.s32.totalorder %s517, %s520
      %p529 = scmp.eq.s32.totalorder %s37, 1
      %p530 = por %p528, %p529
      %p531 = scmp.ne.s32.totalorder %s520, %s521
      %p532 = scmp.eq.s32.totalorder %s37, 0
      %p533 = por %p531, %p532
      %p534 = scmp.ne.s32.totalorder %s520, %s521
      %p535 = scmp.eq.s32.totalorder %s38, 1
      %p536 = por %p534, %p535
      %p538 = scmp.ne.s32.totalorder %s521, %s537
      %p539 = scmp.eq.s32.totalorder %s38, 0
      %p540 = por %p538, %p539
      %s541 = ssub.s32 %s40, %s47
      %p542 = scmp.eq.s32.totalorder %s541, 0
      %s544 = sadd.s32 %s543, 1
      %s545 = scalar_select %p542, %s543, %s544
      %p548 = pneg %p542
      %p549 = scmp.eq.s32.totalorder %s32, 1
      %p550 = por %p548, %p549
      %p551 = scmp.ne.s32.totalorder %s543, %s546
      %p552 = scmp.eq.s32.totalorder %s32, 0
      %p553 = por %p551, %p552
      %p554 = scmp.ne.s32.totalorder %s543, %s546
      %p555 = scmp.eq.s32.totalorder %s37, 1
      %p556 = por %p554, %p555
      %p557 = scmp.ne.s32.totalorder %s546, %s547
      %p558 = scmp.eq.s32.totalorder %s37, 0
      %p559 = por %p557, %p558
      %p560 = scmp.ne.s32.totalorder %s546, %s547
      %p561 = scmp.eq.s32.totalorder %s38, 1
      %p562 = por %p560, %p561
      %p564 = scmp.ne.s32.totalorder %s547, %s563
      %p565 = scmp.eq.s32.totalorder %s38, 0
      %p566 = por %p564, %p565
      %s567 = ssub.s32 %s40, %s47
      %p568 = scmp.eq.s32.totalorder %s567, 0
      %s570 = sadd.s32 %s569, 1
      %s571 = scalar_select %p568, %s569, %s570
      %p574 = pneg %p568
      %p575 = scmp.eq.s32.totalorder %s32, 1
      %p576 = por %p574, %p575
      %p577 = scmp.ne.s32.totalorder %s569, %s572
      %p578 = scmp.eq.s32.totalorder %s32, 0
      %p579 = por %p577, %p578
      %p580 = scmp.ne.s32.totalorder %s569, %s572
      %p581 = scmp.eq.s32.totalorder %s37, 1
      %p582 = por %p580, %p581
      %p583 = scmp.ne.s32.totalorder %s572, %s573
      %p584 = scmp.eq.s32.totalorder %s37, 0
      %p585 = por %p583, %p584
      %p586 = scmp.ne.s32.totalorder %s572, %s573
      %p587 = scmp.eq.s32.totalorder %s38, 1
      %p588 = por %p586, %p587
      %p590 = scmp.ne.s32.totalorder %s573, %s589
      %p591 = scmp.eq.s32.totalorder %s38, 0
      %p592 = por %p590, %p591
      %s593 = ssub.s32 %s40, %s47
      %p594 = scmp.eq.s32.totalorder %s593, 0
      %s596 = sadd.s32 %s595, 1
      %s597 = scalar_select %p594, %s595, %s596
      %p600 = pneg %p594
      %p601 = scmp.eq.s32.totalorder %s32, 1
      %p602 = por %p600, %p601
      %p603 = scmp.ne.s32.totalorder %s595, %s598
      %p604 = scmp.eq.s32.totalorder %s32, 0
      %p605 = por %p603, %p604
      %p606 = scmp.ne.s32.totalorder %s595, %s598
      %p607 = scmp.eq.s32.totalorder %s37, 1
      %p608 = por %p606, %p607
      %p609 = scmp.ne.s32.totalorder %s598, %s599
      %p610 = scmp.eq.s32.totalorder %s37, 0
      %p611 = por %p609, %p610
      %p612 = scmp.ne.s32.totalorder %s598, %s599
      %p613 = scmp.eq.s32.totalorder %s38, 1
      %p614 = por %p612, %p613
      %p616 = scmp.ne.s32.totalorder %s599, %s615
      %p617 = scmp.eq.s32.totalorder %s38, 0
      %p618 = por %p616, %p617
      %s619 = ssub.s32 %s39, %s51
      %p620 = scmp.eq.s32.totalorder %s619, 0
      %s622 = sadd.s32 %s621, 1
      %s623 = scalar_select %p620, %s621, %s622
      %p626 = pneg %p620
      %p627 = scmp.eq.s32.totalorder %s32, 1
      %p628 = por %p626, %p627
      %p629 = scmp.ne.s32.totalorder %s621, %s624
      %p630 = scmp.eq.s32.totalorder %s32, 0
      %p631 = por %p629, %p630
      %p632 = scmp.ne.s32.totalorder %s621, %s624
      %p633 = scmp.eq.s32.totalorder %s37, 1
      %p634 = por %p632, %p633
      %p635 = scmp.ne.s32.totalorder %s624, %s625
      %p636 = scmp.eq.s32.totalorder %s37, 0
      %p637 = por %p635, %p636
      %p638 = scmp.ne.s32.totalorder %s624, %s625
      %p639 = scmp.eq.s32.totalorder %s38, 1
      %p640 = por %p638, %p639
      %p642 = scmp.ne.s32.totalorder %s625, %s641
      %p643 = scmp.eq.s32.totalorder %s38, 0
      %p644 = por %p642, %p643
      %p645 = scmp.le.s32.totalorder 1, %s32
      %p646 = scmp.lt.s32.totalorder %s32, 3
      %p647 = pnand %p645, %p646
      %p648 = pneg %p647
      // Predicated region
      $region9: #{tpu_custom_call.1} parent=5 // pred_check
        _
      $region10: #{tpu_custom_call.1} parent=5 // pred_check_branch
        %650 = sbr.rel (%p647) target = $region12
      $region11: #{tpu_custom_call.1} parent=5 // pred_region
        %s651 = ssub.s32 %s32, 1
        // Predicated region
        $region13: #{tpu_custom_call.1} parent=11 // pred_check
          %p652 = pneg %p70
        $region14: #{tpu_custom_call.1} parent=11 // pred_check_branch
          %654 = sbr.rel (%p652) target = $region16
        $region15: #{tpu_custom_call.1} parent=11 // pred_region
          %s655 = smul.u32 2, %s41
          %s657 = ssub.s32 256, 256
          %658 = vsyncadd [#allocation4], %s657
          %s659 = smul.addr %s655, 128
          %s660 = scalar_lea.hbm %s0, %s659
          %s661 = sshll.u32 [#allocation3], 4
          %s662 = int_to_ptr.vmem [resolvable:$true] %s661
          %667 = dma.hbm_to_vmem [thread:$0]  %s660, 256, %s662, [#allocation4], 128, 128, 8
        $region16: #{tpu_custom_call.1} parent=11 // pred_fallthru
          _
        // Predicated region
        $region17: #{tpu_custom_call.1} parent=11 // pred_check
          %p668 = pneg %p96
        $region18: #{tpu_custom_call.1} parent=11 // pred_check_branch
          %670 = sbr.rel (%p668) target = $region20
        $region19: #{tpu_custom_call.1} parent=11 // pred_region
          %s671 = smul.u32 2, %s41
          %s673 = ssub.s32 256, 256
          %674 = vsyncadd [#allocation7], %s673
          %s675 = smul.addr %s671, 128
          %s676 = scalar_lea.hbm %s1, %s675
          %s677 = sshll.u32 [#allocation6], 4
          %s678 = int_to_ptr.vmem [resolvable:$true] %s677
          %683 = dma.hbm_to_vmem [thread:$0]  %s676, 256, %s678, [#allocation7], 128, 128, 8
        $region20: #{tpu_custom_call.1} parent=11 // pred_fallthru
          _
        // Predicated region
        $region21: #{tpu_custom_call.1} parent=11 // pred_check
          %p684 = pneg %p117
        $region22: #{tpu_custom_call.1} parent=11 // pred_check_branch
          %686 = sbr.rel (%p684) target = $region24
        $region23: #{tpu_custom_call.1} parent=11 // pred_region
          %s688 = ssub.s32 128, 128
          %689 = vsyncadd [#allocation7], %s688
          %s691 = sshll.u32 [#allocation8], 4
          %s692 = int_to_ptr.vmem [resolvable:$true] %s691
          %694 = dma.hbm_to_vmem [thread:$0]  %s2, 128, %s692, [#allocation7]
        $region24: #{tpu_custom_call.1} parent=11 // pred_fallthru
          _
        // Predicated region
        $region25: #{tpu_custom_call.1} parent=11 // pred_check
          %p695 = pneg %p143
        $region26: #{tpu_custom_call.1} parent=11 // pred_check_branch
          %697 = sbr.rel (%p695) target = $region28
        $region27: #{tpu_custom_call.1} parent=11 // pred_region
          %s698 = smul.u32 2, %s41
          %s700 = ssub.s32 32, 32
          %701 = vsyncadd [#allocation10], %s700
          %s702 = smul.addr %s698, 16
          %s703 = scalar_lea.hbm %s3, %s702
          %s704 = sshll.u32 [#allocation9], 4
          %s705 = int_to_ptr.vmem [resolvable:$true] %s704
          %710 = dma.hbm_to_vmem [thread:$0]  %s703, 32, %s705, [#allocation10], 16, 16, 1
        $region28: #{tpu_custom_call.1} parent=11 // pred_fallthru
          _
      $region12: #{tpu_custom_call.1} parent=5 // pred_fallthru
        _
      %p711 = scmp.lt.s32.totalorder %s32, 2
      // Predicated region
      $region29: #{tpu_custom_call.1} parent=5 // pred_check
        %p712 = pneg %p711
      $region30: #{tpu_custom_call.1} parent=5 // pred_check_branch
        %714 = sbr.rel (%p712) target = $region32
      $region31: #{tpu_custom_call.1} parent=5 // pred_region
        // Predicated region
        $region33: #{tpu_custom_call.1} parent=31 // pred_check
          %p715 = pneg %p163
        $region34: #{tpu_custom_call.1} parent=31 // pred_check_branch
          %717 = sbr.rel (%p715) target = $region36
        $region35: #{tpu_custom_call.1} parent=31 // pred_region
          %p718 = scmp.lt.s32.totalorder %s40, 1
          %s719 = scalar_select %p718, %s40, 1
          %s720 = smul.addr %s719, 4
          %s721 = smul.addr %s720, 4
          %s722 = scalar_lea.vmem %s4, %s721
        $region36: #{tpu_custom_call.1} parent=31 // pred_fallthru
          _
        // Predicated region
        $region37: #{tpu_custom_call.1} parent=31 // pred_check
          %p723 = pneg %p189
        $region38: #{tpu_custom_call.1} parent=31 // pred_check_branch
          %725 = sbr.rel (%p723) target = $region40
        $region39: #{tpu_custom_call.1} parent=31 // pred_region
          %s726 = sand.u32 %s32, 1
          %s727 = scalar_lea.sflag [#allocation4], %s726
          %s728 = sand.u32 %s179, 1
          %s729 = scalar_lea.vmem [#allocation11], %s728
          %s731 = ssub.s32 16, 16
          %732 = vsyncadd %s727, %s731
          %s733 = smul.addr %s40, 16
          %s734 = scalar_lea.hbm %s5, %s733
          %s736 = sshll.u32 %s729, 4
          %s737 = int_to_ptr.vmem [resolvable:$true] %s736
          %739 = dma.hbm_to_vmem [thread:$0]  %s734, 16, %s737, %s727
        $region40: #{tpu_custom_call.1} parent=31 // pred_fallthru
          _
        // Predicated region
        $region41: #{tpu_custom_call.1} parent=31 // pred_check
          %p740 = pneg %p215
        $region42: #{tpu_custom_call.1} parent=31 // pred_check_branch
          %742 = sbr.rel (%p740) target = $region44
        $region43: #{tpu_custom_call.1} parent=31 // pred_region
          %p743 = scmp.lt.s32.totalorder %s40, 1
          %s744 = scalar_select %p743, %s40, 1
          %s745 = smul.addr %s744, 4
          %s746 = smul.addr %s745, 4
          %s747 = scalar_lea.vmem %s6, %s746
        $region44: #{tpu_custom_call.1} parent=31 // pred_fallthru
          _
        // Predicated region
        $region45: #{tpu_custom_call.1} parent=31 // pred_check
          %p748 = pneg %p241
        $region46: #{tpu_custom_call.1} parent=31 // pred_check_branch
          %750 = sbr.rel (%p748) target = $region48
        $region47: #{tpu_custom_call.1} parent=31 // pred_region
          %s751 = sand.u32 %s32, 1
          %s752 = scalar_lea.sflag [#allocation4], %s751
          %s753 = sand.u32 %s231, 1
          %s754 = scalar_lea.vmem [#allocation12], %s753
          %s756 = ssub.s32 16, 16
          %757 = vsyncadd %s752, %s756
          %s758 = smul.addr %s40, 16
          %s759 = scalar_lea.hbm %s7, %s758
          %s761 = sshll.u32 %s754, 4
          %s762 = int_to_ptr.vmem [resolvable:$true] %s761
          %764 = dma.hbm_to_vmem [thread:$0]  %s759, 16, %s762, %s752
        $region48: #{tpu_custom_call.1} parent=31 // pred_fallthru
          _
        // Predicated region
        $region49: #{tpu_custom_call.1} parent=31 // pred_check
          %p765 = pneg %p267
        $region50: #{tpu_custom_call.1} parent=31 // pred_check_branch
          %767 = sbr.rel (%p765) target = $region52
        $region51: #{tpu_custom_call.1} parent=31 // pred_region
          %p768 = scmp.lt.s32.totalorder %s40, 1
          %s769 = scalar_select %p768, %s40, 1
          %s770 = smul.addr %s769, 4
          %s771 = smul.addr %s770, 4
          %s772 = scalar_lea.vmem %s8, %s771
        $region52: #{tpu_custom_call.1} parent=31 // pred_fallthru
          _
        // Predicated region
        $region53: #{tpu_custom_call.1} parent=31 // pred_check
          %p773 = pneg %p293
        $region54: #{tpu_custom_call.1} parent=31 // pred_check_branch
          %775 = sbr.rel (%p773) target = $region56
        $region55: #{tpu_custom_call.1} parent=31 // pred_region
          %s776 = sand.u32 %s32, 1
          %s777 = scalar_lea.sflag [#allocation4], %s776
          %s778 = sand.u32 %s283, 1
          %s779 = scalar_lea.vmem [#allocation13], %s778
          %s781 = ssub.s32 16, 16
          %782 = vsyncadd %s777, %s781
          %s783 = smul.addr %s40, 16
          %s784 = scalar_lea.hbm %s9, %s783
          %s786 = sshll.u32 %s779, 4
          %s787 = int_to_ptr.vmem [resolvable:$true] %s786
          %789 = dma.hbm_to_vmem [thread:$0]  %s784, 16, %s787, %s777
        $region56: #{tpu_custom_call.1} parent=31 // pred_fallthru
          _
        // Predicated region
        $region57: #{tpu_custom_call.1} parent=31 // pred_check
          %p790 = pneg %p319
        $region58: #{tpu_custom_call.1} parent=31 // pred_check_branch
          %792 = sbr.rel (%p790) target = $region60
        $region59: #{tpu_custom_call.1} parent=31 // pred_region
          %s793 = sand.u32 %s32, 1
          %s794 = scalar_lea.sflag [#allocation4], %s793
          %s795 = sand.u32 %s309, 1
          %s796 = smul.addr %s795, 16
          %s797 = scalar_lea.vmem [#allocation14], %s796
          %s799 = ssub.s32 256, 256
          %800 = vsyncadd %s794, %s799
          %s801 = smul.addr %s40, 4
          %s802 = smul.addr %s801, 64
          %s803 = scalar_lea.hbm %s10, %s802
          %s804 = sshll.u32 %s797, 4
          %s805 = int_to_ptr.vmem [resolvable:$true] %s804
          %810 = dma.hbm_to_vmem [thread:$0]  %s803, 256, %s805, %s794, 64, 64, 4
        $region60: #{tpu_custom_call.1} parent=31 // pred_fallthru
          _
        // Predicated region
        $region61: #{tpu_custom_call.1} parent=31 // pred_check
          %p811 = pneg %p345
        $region62: #{tpu_custom_call.1} parent=31 // pred_check_branch
          %813 = sbr.rel (%p811) target = $region64
        $region63: #{tpu_custom_call.1} parent=31 // pred_region
          %s814 = sand.u32 %s32, 1
          %s815 = scalar_lea.sflag [#allocation4], %s814
          %s816 = sand.u32 %s335, 1
          %s817 = scalar_lea.vmem [#allocation15], %s816
          %s819 = ssub.s32 16, 16
          %820 = vsyncadd %s815, %s819
          %s821 = smul.addr %s40, 16
          %s822 = scalar_lea.hbm %s11, %s821
          %s824 = sshll.u32 %s817, 4
          %s825 = int_to_ptr.vmem [resolvable:$true] %s824
          %827 = dma.hbm_to_vmem [thread:$0]  %s822, 16, %s825, %s815
        $region64: #{tpu_custom_call.1} parent=31 // pred_fallthru
          _
        // Predicated region
        $region65: #{tpu_custom_call.1} parent=31 // pred_check
          %p828 = pneg %p371
        $region66: #{tpu_custom_call.1} parent=31 // pred_check_branch
          %830 = sbr.rel (%p828) target = $region68
        $region67: #{tpu_custom_call.1} parent=31 // pred_region
          %s831 = sand.u32 %s32, 1
          %s832 = scalar_lea.sflag [#allocation4], %s831
          %s833 = sand.u32 %s361, 1
          %s834 = scalar_lea.vmem [#allocation16], %s833
          %s836 = ssub.s32 16, 16
          %837 = vsyncadd %s832, %s836
          %s838 = smul.addr %s40, 16
          %s839 = scalar_lea.hbm %s12, %s838
          %s841 = sshll.u32 %s834, 4
          %s842 = int_to_ptr.vmem [resolvable:$true] %s841
          %844 = dma.hbm_to_vmem [thread:$0]  %s839, 16, %s842, %s832
        $region68: #{tpu_custom_call.1} parent=31 // pred_fallthru
          _
        // Predicated region
        $region69: #{tpu_custom_call.1} parent=31 // pred_check
          %p845 = pneg %p397
        $region70: #{tpu_custom_call.1} parent=31 // pred_check_branch
          %847 = sbr.rel (%p845) target = $region72
        $region71: #{tpu_custom_call.1} parent=31 // pred_region
          %s848 = sand.u32 %s32, 1
          %s849 = scalar_lea.sflag [#allocation4], %s848
          %s850 = sand.u32 %s387, 1
          %s851 = scalar_lea.vmem [#allocation17], %s850
          %s853 = ssub.s32 16, 16
          %854 = vsyncadd %s849, %s853
          %s855 = smul.addr %s40, 16
          %s856 = scalar_lea.hbm %s13, %s855
          %s858 = sshll.u32 %s851, 4
          %s859 = int_to_ptr.vmem [resolvable:$true] %s858
          %861 = dma.hbm_to_vmem [thread:$0]  %s856, 16, %s859, %s849
        $region72: #{tpu_custom_call.1} parent=31 // pred_fallthru
          _
        // Predicated region
        $region73: #{tpu_custom_call.1} parent=31 // pred_check
          %p862 = pneg %p423
        $region74: #{tpu_custom_call.1} parent=31 // pred_check_branch
          %864 = sbr.rel (%p862) target = $region76
        $region75: #{tpu_custom_call.1} parent=31 // pred_region
          %s865 = sand.u32 %s32, 1
          %s866 = scalar_lea.sflag [#allocation4], %s865
          %s867 = sand.u32 %s413, 1
          %s868 = scalar_lea.vmem [#allocation18], %s867
          %s870 = ssub.s32 16, 16
          %871 = vsyncadd %s866, %s870
          %s872 = smul.addr %s40, 16
          %s873 = scalar_lea.hbm %s14, %s872
          %s875 = sshll.u32 %s868, 4
          %s876 = int_to_ptr.vmem [resolvable:$true] %s875
          %878 = dma.hbm_to_vmem [thread:$0]  %s873, 16, %s876, %s866
        $region76: #{tpu_custom_call.1} parent=31 // pred_fallthru
          _
        // Predicated region
        $region77: #{tpu_custom_call.1} parent=31 // pred_check
          %p879 = pneg %p449
        $region78: #{tpu_custom_call.1} parent=31 // pred_check_branch
          %881 = sbr.rel (%p879) target = $region80
        $region79: #{tpu_custom_call.1} parent=31 // pred_region
          %s882 = sand.u32 %s32, 1
          %s883 = scalar_lea.sflag [#allocation4], %s882
          %s884 = sand.u32 %s439, 1
          %s885 = scalar_lea.vmem [#allocation19], %s884
          %s887 = ssub.s32 16, 16
          %888 = vsyncadd %s883, %s887
          %s889 = smul.addr %s40, 16
          %s890 = scalar_lea.hbm %s15, %s889
          %s892 = sshll.u32 %s885, 4
          %s893 = int_to_ptr.vmem [resolvable:$true] %s892
          %895 = dma.hbm_to_vmem [thread:$0]  %s890, 16, %s893, %s883
        $region80: #{tpu_custom_call.1} parent=31 // pred_fallthru
          _
        // Predicated region
        $region81: #{tpu_custom_call.1} parent=31 // pred_check
          %p896 = pneg %p475
        $region82: #{tpu_custom_call.1} parent=31 // pred_check_branch
          %898 = sbr.rel (%p896) target = $region84
        $region83: #{tpu_custom_call.1} parent=31 // pred_region
          %s899 = sand.u32 %s32, 1
          %s900 = scalar_lea.sflag [#allocation4], %s899
          %s901 = sand.u32 %s465, 1
          %s902 = scalar_lea.vmem [#allocation20], %s901
          %s904 = ssub.s32 16, 16
          %905 = vsyncadd %s900, %s904
          %s906 = smul.addr %s40, 16
          %s907 = scalar_lea.hbm %s16, %s906
          %s909 = sshll.u32 %s902, 4
          %s910 = int_to_ptr.vmem [resolvable:$true] %s909
          %912 = dma.hbm_to_vmem [thread:$0]  %s907, 16, %s910, %s900
        $region84: #{tpu_custom_call.1} parent=31 // pred_fallthru
          _
        // Predicated region
        $region85: #{tpu_custom_call.1} parent=31 // pred_check
          %p913 = pneg %p501
        $region86: #{tpu_custom_call.1} parent=31 // pred_check_branch
          %915 = sbr.rel (%p913) target = $region88
        $region87: #{tpu_custom_call.1} parent=31 // pred_region
          %s916 = sand.u32 %s32, 1
          %s917 = scalar_lea.sflag [#allocation4], %s916
          %s918 = sand.u32 %s491, 1
          %s919 = scalar_lea.vmem [#allocation21], %s918
          %s921 = ssub.s32 16, 16
          %922 = vsyncadd %s917, %s921
          %s923 = smul.addr %s40, 16
          %s924 = scalar_lea.hbm %s17, %s923
          %s926 = sshll.u32 %s919, 4
          %s927 = int_to_ptr.vmem [resolvable:$true] %s926
          %929 = dma.hbm_to_vmem [thread:$0]  %s924, 16, %s927, %s917
        $region88: #{tpu_custom_call.1} parent=31 // pred_fallthru
          _
        // Predicated region
        $region89: #{tpu_custom_call.1} parent=31 // pred_check
          %p930 = pneg %p527
        $region90: #{tpu_custom_call.1} parent=31 // pred_check_branch
          %932 = sbr.rel (%p930) target = $region92
        $region91: #{tpu_custom_call.1} parent=31 // pred_region
          %p933 = scmp.lt.s32.totalorder %s40, 1
          %s934 = scalar_select %p933, %s40, 1
          %s935 = smul.addr %s934, 4
          %s936 = smul.addr %s935, 4
          %s937 = scalar_lea.vmem %s18, %s936
        $region92: #{tpu_custom_call.1} parent=31 // pred_fallthru
          _
        // Predicated region
        $region93: #{tpu_custom_call.1} parent=31 // pred_check
          %p938 = pneg %p553
        $region94: #{tpu_custom_call.1} parent=31 // pred_check_branch
          %940 = sbr.rel (%p938) target = $region96
        $region95: #{tpu_custom_call.1} parent=31 // pred_region
          %p941 = scmp.lt.s32.totalorder %s40, 1
          %s942 = scalar_select %p941, %s40, 1
          %s943 = scalar_lea.vmem %s19, %s942
        $region96: #{tpu_custom_call.1} parent=31 // pred_fallthru
          _
        // Predicated region
        $region97: #{tpu_custom_call.1} parent=31 // pred_check
          %p944 = pneg %p579
        $region98: #{tpu_custom_call.1} parent=31 // pred_check_branch
          %946 = sbr.rel (%p944) target = $region100
        $region99: #{tpu_custom_call.1} parent=31 // pred_region
          %p947 = scmp.lt.s32.totalorder %s40, 1
          %s948 = scalar_select %p947, %s40, 1
          %s949 = smul.addr %s948, 8
          %s950 = smul.addr %s949, 4
          %s951 = scalar_lea.vmem %s20, %s950
        $region100: #{tpu_custom_call.1} parent=31 // pred_fallthru
          _
        // Predicated region
        $region101: #{tpu_custom_call.1} parent=31 // pred_check
          %p952 = pneg %p605
        $region102: #{tpu_custom_call.1} parent=31 // pred_check_branch
          %954 = sbr.rel (%p952) target = $region104
        $region103: #{tpu_custom_call.1} parent=31 // pred_region
          %p955 = scmp.lt.s32.totalorder %s40, 1
          %s956 = scalar_select %p955, %s40, 1
          %s957 = scalar_lea.vmem %s21, %s956
        $region104: #{tpu_custom_call.1} parent=31 // pred_fallthru
          _
      $region32: #{tpu_custom_call.1} parent=5 // pred_fallthru
        _
      %p958 = scmp.le.s32.totalorder 1, %s32
      %p959 = scmp.lt.s32.totalorder %s32, 3
      %p960 = pnand %p958, %p959
      %p961 = pneg %p960
      // Predicated region
      $region105: #{tpu_custom_call.1} parent=5 // pred_check
        _
      $region106: #{tpu_custom_call.1} parent=5 // pred_check_branch
        %963 = sbr.rel (%p960) target = $region108
      $region107: #{tpu_custom_call.1} parent=5 // pred_region
        %s964 = ssub.s32 %s32, 1
        // Predicated region
        $region109: #{tpu_custom_call.1} parent=107 // pred_check
          %p965 = pneg %p70
        $region110: #{tpu_custom_call.1} parent=107 // pred_check_branch
          %967 = sbr.rel (%p965) target = $region112
        $region111: #{tpu_custom_call.1} parent=107 // pred_region
          %968 = dma.done [#allocation4], 256
        $region112: #{tpu_custom_call.1} parent=107 // pred_fallthru
          _
        // Predicated region
        $region113: #{tpu_custom_call.1} parent=107 // pred_check
          %p969 = pneg %p96
        $region114: #{tpu_custom_call.1} parent=107 // pred_check_branch
          %971 = sbr.rel (%p969) target = $region116
        $region115: #{tpu_custom_call.1} parent=107 // pred_region
          %972 = dma.done [#allocation7], 256
        $region116: #{tpu_custom_call.1} parent=107 // pred_fallthru
          _
        // Predicated region
        $region117: #{tpu_custom_call.1} parent=107 // pred_check
          %p973 = pneg %p117
        $region118: #{tpu_custom_call.1} parent=107 // pred_check_branch
          %975 = sbr.rel (%p973) target = $region120
        $region119: #{tpu_custom_call.1} parent=107 // pred_region
          %976 = dma.done [#allocation7], 128
        $region120: #{tpu_custom_call.1} parent=107 // pred_fallthru
          _
        // Predicated region
        $region121: #{tpu_custom_call.1} parent=107 // pred_check
          %p977 = pneg %p143
        $region122: #{tpu_custom_call.1} parent=107 // pred_check_branch
          %979 = sbr.rel (%p977) target = $region124
        $region123: #{tpu_custom_call.1} parent=107 // pred_region
          %980 = dma.done [#allocation10], 32
        $region124: #{tpu_custom_call.1} parent=107 // pred_fallthru
          _
        %s981 = sand.u32 %s37, 1
        %s982 = scalar_lea.sflag [#allocation4], %s981
        %s983 = sand.u32 %s182, 1
        %s984 = scalar_lea.vmem [#allocation11], %s983
        // Predicated region
        $region125: #{tpu_custom_call.1} parent=107 // pred_check
          %p985 = pneg %p195
        $region126: #{tpu_custom_call.1} parent=107 // pred_check_branch
          %987 = sbr.rel (%p985) target = $region128
        $region127: #{tpu_custom_call.1} parent=107 // pred_region
          %988 = dma.done %s982, 16
        $region128: #{tpu_custom_call.1} parent=107 // pred_fallthru
          _
        %s989 = sand.u32 %s37, 1
        %s990 = scalar_lea.sflag [#allocation4], %s989
        %s991 = sand.u32 %s234, 1
        %s992 = scalar_lea.vmem [#allocation12], %s991
        // Predicated region
        $region129: #{tpu_custom_call.1} parent=107 // pred_check
          %p993 = pneg %p247
        $region130: #{tpu_custom_call.1} parent=107 // pred_check_branch
          %995 = sbr.rel (%p993) target = $region132
        $region131: #{tpu_custom_call.1} parent=107 // pred_region
          %996 = dma.done %s990, 16
        $region132: #{tpu_custom_call.1} parent=107 // pred_fallthru
          _
        %s997 = sand.u32 %s37, 1
        %s998 = scalar_lea.sflag [#allocation4], %s997
        %s999 = sand.u32 %s286, 1
        %s1000 = scalar_lea.vmem [#allocation13], %s999
        // Predicated region
        $region133: #{tpu_custom_call.1} parent=107 // pred_check
          %p1001 = pneg %p299
        $region134: #{tpu_custom_call.1} parent=107 // pred_check_branch
          %1003 = sbr.rel (%p1001) target = $region136
        $region135: #{tpu_custom_call.1} parent=107 // pred_region
          %1004 = dma.done %s998, 16
        $region136: #{tpu_custom_call.1} parent=107 // pred_fallthru
          _
        %s1005 = sand.u32 %s37, 1
        %s1006 = scalar_lea.sflag [#allocation4], %s1005
        %s1007 = sand.u32 %s312, 1
        %s1008 = smul.addr %s1007, 16
        %s1009 = scalar_lea.vmem [#allocation14], %s1008
        // Predicated region
        $region137: #{tpu_custom_call.1} parent=107 // pred_check
          %p1010 = pneg %p325
        $region138: #{tpu_custom_call.1} parent=107 // pred_check_branch
          %1012 = sbr.rel (%p1010) target = $region140
        $region139: #{tpu_custom_call.1} parent=107 // pred_region
          %1013 = dma.done %s1006, 256
        $region140: #{tpu_custom_call.1} parent=107 // pred_fallthru
          _
        %s1014 = sand.u32 %s37, 1
        %s1015 = scalar_lea.sflag [#allocation4], %s1014
        %s1016 = sand.u32 %s338, 1
        %s1017 = scalar_lea.vmem [#allocation15], %s1016
        // Predicated region
        $region141: #{tpu_custom_call.1} parent=107 // pred_check
          %p1018 = pneg %p351
        $region142: #{tpu_custom_call.1} parent=107 // pred_check_branch
          %1020 = sbr.rel (%p1018) target = $region144
        $region143: #{tpu_custom_call.1} parent=107 // pred_region
          %1021 = dma.done %s1015, 16
        $region144: #{tpu_custom_call.1} parent=107 // pred_fallthru
          _
        %s1022 = sand.u32 %s37, 1
        %s1023 = scalar_lea.sflag [#allocation4], %s1022
        %s1024 = sand.u32 %s364, 1
        %s1025 = scalar_lea.vmem [#allocation16], %s1024
        // Predicated region
        $region145: #{tpu_custom_call.1} parent=107 // pred_check
          %p1026 = pneg %p377
        $region146: #{tpu_custom_call.1} parent=107 // pred_check_branch
          %1028 = sbr.rel (%p1026) target = $region148
        $region147: #{tpu_custom_call.1} parent=107 // pred_region
          %1029 = dma.done %s1023, 16
        $region148: #{tpu_custom_call.1} parent=107 // pred_fallthru
          _
        %s1030 = sand.u32 %s37, 1
        %s1031 = scalar_lea.sflag [#allocation4], %s1030
        %s1032 = sand.u32 %s390, 1
        %s1033 = scalar_lea.vmem [#allocation17], %s1032
        // Predicated region
        $region149: #{tpu_custom_call.1} parent=107 // pred_check
          %p1034 = pneg %p403
        $region150: #{tpu_custom_call.1} parent=107 // pred_check_branch
          %1036 = sbr.rel (%p1034) target = $region152
        $region151: #{tpu_custom_call.1} parent=107 // pred_region
          %1037 = dma.done %s1031, 16
        $region152: #{tpu_custom_call.1} parent=107 // pred_fallthru
          _
        %s1038 = sand.u32 %s37, 1
        %s1039 = scalar_lea.sflag [#allocation4], %s1038
        %s1040 = sand.u32 %s416, 1
        %s1041 = scalar_lea.vmem [#allocation18], %s1040
        // Predicated region
        $region153: #{tpu_custom_call.1} parent=107 // pred_check
          %p1042 = pneg %p429
        $region154: #{tpu_custom_call.1} parent=107 // pred_check_branch
          %1044 = sbr.rel (%p1042) target = $region156
        $region155: #{tpu_custom_call.1} parent=107 // pred_region
          %1045 = dma.done %s1039, 16
        $region156: #{tpu_custom_call.1} parent=107 // pred_fallthru
          _
        %s1046 = sand.u32 %s37, 1
        %s1047 = scalar_lea.sflag [#allocation4], %s1046
        %s1048 = sand.u32 %s442, 1
        %s1049 = scalar_lea.vmem [#allocation19], %s1048
        // Predicated region
        $region157: #{tpu_custom_call.1} parent=107 // pred_check
          %p1050 = pneg %p455
        $region158: #{tpu_custom_call.1} parent=107 // pred_check_branch
          %1052 = sbr.rel (%p1050) target = $region160
        $region159: #{tpu_custom_call.1} parent=107 // pred_region
          %1053 = dma.done %s1047, 16
        $region160: #{tpu_custom_call.1} parent=107 // pred_fallthru
          _
        %s1054 = sand.u32 %s37, 1
        %s1055 = scalar_lea.sflag [#allocation4], %s1054
        %s1056 = sand.u32 %s468, 1
        %s1057 = scalar_lea.vmem [#allocation20], %s1056
        // Predicated region
        $region161: #{tpu_custom_call.1} parent=107 // pred_check
          %p1058 = pneg %p481
        $region162: #{tpu_custom_call.1} parent=107 // pred_check_branch
          %1060 = sbr.rel (%p1058) target = $region164
        $region163: #{tpu_custom_call.1} parent=107 // pred_region
          %1061 = dma.done %s1055, 16
        $region164: #{tpu_custom_call.1} parent=107 // pred_fallthru
          _
        %s1062 = sand.u32 %s37, 1
        %s1063 = scalar_lea.sflag [#allocation4], %s1062
        %s1064 = sand.u32 %s494, 1
        %s1065 = scalar_lea.vmem [#allocation21], %s1064
        // Predicated region
        $region165: #{tpu_custom_call.1} parent=107 // pred_check
          %p1066 = pneg %p507
        $region166: #{tpu_custom_call.1} parent=107 // pred_check_branch
          %1068 = sbr.rel (%p1066) target = $region168
        $region167: #{tpu_custom_call.1} parent=107 // pred_region
          %1069 = dma.done %s1063, 16
        $region168: #{tpu_custom_call.1} parent=107 // pred_fallthru
          _
        %p1070 = pneg %p70
        %p1071 = pneg %p67
        %p1072 = pneg %p96
        %p1073 = pneg %p93
        %p1074 = pneg %p117
        %p1075 = pneg %p114
        %p1076 = pneg %p143
        %p1077 = pneg %p140
        %p1078 = scmp.lt.s32.totalorder %s42, 1
        %s1079 = scalar_select %p1078, %s42, 1
        %s1080 = smul.addr %s1079, 4
        %s1081 = smul.addr %s1080, 4
        %s1082 = scalar_lea.vmem %s4, %s1081
        %p1083 = pneg %p169
        %p1084 = pneg %p166
        %s1085 = sand.u32 %s37, 1
        %s1086 = scalar_lea.sflag [#allocation4], %s1085
        %s1087 = sand.u32 %s182, 1
        %s1088 = scalar_lea.vmem [#allocation11], %s1087
        %p1089 = pneg %p195
        %p1090 = pneg %p192
        %p1091 = scmp.lt.s32.totalorder %s42, 1
        %s1092 = scalar_select %p1091, %s42, 1
        %s1093 = smul.addr %s1092, 4
        %s1094 = smul.addr %s1093, 4
        %s1095 = scalar_lea.vmem %s6, %s1094
        %p1096 = pneg %p221
        %p1097 = pneg %p218
        %s1098 = sand.u32 %s37, 1
        %s1099 = scalar_lea.sflag [#allocation4], %s1098
        %s1100 = sand.u32 %s234, 1
        %s1101 = scalar_lea.vmem [#allocation12], %s1100
        %p1102 = pneg %p247
        %p1103 = pneg %p244
        %p1104 = scmp.lt.s32.totalorder %s42, 1
        %s1105 = scalar_select %p1104, %s42, 1
        %s1106 = smul.addr %s1105, 4
        %s1107 = smul.addr %s1106, 4
        %s1108 = scalar_lea.vmem %s8, %s1107
        %p1109 = pneg %p273
        %p1110 = pneg %p270
        %s1111 = sand.u32 %s37, 1
        %s1112 = scalar_lea.sflag [#allocation4], %s1111
        %s1113 = sand.u32 %s286, 1
        %s1114 = scalar_lea.vmem [#allocation13], %s1113
        %p1115 = pneg %p299
        %p1116 = pneg %p296
        %s1117 = sand.u32 %s37, 1
        %s1118 = scalar_lea.sflag [#allocation4], %s1117
        %s1119 = sand.u32 %s312, 1
        %s1120 = smul.addr %s1119, 16
        %s1121 = scalar_lea.vmem [#allocation14], %s1120
        %p1122 = pneg %p325
        %p1123 = pneg %p322
        %s1124 = sand.u32 %s37, 1
        %s1125 = scalar_lea.sflag [#allocation4], %s1124
        %s1126 = sand.u32 %s338, 1
        %s1127 = scalar_lea.vmem [#allocation15], %s1126
        %p1128 = pneg %p351
        %p1129 = pneg %p348
        %s1130 = sand.u32 %s37, 1
        %s1131 = scalar_lea.sflag [#allocation4], %s1130
        %s1132 = sand.u32 %s364, 1
        %s1133 = scalar_lea.vmem [#allocation16], %s1132
        %p1134 = pneg %p377
        %p1135 = pneg %p374
        %s1136 = sand.u32 %s37, 1
        %s1137 = scalar_lea.sflag [#allocation4], %s1136
        %s1138 = sand.u32 %s390, 1
        %s1139 = scalar_lea.vmem [#allocation17], %s1138
        %p1140 = pneg %p403
        %p1141 = pneg %p400
        %s1142 = sand.u32 %s37, 1
        %s1143 = scalar_lea.sflag [#allocation4], %s1142
        %s1144 = sand.u32 %s416, 1
        %s1145 = scalar_lea.vmem [#allocation18], %s1144
        %p1146 = pneg %p429
        %p1147 = pneg %p426
        %s1148 = sand.u32 %s37, 1
        %s1149 = scalar_lea.sflag [#allocation4], %s1148
        %s1150 = sand.u32 %s442, 1
        %s1151 = scalar_lea.vmem [#allocation19], %s1150
        %p1152 = pneg %p455
        %p1153 = pneg %p452
        %s1154 = sand.u32 %s37, 1
        %s1155 = scalar_lea.sflag [#allocation4], %s1154
        %s1156 = sand.u32 %s468, 1
        %s1157 = scalar_lea.vmem [#allocation20], %s1156
        %p1158 = pneg %p481
        %p1159 = pneg %p478
        %s1160 = sand.u32 %s37, 1
        %s1161 = scalar_lea.sflag [#allocation4], %s1160
        %s1162 = sand.u32 %s494, 1
        %s1163 = scalar_lea.vmem [#allocation21], %s1162
        %p1164 = pneg %p507
        %p1165 = pneg %p504
        %p1166 = scmp.lt.s32.totalorder %s42, 1
        %s1167 = scalar_select %p1166, %s42, 1
        %s1168 = smul.addr %s1167, 4
        %s1169 = smul.addr %s1168, 4
        %s1170 = scalar_lea.vmem %s18, %s1169
        %p1171 = pneg %p533
        %p1172 = pneg %p530
        %p1173 = scmp.lt.s32.totalorder %s42, 1
        %s1174 = scalar_select %p1173, %s42, 1
        %s1175 = scalar_lea.vmem %s19, %s1174
        %p1176 = pneg %p559
        %p1177 = pneg %p556
        %p1178 = scmp.lt.s32.totalorder %s42, 1
        %s1179 = scalar_select %p1178, %s42, 1
        %s1180 = smul.addr %s1179, 8
        %s1181 = smul.addr %s1180, 4
        %s1182 = scalar_lea.vmem %s20, %s1181
        %p1183 = pneg %p585
        %p1184 = pneg %p582
        %p1185 = scmp.lt.s32.totalorder %s42, 1
        %s1186 = scalar_select %p1185, %s42, 1
        %s1187 = scalar_lea.vmem %s21, %s1186
        %p1188 = pneg %p611
        %p1189 = pneg %p608
        %p1190 = pneg %p637
        %p1191 = pneg %p634
        %s1192 = smul.u32 2, %s41
        %s1193 = smul.u32 2, %s41
        %s1194 = smul.u32 2, %s41
        %p1195 = scmp.lt.s32.totalorder %s42, 1
        %s1196 = scalar_select %p1195, %s42, 1
        %s1197 = smul.addr %s1196, 4
        %s1198 = smul.addr %s1197, 4
        %s1199 = scalar_lea.vmem %s4, %s1198
        %p1200 = scmp.lt.s32.totalorder %s42, 1
        %s1201 = scalar_select %p1200, %s42, 1
        %s1202 = smul.addr %s1201, 4
        %s1203 = smul.addr %s1202, 4
        %s1204 = scalar_lea.vmem %s6, %s1203
        %p1205 = scmp.lt.s32.totalorder %s42, 1
        %s1206 = scalar_select %p1205, %s42, 1
        %s1207 = smul.addr %s1206, 4
        %s1208 = smul.addr %s1207, 4
        %s1209 = scalar_lea.vmem %s8, %s1208
        %p1210 = scmp.lt.s32.totalorder %s42, 1
        %s1211 = scalar_select %p1210, %s42, 1
        %s1212 = smul.addr %s1211, 4
        %s1213 = smul.addr %s1212, 4
        %s1214 = scalar_lea.vmem %s18, %s1213
        %p1215 = scmp.lt.s32.totalorder %s42, 1
        %s1216 = scalar_select %p1215, %s42, 1
        %s1217 = scalar_lea.vmem %s19, %s1216
        %p1218 = scmp.lt.s32.totalorder %s42, 1
        %s1219 = scalar_select %p1218, %s42, 1
        %s1220 = smul.addr %s1219, 8
        %s1221 = smul.addr %s1220, 4
        %s1222 = scalar_lea.vmem %s20, %s1221
        %p1223 = scmp.lt.s32.totalorder %s42, 1
        %s1224 = scalar_select %p1223, %s42, 1
        %s1225 = scalar_lea.vmem %s21, %s1224
        %s1226 = smul.u32 2, %s41
        %p1228 = scmp.eq.s32.totalorder %s42, 0
        // Predicated region
        $region169: #{tpu_custom_call.1} parent=107 // pred_check
          %p1229 = pneg %p1228
        $region170: #{tpu_custom_call.1} parent=107 // pred_check_branch
          %1231 = sbr.rel (%p1229) target = $region172
        $region171: #{tpu_custom_call.1} parent=107 // pred_region
          %v1232 = vld [vmem:[#allocation3] sm:$0xff]
          %v1233 = vld [vmem:[#allocation3 + $0x8] sm:$0xff]
          %vm1234 = vcmask 261120
          %1235 = vst.msk [vmem:[#allocation2] sm:$0xff] %vm1234, %v1232
          %1236 = vst.msk [vmem:[#allocation2 + $0x8] sm:$0xff] %vm1234, %v1233
        $region172: #{tpu_custom_call.1} parent=107 // pred_fallthru
          _
        %v1237 = vld [vmem:[#allocation2] sm:$0xff]
        %v1238 = vld [vmem:[#allocation2 + $0x8] sm:$0xff]
        %v1239 = vld [vmem:[#allocation6] sm:$0xff]
        %v1240 = vld [vmem:[#allocation6 + $0x8] sm:$0xff]
        %v1241 = vld [vmem:[#allocation8] sm:$0xff]
        %v1242 = vld [vmem:[#allocation9] sm:$0x1]
        %v1243 = vld [vmem:[#allocation9 + $0x1] sm:$0x1]
        %v1244 = vpack.c.bf16 %v1238, %v1237
        %v1245 = vld [vmem:[%s1199] sm:$0xf]
        %v1246 = vld [vmem:[%s1199 + $0x4] sm:$0xf]
        %v1247 = vld [vmem:[%s1199 + $0x8] sm:$0xf]
        %v1248 = vld [vmem:[%s1199 + $0xc] sm:$0xf]
        %v1249 = vld [vmem:[%s984] sm:$0x1]
        %v1251 = vlaneseq
        %v1252 = vshrl.u32 %v1251, 7
        %v1253 = vsub.s32 0, %v1252
        %v1254 = vrot.slane %v1249, %v1253
        %v1260 = vunpack.c.l.b16 %v1245
        %v1261 = vunpack.c.l.b16 %v1246
        %v1262 = vunpack.c.l.b16 %v1247
        %v1263 = vunpack.c.l.b16 %v1248
        %v1264 = vpack.c.b16 %v1261, %v1260
        %v1265 = vpack.c.b16 %v1263, %v1262
        %vm1268 = vcmask 261120
        %v1270 = vsel %vm1268, %v1244, 0
        %1272 = vmatprep.subr.bf16.mxu0 0
        %1273 = vmatpush1.bf16.msra.mxu0 0
        %1274 = vmatprep.subr.bf16.mxu0 0
        %1275 = vmatpush1.bf16.msra.mxu0 0
        %1276 = vmatprep.subr.bf16.mxu0 0
        %1277 = vmatpush1.bf16.msra.mxu0 0
        %1278 = vmatprep.subr.bf16.mxu0 0
        %1279 = vmatpush1.bf16.msra.mxu0 0
        %1280 = vmatprep.subr.bf16.mxu0 0
        %1281 = vmatpush1.bf16.msra.mxu0 0
        %1282 = vmatprep.subr.bf16.mxu0 0
        %1283 = vmatpush1.bf16.msra.mxu0 0
        %1284 = vmatprep.subr.bf16.mxu0 0
        %1285 = vmatpush1.bf16.msra.mxu0 %v1265
        %1286 = vmatprep.subr.bf16.mxu0 0
        %1287 = vmatpush1.bf16.msra.mxu0 %v1264
        %1288 = vmatprep.subr.bf16.mxu0 0
        %1289 = vmatpush2.bf16.msra.mxu0 0
        %1290 = vmatprep.subr.bf16.mxu0 0
        %1291 = vmatpush2.bf16.msra.mxu0 0
        %1292 = vmatprep.subr.bf16.mxu0 0
        %1293 = vmatpush2.bf16.msra.mxu0 0
        %1294 = vmatprep.subr.bf16.mxu0 0
        %1295 = vmatpush2.bf16.msra.mxu0 0
        %1296 = vmatprep.subr.bf16.mxu0 0
        %1297 = vmatpush2.bf16.msra.mxu0 0
        %1298 = vmatprep.subr.bf16.mxu0 0
        %1299 = vmatpush2.bf16.msra.mxu0 0
        %1300 = vmatprep.subr.bf16.mxu0 0
        %1301 = vmatpush2.bf16.msra.mxu0 0
        %1302 = vmatprep.subr.bf16.mxu0 0
        %1303 = vmatpush2.bf16.msra.mxu0 0
        %1304 = vmatprep.mubr.bf16.mxu0 0
        %1305 = vmatmul.mubr.bf16.gmra.mxu0 %v1270
        %v1306 = vpop.f32.mrf.mxu0
        %v1307 = vadd.f32 %v1254, %v1306
        %v1308 = vpop.f32.mrf.mxu0
        %v1309 = vpop.f32.mrf.mxu0
        %v1310 = vadd.f32 %v1254, %v1309
        %v1311 = vpop.f32.mrf.mxu0
        %1312 = vdwg.mxu0
        %v1313 = vpack.c.bf16 %v1307, %v1307
        %v1314 = vpack.c.bf16 %v1310, %v1310
        %1316 = vrot.lane.b32.xlu0 %v1313, 96
        %v1317 = vpop.permute.xlu0 %1316
        %vm1318 = vcmask 64512
        %v1320 = vsel %vm1318, %v1313, 0
        %v1323 = vsel %vm1318, %v1317, 0
        %1325 = vmatprep.subr.bf16.mxu0 0
        %1326 = vmatpush1.bf16.xpose.msra.mxu0 0
        %1327 = vmatprep.subr.bf16.mxu0 0
        %1328 = vmatpush1.bf16.xpose.msra.mxu0 0
        %1329 = vmatprep.subr.bf16.mxu0 0
        %1330 = vmatpush1.bf16.xpose.msra.mxu0 0
        %1331 = vmatprep.subr.bf16.mxu0 0
        %1332 = vmatpush1.bf16.xpose.msra.mxu0 0
        %1333 = vmatprep.subr.bf16.mxu0 0
        %1334 = vmatpush1.bf16.xpose.msra.mxu0 0
        %1335 = vmatprep.subr.bf16.mxu0 0
        %1336 = vmatpush1.bf16.xpose.msra.mxu0 0
        %1337 = vmatprep.subr.bf16.mxu0 0
        %1338 = vmatpush1.bf16.xpose.msra.mxu0 0
        %1339 = vmatprep.subr.bf16.mxu0 0
        %1340 = vmatpush1.bf16.xpose.msra.mxu0 %v1323
        %1341 = vmatprep.subr.bf16.mxu0 0
        %1342 = vmatpush2.bf16.xpose.msra.mxu0 0
        %1343 = vmatprep.subr.bf16.mxu0 0
        %1344 = vmatpush2.bf16.xpose.msra.mxu0 0
        %1345 = vmatprep.subr.bf16.mxu0 0
        %1346 = vmatpush2.bf16.xpose.msra.mxu0 0
        %1347 = vmatprep.subr.bf16.mxu0 0
        %1348 = vmatpush2.bf16.xpose.msra.mxu0 0
        %1349 = vmatprep.subr.bf16.mxu0 0
        %1350 = vmatpush2.bf16.xpose.msra.mxu0 0
        %1351 = vmatprep.subr.bf16.mxu0 0
        %1352 = vmatpush2.bf16.xpose.msra.mxu0 0
        %1353 = vmatprep.subr.bf16.mxu0 0
        %1354 = vmatpush2.bf16.xpose.msra.mxu0 0
        %1355 = vmatprep.subr.bf16.mxu0 0
        %1356 = vmatpush2.bf16.xpose.msra.mxu0 0
        %1357 = vmatprep.mubr.bf16.mxu0 0
        %1358 = vmatmul.mubr.bf16.gmra.mxu0 %v1320
        %v1359 = vpop.f32.mrf.mxu0
        %v1360 = vadd.f32 0.0, %v1359
        %v1361 = vpop.f32.mrf.mxu0
        %v1362 = vpop.f32.mrf.mxu0
        %v1363 = vpop.f32.mrf.mxu0
        %1364 = vdwg.mxu0
        %1366 = vrot.lane.b32.xlu0 %v1314, 96
        %v1367 = vpop.permute.xlu0 %1366
        %v1369 = vsel %vm1318, %v1314, 0
        %v1372 = vsel %vm1318, %v1367, 0
        %1374 = vmatprep.subr.bf16.mxu0 0
        %1375 = vmatpush1.bf16.xpose.msra.mxu0 0
        %1376 = vmatprep.subr.bf16.mxu0 0
        %1377 = vmatpush1.bf16.xpose.msra.mxu0 0
        %1378 = vmatprep.subr.bf16.mxu0 0
        %1379 = vmatpush1.bf16.xpose.msra.mxu0 0
        %1380 = vmatprep.subr.bf16.mxu0 0
        %1381 = vmatpush1.bf16.xpose.msra.mxu0 0
        %1382 = vmatprep.subr.bf16.mxu0 0
        %1383 = vmatpush1.bf16.xpose.msra.mxu0 0
        %1384 = vmatprep.subr.bf16.mxu0 0
        %1385 = vmatpush1.bf16.xpose.msra.mxu0 0
        %1386 = vmatprep.subr.bf16.mxu0 0
        %1387 = vmatpush1.bf16.xpose.msra.mxu0 0
        %1388 = vmatprep.subr.bf16.mxu0 0
        %1389 = vmatpush1.bf16.xpose.msra.mxu0 %v1372
        %1390 = vmatprep.subr.bf16.mxu0 0
        %1391 = vmatpush2.bf16.xpose.msra.mxu0 0
        %1392 = vmatprep.subr.bf16.mxu0 0
        %1393 = vmatpush2.bf16.xpose.msra.mxu0 0
        %1394 = vmatprep.subr.bf16.mxu0 0
        %1395 = vmatpush2.bf16.xpose.msra.mxu0 0
        %1396 = vmatprep.subr.bf16.mxu0 0
        %1397 = vmatpush2.bf16.xpose.msra.mxu0 0
        %1398 = vmatprep.subr.bf16.mxu0 0
        %1399 = vmatpush2.bf16.xpose.msra.mxu0 0
        %1400 = vmatprep.subr.bf16.mxu0 0
        %1401 = vmatpush2.bf16.xpose.msra.mxu0 0
        %1402 = vmatprep.subr.bf16.mxu0 0
        %1403 = vmatpush2.bf16.xpose.msra.mxu0 0
        %1404 = vmatprep.subr.bf16.mxu0 0
        %1405 = vmatpush2.bf16.xpose.msra.mxu0 0
        %1406 = vmatprep.mubr.bf16.mxu0 0
        %1407 = vmatmul.mubr.bf16.gmra.mxu0 %v1369
        %v1408 = vpop.f32.mrf.mxu0
        %v1409 = vadd.f32 0.0, %v1408
        %v1410 = vpop.f32.mrf.mxu0
        %v1411 = vpop.f32.mrf.mxu0
        %v1412 = vpop.f32.mrf.mxu0
        %1413 = vdwg.mxu0
        %v1414 = vmul.f32 %v1360, 0.35355338
        %v1415 = vmul.f32 %v1409, 0.35355338
        %v1416 = vadd.f32 %v1414, %v1241
        %v1417 = vadd.f32 %v1415, %v1241
        %v1418 = vsel %vm1318, %v1416, -inf
        %1419 = vmax.xlane.f32.xlu0 %v1418
        %v1420 = vpop.xlane.xlu0 %1419
        %v1421 = vsel %vm1318, %v1417, -inf
        %1422 = vmax.xlane.f32.xlu0 %v1421
        %v1423 = vpop.xlane.xlu0 %1422
        %v1424 = vsub.f32 %v1416, %v1420
        %v1425 = vsub.f32 %v1417, %v1423
        %v1426 = vmul.f32 %v1424, 1.442695
        %v1427 = vpow.pop %v1426
        %v1428 = vmul.f32 %v1425, 1.442695
        %v1429 = vpow.pop %v1428
        %v1430 = vsel %vm1318, %v1427, 0.0
        %1431 = vadd.xlane.f32.xlu0 %v1430
        %v1432 = vpop.xlane.xlu0 %1431
        %v1433 = vsel %vm1318, %v1429, 0.0
        %1434 = vadd.xlane.f32.xlu0 %v1433
        %v1435 = vpop.xlane.xlu0 %1434
        %v1436 = vrcp.pop %v1432
        %v1437 = vrcp.pop %v1435
        %v1438 = vmul.f32 %v1427, %v1436
        %v1439 = vmul.f32 %v1429, %v1437
        %v1440 = vpack.c.bf16 %v1438, %v1438
        %v1441 = vpack.c.bf16 %v1439, %v1439
        %1442 = vrot.lane.b32.xlu0 %v1313, 64
        %v1443 = vpop.permute.xlu0 %1442
        %v1445 = vsel %vm1318, %v1440, 0
        %vm1447 = vcmask 1043456
        %v1449 = vsel %vm1447, %v1443, 0
        %1451 = vmatprep.subr.bf16.mxu0 0
        %1452 = vmatpush1.bf16.msra.mxu0 0
        %1453 = vmatprep.subr.bf16.mxu0 0
        %1454 = vmatpush1.bf16.msra.mxu0 0
        %1455 = vmatprep.subr.bf16.mxu0 0
        %1456 = vmatpush1.bf16.msra.mxu0 0
        %1457 = vmatprep.subr.bf16.mxu0 0
        %1458 = vmatpush1.bf16.msra.mxu0 0
        %1459 = vmatprep.subr.bf16.mxu0 0
        %1460 = vmatpush1.bf16.msra.mxu0 0
        %1461 = vmatprep.subr.bf16.mxu0 0
        %1462 = vmatpush1.bf16.msra.mxu0 0
        %1463 = vmatprep.subr.bf16.mxu0 0
        %1464 = vmatpush1.bf16.msra.mxu0 0
        %1465 = vmatprep.subr.bf16.mxu0 0
        %1466 = vmatpush1.bf16.msra.mxu0 %v1449
        %1467 = vmatprep.subr.bf16.mxu0 0
        %1468 = vmatpush2.bf16.msra.mxu0 0
        %1469 = vmatprep.subr.bf16.mxu0 0
        %1470 = vmatpush2.bf16.msra.mxu0 0
        %1471 = vmatprep.subr.bf16.mxu0 0
        %1472 = vmatpush2.bf16.msra.mxu0 0
        %1473 = vmatprep.subr.bf16.mxu0 0
        %1474 = vmatpush2.bf16.msra.mxu0 0
        %1475 = vmatprep.subr.bf16.mxu0 0
        %1476 = vmatpush2.bf16.msra.mxu0 0
        %1477 = vmatprep.subr.bf16.mxu0 0
        %1478 = vmatpush2.bf16.msra.mxu0 0
        %1479 = vmatprep.subr.bf16.mxu0 0
        %1480 = vmatpush2.bf16.msra.mxu0 0
        %1481 = vmatprep.subr.bf16.mxu0 0
        %1482 = vmatpush2.bf16.msra.mxu0 0
        %1483 = vmatprep.mubr.bf16.mxu0 0
        %1484 = vmatmul.mubr.bf16.gmra.mxu0 %v1445
        %v1485 = vpop.f32.mrf.mxu0
        %v1486 = vadd.f32 0.0, %v1485
        %v1487 = vpop.f32.mrf.mxu0
        %v1488 = vpop.f32.mrf.mxu0
        %v1489 = vpop.f32.mrf.mxu0
        %1490 = vdwg.mxu0
        %1491 = vrot.lane.b32.xlu0 %v1314, 64
        %v1492 = vpop.permute.xlu0 %1491
        %v1494 = vsel %vm1318, %v1441, 0
        %v1497 = vsel %vm1447, %v1492, 0
        %1499 = vmatprep.subr.bf16.mxu0 0
        %1500 = vmatpush1.bf16.msra.mxu0 0
        %1501 = vmatprep.subr.bf16.mxu0 0
        %1502 = vmatpush1.bf16.msra.mxu0 0
        %1503 = vmatprep.subr.bf16.mxu0 0
        %1504 = vmatpush1.bf16.msra.mxu0 0
        %1505 = vmatprep.subr.bf16.mxu0 0
        %1506 = vmatpush1.bf16.msra.mxu0 0
        %1507 = vmatprep.subr.bf16.mxu0 0
        %1508 = vmatpush1.bf16.msra.mxu0 0
        %1509 = vmatprep.subr.bf16.mxu0 0
        %1510 = vmatpush1.bf16.msra.mxu0 0
        %1511 = vmatprep.subr.bf16.mxu0 0
        %1512 = vmatpush1.bf16.msra.mxu0 0
        %1513 = vmatprep.subr.bf16.mxu0 0
        %1514 = vmatpush1.bf16.msra.mxu0 %v1497
        %1515 = vmatprep.subr.bf16.mxu0 0
        %1516 = vmatpush2.bf16.msra.mxu0 0
        %1517 = vmatprep.subr.bf16.mxu0 0
        %1518 = vmatpush2.bf16.msra.mxu0 0
        %1519 = vmatprep.subr.bf16.mxu0 0
        %1520 = vmatpush2.bf16.msra.mxu0 0
        %1521 = vmatprep.subr.bf16.mxu0 0
        %1522 = vmatpush2.bf16.msra.mxu0 0
        %1523 = vmatprep.subr.bf16.mxu0 0
        %1524 = vmatpush2.bf16.msra.mxu0 0
        %1525 = vmatprep.subr.bf16.mxu0 0
        %1526 = vmatpush2.bf16.msra.mxu0 0
        %1527 = vmatprep.subr.bf16.mxu0 0
        %1528 = vmatpush2.bf16.msra.mxu0 0
        %1529 = vmatprep.subr.bf16.mxu0 0
        %1530 = vmatpush2.bf16.msra.mxu0 0
        %1531 = vmatprep.mubr.bf16.mxu0 0
        %1532 = vmatmul.mubr.bf16.gmra.mxu0 %v1494
        %v1533 = vpop.f32.mrf.mxu0
        %v1534 = vadd.f32 0.0, %v1533
        %v1535 = vpop.f32.mrf.mxu0
        %v1536 = vpop.f32.mrf.mxu0
        %v1537 = vpop.f32.mrf.mxu0
        %1538 = vdwg.mxu0
        %1539 = vrot.lane.b32.xlu0 %v1313, 120
        %v1540 = vpop.permute.xlu0 %1539
        %1541 = vrot.lane.b32.xlu0 %v1313, 88
        %v1542 = vpop.permute.xlu0 %1541
        %v1544 = vsel %vm1318, %v1540, 0
        %v1547 = vsel %vm1318, %v1542, 0
        %1549 = vmatprep.subr.bf16.mxu0 0
        %1550 = vmatpush1.bf16.xpose.msra.mxu0 0
        %1551 = vmatprep.subr.bf16.mxu0 0
        %1552 = vmatpush1.bf16.xpose.msra.mxu0 0
        %1553 = vmatprep.subr.bf16.mxu0 0
        %1554 = vmatpush1.bf16.xpose.msra.mxu0 0
        %1555 = vmatprep.subr.bf16.mxu0 0
        %1556 = vmatpush1.bf16.xpose.msra.mxu0 0
        %1557 = vmatprep.subr.bf16.mxu0 0
        %1558 = vmatpush1.bf16.xpose.msra.mxu0 0
        %1559 = vmatprep.subr.bf16.mxu0 0
        %1560 = vmatpush1.bf16.xpose.msra.mxu0 0
        %1561 = vmatprep.subr.bf16.mxu0 0
        %1562 = vmatpush1.bf16.xpose.msra.mxu0 0
        %1563 = vmatprep.subr.bf16.mxu0 0
        %1564 = vmatpush1.bf16.xpose.msra.mxu0 %v1547
        %1565 = vmatprep.subr.bf16.mxu0 0
        %1566 = vmatpush2.bf16.xpose.msra.mxu0 0
        %1567 = vmatprep.subr.bf16.mxu0 0
        %1568 = vmatpush2.bf16.xpose.msra.mxu0 0
        %1569 = vmatprep.subr.bf16.mxu0 0
        %1570 = vmatpush2.bf16.xpose.msra.mxu0 0
        %1571 = vmatprep.subr.bf16.mxu0 0
        %1572 = vmatpush2.bf16.xpose.msra.mxu0 0
        %1573 = vmatprep.subr.bf16.mxu0 0
        %1574 = vmatpush2.bf16.xpose.msra.mxu0 0
        %1575 = vmatprep.subr.bf16.mxu0 0
        %1576 = vmatpush2.bf16.xpose.msra.mxu0 0
        %1577 = vmatprep.subr.bf16.mxu0 0
        %1578 = vmatpush2.bf16.xpose.msra.mxu0 0
        %1579 = vmatprep.subr.bf16.mxu0 0
        %1580 = vmatpush2.bf16.xpose.msra.mxu0 0
        %1581 = vmatprep.mubr.bf16.mxu0 0
        %1582 = vmatmul.mubr.bf16.gmra.mxu0 %v1544
        %v1583 = vpop.f32.mrf.mxu0
        %v1584 = vadd.f32 0.0, %v1583
        %v1585 = vpop.f32.mrf.mxu0
        %v1586 = vpop.f32.mrf.mxu0
        %v1587 = vpop.f32.mrf.mxu0
        %1588 = vdwg.mxu0
        %1589 = vrot.lane.b32.xlu0 %v1314, 120
        %v1590 = vpop.permute.xlu0 %1589
        %1591 = vrot.lane.b32.xlu0 %v1314, 88
        %v1592 = vpop.permute.xlu0 %1591
        %v1594 = vsel %vm1318, %v1590, 0
        %v1597 = vsel %vm1318, %v1592, 0
        %1599 = vmatprep.subr.bf16.mxu0 0
        %1600 = vmatpush1.bf16.xpose.msra.mxu0 0
        %1601 = vmatprep.subr.bf16.mxu0 0
        %1602 = vmatpush1.bf16.xpose.msra.mxu0 0
        %1603 = vmatprep.subr.bf16.mxu0 0
        %1604 = vmatpush1.bf16.xpose.msra.mxu0 0
        %1605 = vmatprep.subr.bf16.mxu0 0
        %1606 = vmatpush1.bf16.xpose.msra.mxu0 0
        %1607 = vmatprep.subr.bf16.mxu0 0
        %1608 = vmatpush1.bf16.xpose.msra.mxu0 0
        %1609 = vmatprep.subr.bf16.mxu0 0
        %1610 = vmatpush1.bf16.xpose.msra.mxu0 0
        %1611 = vmatprep.subr.bf16.mxu0 0
        %1612 = vmatpush1.bf16.xpose.msra.mxu0 0
        %1613 = vmatprep.subr.bf16.mxu0 0
        %1614 = vmatpush1.bf16.xpose.msra.mxu0 %v1597
        %1615 = vmatprep.subr.bf16.mxu0 0
        %1616 = vmatpush2.bf16.xpose.msra.mxu0 0
        %1617 = vmatprep.subr.bf16.mxu0 0
        %1618 = vmatpush2.bf16.xpose.msra.mxu0 0
        %1619 = vmatprep.subr.bf16.mxu0 0
        %1620 = vmatpush2.bf16.xpose.msra.mxu0 0
        %1621 = vmatprep.subr.bf16.mxu0 0
        %1622 = vmatpush2.bf16.xpose.msra.mxu0 0
        %1623 = vmatprep.subr.bf16.mxu0 0
        %1624 = vmatpush2.bf16.xpose.msra.mxu0 0
        %1625 = vmatprep.subr.bf16.mxu0 0
        %1626 = vmatpush2.bf16.xpose.msra.mxu0 0
        %1627 = vmatprep.subr.bf16.mxu0 0
        %1628 = vmatpush2.bf16.xpose.msra.mxu0 0
        %1629 = vmatprep.subr.bf16.mxu0 0
        %1630 = vmatpush2.bf16.xpose.msra.mxu0 0
        %1631 = vmatprep.mubr.bf16.mxu0 0
        %1632 = vmatmul.mubr.bf16.gmra.mxu0 %v1594
        %v1633 = vpop.f32.mrf.mxu0
        %v1634 = vadd.f32 0.0, %v1633
        %v1635 = vpop.f32.mrf.mxu0
        %v1636 = vpop.f32.mrf.mxu0
        %v1637 = vpop.f32.mrf.mxu0
        %1638 = vdwg.mxu0
        %v1639 = vmul.f32 %v1584, 0.35355338
        %v1640 = vmul.f32 %v1634, 0.35355338
        %v1641 = vadd.f32 %v1639, %v1241
        %v1642 = vadd.f32 %v1640, %v1241
        %v1643 = vsel %vm1318, %v1641, -inf
        %1644 = vmax.xlane.f32.xlu0 %v1643
        %v1645 = vpop.xlane.xlu0 %1644
        %v1646 = vsel %vm1318, %v1642, -inf
        %1647 = vmax.xlane.f32.xlu0 %v1646
        %v1648 = vpop.xlane.xlu0 %1647
        %v1649 = vsub.f32 %v1641, %v1645
        %v1650 = vsub.f32 %v1642, %v1648
        %v1651 = vmul.f32 %v1649, 1.442695
        %v1652 = vpow.pop %v1651
        %v1653 = vmul.f32 %v1650, 1.442695
        %v1654 = vpow.pop %v1653
        %v1655 = vsel %vm1318, %v1652, 0.0
        %1656 = vadd.xlane.f32.xlu0 %v1655
        %v1657 = vpop.xlane.xlu0 %1656
        %v1658 = vsel %vm1318, %v1654, 0.0
        %1659 = vadd.xlane.f32.xlu0 %v1658
        %v1660 = vpop.xlane.xlu0 %1659
        %v1661 = vrcp.pop %v1657
        %v1662 = vrcp.pop %v1660
        %v1663 = vmul.f32 %v1652, %v1661
        %v1664 = vmul.f32 %v1654, %v1662
        %v1665 = vpack.c.bf16 %v1663, %v1663
        %v1666 = vpack.c.bf16 %v1664, %v1664
        %1667 = vrot.lane.b32.xlu0 %v1313, 56
        %v1668 = vpop.permute.xlu0 %1667
        %v1670 = vsel %vm1318, %v1665, 0
        %v1673 = vsel %vm1447, %v1668, 0
        %1675 = vmatprep.subr.bf16.mxu0 0
        %1676 = vmatpush1.bf16.msra.mxu0 0
        %1677 = vmatprep.subr.bf16.mxu0 0
        %1678 = vmatpush1.bf16.msra.mxu0 0
        %1679 = vmatprep.subr.bf16.mxu0 0
        %1680 = vmatpush1.bf16.msra.mxu0 0
        %1681 = vmatprep.subr.bf16.mxu0 0
        %1682 = vmatpush1.bf16.msra.mxu0 0
        %1683 = vmatprep.subr.bf16.mxu0 0
        %1684 = vmatpush1.bf16.msra.mxu0 0
        %1685 = vmatprep.subr.bf16.mxu0 0
        %1686 = vmatpush1.bf16.msra.mxu0 0
        %1687 = vmatprep.subr.bf16.mxu0 0
        %1688 = vmatpush1.bf16.msra.mxu0 0
        %1689 = vmatprep.subr.bf16.mxu0 0
        %1690 = vmatpush1.bf16.msra.mxu0 %v1673
        %1691 = vmatprep.subr.bf16.mxu0 0
        %1692 = vmatpush2.bf16.msra.mxu0 0
        %1693 = vmatprep.subr.bf16.mxu0 0
        %1694 = vmatpush2.bf16.msra.mxu0 0
        %1695 = vmatprep.subr.bf16.mxu0 0
        %1696 = vmatpush2.bf16.msra.mxu0 0
        %1697 = vmatprep.subr.bf16.mxu0 0
        %1698 = vmatpush2.bf16.msra.mxu0 0
        %1699 = vmatprep.subr.bf16.mxu0 0
        %1700 = vmatpush2.bf16.msra.mxu0 0
        %1701 = vmatprep.subr.bf16.mxu0 0
        %1702 = vmatpush2.bf16.msra.mxu0 0
        %1703 = vmatprep.subr.bf16.mxu0 0
        %1704 = vmatpush2.bf16.msra.mxu0 0
        %1705 = vmatprep.subr.bf16.mxu0 0
        %1706 = vmatpush2.bf16.msra.mxu0 0
        %1707 = vmatprep.mubr.bf16.mxu0 0
        %1708 = vmatmul.mubr.bf16.gmra.mxu0 %v1670
        %v1709 = vpop.f32.mrf.mxu0
        %v1710 = vadd.f32 0.0, %v1709
        %v1711 = vpop.f32.mrf.mxu0
        %v1712 = vpop.f32.mrf.mxu0
        %v1713 = vpop.f32.mrf.mxu0
        %1714 = vdwg.mxu0
        %1715 = vrot.lane.b32.xlu0 %v1314, 56
        %v1716 = vpop.permute.xlu0 %1715
        %v1718 = vsel %vm1318, %v1666, 0
        %v1721 = vsel %vm1447, %v1716, 0
        %1723 = vmatprep.subr.bf16.mxu0 0
        %1724 = vmatpush1.bf16.msra.mxu0 0
        %1725 = vmatprep.subr.bf16.mxu0 0
        %1726 = vmatpush1.bf16.msra.mxu0 0
        %1727 = vmatprep.subr.bf16.mxu0 0
        %1728 = vmatpush1.bf16.msra.mxu0 0
        %1729 = vmatprep.subr.bf16.mxu0 0
        %1730 = vmatpush1.bf16.msra.mxu0 0
        %1731 = vmatprep.subr.bf16.mxu0 0
        %1732 = vmatpush1.bf16.msra.mxu0 0
        %1733 = vmatprep.subr.bf16.mxu0 0
        %1734 = vmatpush1.bf16.msra.mxu0 0
        %1735 = vmatprep.subr.bf16.mxu0 0
        %1736 = vmatpush1.bf16.msra.mxu0 0
        %1737 = vmatprep.subr.bf16.mxu0 0
        %1738 = vmatpush1.bf16.msra.mxu0 %v1721
        %1739 = vmatprep.subr.bf16.mxu0 0
        %1740 = vmatpush2.bf16.msra.mxu0 0
        %1741 = vmatprep.subr.bf16.mxu0 0
        %1742 = vmatpush2.bf16.msra.mxu0 0
        %1743 = vmatprep.subr.bf16.mxu0 0
        %1744 = vmatpush2.bf16.msra.mxu0 0
        %1745 = vmatprep.subr.bf16.mxu0 0
        %1746 = vmatpush2.bf16.msra.mxu0 0
        %1747 = vmatprep.subr.bf16.mxu0 0
        %1748 = vmatpush2.bf16.msra.mxu0 0
        %1749 = vmatprep.subr.bf16.mxu0 0
        %1750 = vmatpush2.bf16.msra.mxu0 0
        %1751 = vmatprep.subr.bf16.mxu0 0
        %1752 = vmatpush2.bf16.msra.mxu0 0
        %1753 = vmatprep.subr.bf16.mxu0 0
        %1754 = vmatpush2.bf16.msra.mxu0 0
        %1755 = vmatprep.mubr.bf16.mxu0 0
        %1756 = vmatmul.mubr.bf16.gmra.mxu0 %v1718
        %v1757 = vpop.f32.mrf.mxu0
        %v1758 = vadd.f32 0.0, %v1757
        %v1759 = vpop.f32.mrf.mxu0
        %v1760 = vpop.f32.mrf.mxu0
        %v1761 = vpop.f32.mrf.mxu0
        %1762 = vdwg.mxu0
        %1763 = vrot.lane.b32.xlu0 %v1313, 112
        %v1764 = vpop.permute.xlu0 %1763
        %1765 = vrot.lane.b32.xlu0 %v1313, 80
        %v1766 = vpop.permute.xlu0 %1765
        %v1768 = vsel %vm1318, %v1764, 0
        %v1771 = vsel %vm1318, %v1766, 0
        %1773 = vmatprep.subr.bf16.mxu0 0
        %1774 = vmatpush1.bf16.xpose.msra.mxu0 0
        %1775 = vmatprep.subr.bf16.mxu0 0
        %1776 = vmatpush1.bf16.xpose.msra.mxu0 0
        %1777 = vmatprep.subr.bf16.mxu0 0
        %1778 = vmatpush1.bf16.xpose.msra.mxu0 0
        %1779 = vmatprep.subr.bf16.mxu0 0
        %1780 = vmatpush1.bf16.xpose.msra.mxu0 0
        %1781 = vmatprep.subr.bf16.mxu0 0
        %1782 = vmatpush1.bf16.xpose.msra.mxu0 0
        %1783 = vmatprep.subr.bf16.mxu0 0
        %1784 = vmatpush1.bf16.xpose.msra.mxu0 0
        %1785 = vmatprep.subr.bf16.mxu0 0
        %1786 = vmatpush1.bf16.xpose.msra.mxu0 0
        %1787 = vmatprep.subr.bf16.mxu0 0
        %1788 = vmatpush1.bf16.xpose.msra.mxu0 %v1771
        %1789 = vmatprep.subr.bf16.mxu0 0
        %1790 = vmatpush2.bf16.xpose.msra.mxu0 0
        %1791 = vmatprep.subr.bf16.mxu0 0
        %1792 = vmatpush2.bf16.xpose.msra.mxu0 0
        %1793 = vmatprep.subr.bf16.mxu0 0
        %1794 = vmatpush2.bf16.xpose.msra.mxu0 0
        %1795 = vmatprep.subr.bf16.mxu0 0
        %1796 = vmatpush2.bf16.xpose.msra.mxu0 0
        %1797 = vmatprep.subr.bf16.mxu0 0
        %1798 = vmatpush2.bf16.xpose.msra.mxu0 0
        %1799 = vmatprep.subr.bf16.mxu0 0
        %1800 = vmatpush2.bf16.xpose.msra.mxu0 0
        %1801 = vmatprep.subr.bf16.mxu0 0
        %1802 = vmatpush2.bf16.xpose.msra.mxu0 0
        %1803 = vmatprep.subr.bf16.mxu0 0
        %1804 = vmatpush2.bf16.xpose.msra.mxu0 0
        %1805 = vmatprep.mubr.bf16.mxu0 0
        %1806 = vmatmul.mubr.bf16.gmra.mxu0 %v1768
        %v1807 = vpop.f32.mrf.mxu0
        %v1808 = vadd.f32 0.0, %v1807
        %v1809 = vpop.f32.mrf.mxu0
        %v1810 = vpop.f32.mrf.mxu0
        %v1811 = vpop.f32.mrf.mxu0
        %1812 = vdwg.mxu0
        %1813 = vrot.lane.b32.xlu0 %v1314, 112
        %v1814 = vpop.permute.xlu0 %1813
        %1815 = vrot.lane.b32.xlu0 %v1314, 80
        %v1816 = vpop.permute.xlu0 %1815
        %v1818 = vsel %vm1318, %v1814, 0
        %v1821 = vsel %vm1318, %v1816, 0
        %1823 = vmatprep.subr.bf16.mxu0 0
        %1824 = vmatpush1.bf16.xpose.msra.mxu0 0
        %1825 = vmatprep.subr.bf16.mxu0 0
        %1826 = vmatpush1.bf16.xpose.msra.mxu0 0
        %1827 = vmatprep.subr.bf16.mxu0 0
        %1828 = vmatpush1.bf16.xpose.msra.mxu0 0
        %1829 = vmatprep.subr.bf16.mxu0 0
        %1830 = vmatpush1.bf16.xpose.msra.mxu0 0
        %1831 = vmatprep.subr.bf16.mxu0 0
        %1832 = vmatpush1.bf16.xpose.msra.mxu0 0
        %1833 = vmatprep.subr.bf16.mxu0 0
        %1834 = vmatpush1.bf16.xpose.msra.mxu0 0
        %1835 = vmatprep.subr.bf16.mxu0 0
        %1836 = vmatpush1.bf16.xpose.msra.mxu0 0
        %1837 = vmatprep.subr.bf16.mxu0 0
        %1838 = vmatpush1.bf16.xpose.msra.mxu0 %v1821
        %1839 = vmatprep.subr.bf16.mxu0 0
        %1840 = vmatpush2.bf16.xpose.msra.mxu0 0
        %1841 = vmatprep.subr.bf16.mxu0 0
        %1842 = vmatpush2.bf16.xpose.msra.mxu0 0
        %1843 = vmatprep.subr.bf16.mxu0 0
        %1844 = vmatpush2.bf16.xpose.msra.mxu0 0
        %1845 = vmatprep.subr.bf16.mxu0 0
        %1846 = vmatpush2.bf16.xpose.msra.mxu0 0
        %1847 = vmatprep.subr.bf16.mxu0 0
        %1848 = vmatpush2.bf16.xpose.msra.mxu0 0
        %1849 = vmatprep.subr.bf16.mxu0 0
        %1850 = vmatpush2.bf16.xpose.msra.mxu0 0
        %1851 = vmatprep.subr.bf16.mxu0 0
        %1852 = vmatpush2.bf16.xpose.msra.mxu0 0
        %1853 = vmatprep.subr.bf16.mxu0 0
        %1854 = vmatpush2.bf16.xpose.msra.mxu0 0
        %1855 = vmatprep.mubr.bf16.mxu0 0
        %1856 = vmatmul.mubr.bf16.gmra.mxu0 %v1818
        %v1857 = vpop.f32.mrf.mxu0
        %v1858 = vadd.f32 0.0, %v1857
        %v1859 = vpop.f32.mrf.mxu0
        %v1860 = vpop.f32.mrf.mxu0
        %v1861 = vpop.f32.mrf.mxu0
        %1862 = vdwg.mxu0
        %v1863 = vmul.f32 %v1808, 0.35355338
        %v1864 = vmul.f32 %v1858, 0.35355338
        %v1865 = vadd.f32 %v1863, %v1241
        %v1866 = vadd.f32 %v1864, %v1241
        %v1867 = vsel %vm1318, %v1865, -inf
        %1868 = vmax.xlane.f32.xlu0 %v1867
        %v1869 = vpop.xlane.xlu0 %1868
        %v1870 = vsel %vm1318, %v1866, -inf
        %1871 = vmax.xlane.f32.xlu0 %v1870
        %v1872 = vpop.xlane.xlu0 %1871
        %v1873 = vsub.f32 %v1865, %v1869
        %v1874 = vsub.f32 %v1866, %v1872
        %v1875 = vmul.f32 %v1873, 1.442695
        %v1876 = vpow.pop %v1875
        %v1877 = vmul.f32 %v1874, 1.442695
        %v1878 = vpow.pop %v1877
        %v1879 = vsel %vm1318, %v1876, 0.0
        %1880 = vadd.xlane.f32.xlu0 %v1879
        %v1881 = vpop.xlane.xlu0 %1880
        %v1882 = vsel %vm1318, %v1878, 0.0
        %1883 = vadd.xlane.f32.xlu0 %v1882
        %v1884 = vpop.xlane.xlu0 %1883
        %v1885 = vrcp.pop %v1881
        %v1886 = vrcp.pop %v1884
        %v1887 = vmul.f32 %v1876, %v1885
        %v1888 = vmul.f32 %v1878, %v1886
        %v1889 = vpack.c.bf16 %v1887, %v1887
        %v1890 = vpack.c.bf16 %v1888, %v1888
        %1891 = vrot.lane.b32.xlu0 %v1313, 48
        %v1892 = vpop.permute.xlu0 %1891
        %v1894 = vsel %vm1318, %v1889, 0
        %v1897 = vsel %vm1447, %v1892, 0
        %1899 = vmatprep.subr.bf16.mxu0 0
        %1900 = vmatpush1.bf16.msra.mxu0 0
        %1901 = vmatprep.subr.bf16.mxu0 0
        %1902 = vmatpush1.bf16.msra.mxu0 0
        %1903 = vmatprep.subr.bf16.mxu0 0
        %1904 = vmatpush1.bf16.msra.mxu0 0
        %1905 = vmatprep.subr.bf16.mxu0 0
        %1906 = vmatpush1.bf16.msra.mxu0 0
        %1907 = vmatprep.subr.bf16.mxu0 0
        %1908 = vmatpush1.bf16.msra.mxu0 0
        %1909 = vmatprep.subr.bf16.mxu0 0
        %1910 = vmatpush1.bf16.msra.mxu0 0
        %1911 = vmatprep.subr.bf16.mxu0 0
        %1912 = vmatpush1.bf16.msra.mxu0 0
        %1913 = vmatprep.subr.bf16.mxu0 0
        %1914 = vmatpush1.bf16.msra.mxu0 %v1897
        %1915 = vmatprep.subr.bf16.mxu0 0
        %1916 = vmatpush2.bf16.msra.mxu0 0
        %1917 = vmatprep.subr.bf16.mxu0 0
        %1918 = vmatpush2.bf16.msra.mxu0 0
        %1919 = vmatprep.subr.bf16.mxu0 0
        %1920 = vmatpush2.bf16.msra.mxu0 0
        %1921 = vmatprep.subr.bf16.mxu0 0
        %1922 = vmatpush2.bf16.msra.mxu0 0
        %1923 = vmatprep.subr.bf16.mxu0 0
        %1924 = vmatpush2.bf16.msra.mxu0 0
        %1925 = vmatprep.subr.bf16.mxu0 0
        %1926 = vmatpush2.bf16.msra.mxu0 0
        %1927 = vmatprep.subr.bf16.mxu0 0
        %1928 = vmatpush2.bf16.msra.mxu0 0
        %1929 = vmatprep.subr.bf16.mxu0 0
        %1930 = vmatpush2.bf16.msra.mxu0 0
        %1931 = vmatprep.mubr.bf16.mxu0 0
        %1932 = vmatmul.mubr.bf16.gmra.mxu0 %v1894
        %v1933 = vpop.f32.mrf.mxu0
        %v1934 = vadd.f32 0.0, %v1933
        %v1935 = vpop.f32.mrf.mxu0
        %v1936 = vpop.f32.mrf.mxu0
        %v1937 = vpop.f32.mrf.mxu0
        %1938 = vdwg.mxu0
        %1939 = vrot.lane.b32.xlu0 %v1314, 48
        %v1940 = vpop.permute.xlu0 %1939
        %v1942 = vsel %vm1318, %v1890, 0
        %v1945 = vsel %vm1447, %v1940, 0
        %1947 = vmatprep.subr.bf16.mxu0 0
        %1948 = vmatpush1.bf16.msra.mxu0 0
        %1949 = vmatprep.subr.bf16.mxu0 0
        %1950 = vmatpush1.bf16.msra.mxu0 0
        %1951 = vmatprep.subr.bf16.mxu0 0
        %1952 = vmatpush1.bf16.msra.mxu0 0
        %1953 = vmatprep.subr.bf16.mxu0 0
        %1954 = vmatpush1.bf16.msra.mxu0 0
        %1955 = vmatprep.subr.bf16.mxu0 0
        %1956 = vmatpush1.bf16.msra.mxu0 0
        %1957 = vmatprep.subr.bf16.mxu0 0
        %1958 = vmatpush1.bf16.msra.mxu0 0
        %1959 = vmatprep.subr.bf16.mxu0 0
        %1960 = vmatpush1.bf16.msra.mxu0 0
        %1961 = vmatprep.subr.bf16.mxu0 0
        %1962 = vmatpush1.bf16.msra.mxu0 %v1945
        %1963 = vmatprep.subr.bf16.mxu0 0
        %1964 = vmatpush2.bf16.msra.mxu0 0
        %1965 = vmatprep.subr.bf16.mxu0 0
        %1966 = vmatpush2.bf16.msra.mxu0 0
        %1967 = vmatprep.subr.bf16.mxu0 0
        %1968 = vmatpush2.bf16.msra.mxu0 0
        %1969 = vmatprep.subr.bf16.mxu0 0
        %1970 = vmatpush2.bf16.msra.mxu0 0
        %1971 = vmatprep.subr.bf16.mxu0 0
        %1972 = vmatpush2.bf16.msra.mxu0 0
        %1973 = vmatprep.subr.bf16.mxu0 0
        %1974 = vmatpush2.bf16.msra.mxu0 0
        %1975 = vmatprep.subr.bf16.mxu0 0
        %1976 = vmatpush2.bf16.msra.mxu0 0
        %1977 = vmatprep.subr.bf16.mxu0 0
        %1978 = vmatpush2.bf16.msra.mxu0 0
        %1979 = vmatprep.mubr.bf16.mxu0 0
        %1980 = vmatmul.mubr.bf16.gmra.mxu0 %v1942
        %v1981 = vpop.f32.mrf.mxu0
        %v1982 = vadd.f32 0.0, %v1981
        %v1983 = vpop.f32.mrf.mxu0
        %v1984 = vpop.f32.mrf.mxu0
        %v1985 = vpop.f32.mrf.mxu0
        %1986 = vdwg.mxu0
        %1987 = vrot.lane.b32.xlu0 %v1313, 104
        %v1988 = vpop.permute.xlu0 %1987
        %1989 = vrot.lane.b32.xlu0 %v1313, 72
        %v1990 = vpop.permute.xlu0 %1989
        %v1992 = vsel %vm1318, %v1988, 0
        %v1995 = vsel %vm1318, %v1990, 0
        %1997 = vmatprep.subr.bf16.mxu0 0
        %1998 = vmatpush1.bf16.xpose.msra.mxu0 0
        %1999 = vmatprep.subr.bf16.mxu0 0
        %2000 = vmatpush1.bf16.xpose.msra.mxu0 0
        %2001 = vmatprep.subr.bf16.mxu0 0
        %2002 = vmatpush1.bf16.xpose.msra.mxu0 0
        %2003 = vmatprep.subr.bf16.mxu0 0
        %2004 = vmatpush1.bf16.xpose.msra.mxu0 0
        %2005 = vmatprep.subr.bf16.mxu0 0
        %2006 = vmatpush1.bf16.xpose.msra.mxu0 0
        %2007 = vmatprep.subr.bf16.mxu0 0
        %2008 = vmatpush1.bf16.xpose.msra.mxu0 0
        %2009 = vmatprep.subr.bf16.mxu0 0
        %2010 = vmatpush1.bf16.xpose.msra.mxu0 0
        %2011 = vmatprep.subr.bf16.mxu0 0
        %2012 = vmatpush1.bf16.xpose.msra.mxu0 %v1995
        %2013 = vmatprep.subr.bf16.mxu0 0
        %2014 = vmatpush2.bf16.xpose.msra.mxu0 0
        %2015 = vmatprep.subr.bf16.mxu0 0
        %2016 = vmatpush2.bf16.xpose.msra.mxu0 0
        %2017 = vmatprep.subr.bf16.mxu0 0
        %2018 = vmatpush2.bf16.xpose.msra.mxu0 0
        %2019 = vmatprep.subr.bf16.mxu0 0
        %2020 = vmatpush2.bf16.xpose.msra.mxu0 0
        %2021 = vmatprep.subr.bf16.mxu0 0
        %2022 = vmatpush2.bf16.xpose.msra.mxu0 0
        %2023 = vmatprep.subr.bf16.mxu0 0
        %2024 = vmatpush2.bf16.xpose.msra.mxu0 0
        %2025 = vmatprep.subr.bf16.mxu0 0
        %2026 = vmatpush2.bf16.xpose.msra.mxu0 0
        %2027 = vmatprep.subr.bf16.mxu0 0
        %2028 = vmatpush2.bf16.xpose.msra.mxu0 0
        %2029 = vmatprep.mubr.bf16.mxu0 0
        %2030 = vmatmul.mubr.bf16.gmra.mxu0 %v1992
        %v2031 = vpop.f32.mrf.mxu0
        %v2032 = vadd.f32 0.0, %v2031
        %v2033 = vpop.f32.mrf.mxu0
        %v2034 = vpop.f32.mrf.mxu0
        %v2035 = vpop.f32.mrf.mxu0
        %2036 = vdwg.mxu0
        %2037 = vrot.lane.b32.xlu0 %v1314, 104
        %v2038 = vpop.permute.xlu0 %2037
        %2039 = vrot.lane.b32.xlu0 %v1314, 72
        %v2040 = vpop.permute.xlu0 %2039
        %v2042 = vsel %vm1318, %v2038, 0
        %v2045 = vsel %vm1318, %v2040, 0
        %2047 = vmatprep.subr.bf16.mxu0 0
        %2048 = vmatpush1.bf16.xpose.msra.mxu0 0
        %2049 = vmatprep.subr.bf16.mxu0 0
        %2050 = vmatpush1.bf16.xpose.msra.mxu0 0
        %2051 = vmatprep.subr.bf16.mxu0 0
        %2052 = vmatpush1.bf16.xpose.msra.mxu0 0
        %2053 = vmatprep.subr.bf16.mxu0 0
        %2054 = vmatpush1.bf16.xpose.msra.mxu0 0
        %2055 = vmatprep.subr.bf16.mxu0 0
        %2056 = vmatpush1.bf16.xpose.msra.mxu0 0
        %2057 = vmatprep.subr.bf16.mxu0 0
        %2058 = vmatpush1.bf16.xpose.msra.mxu0 0
        %2059 = vmatprep.subr.bf16.mxu0 0
        %2060 = vmatpush1.bf16.xpose.msra.mxu0 0
        %2061 = vmatprep.subr.bf16.mxu0 0
        %2062 = vmatpush1.bf16.xpose.msra.mxu0 %v2045
        %2063 = vmatprep.subr.bf16.mxu0 0
        %2064 = vmatpush2.bf16.xpose.msra.mxu0 0
        %2065 = vmatprep.subr.bf16.mxu0 0
        %2066 = vmatpush2.bf16.xpose.msra.mxu0 0
        %2067 = vmatprep.subr.bf16.mxu0 0
        %2068 = vmatpush2.bf16.xpose.msra.mxu0 0
        %2069 = vmatprep.subr.bf16.mxu0 0
        %2070 = vmatpush2.bf16.xpose.msra.mxu0 0
        %2071 = vmatprep.subr.bf16.mxu0 0
        %2072 = vmatpush2.bf16.xpose.msra.mxu0 0
        %2073 = vmatprep.subr.bf16.mxu0 0
        %2074 = vmatpush2.bf16.xpose.msra.mxu0 0
        %2075 = vmatprep.subr.bf16.mxu0 0
        %2076 = vmatpush2.bf16.xpose.msra.mxu0 0
        %2077 = vmatprep.subr.bf16.mxu0 0
        %2078 = vmatpush2.bf16.xpose.msra.mxu0 0
        %2079 = vmatprep.mubr.bf16.mxu0 0
        %2080 = vmatmul.mubr.bf16.gmra.mxu0 %v2042
        %v2081 = vpop.f32.mrf.mxu0
        %v2082 = vadd.f32 0.0, %v2081
        %v2083 = vpop.f32.mrf.mxu0
        %v2084 = vpop.f32.mrf.mxu0
        %v2085 = vpop.f32.mrf.mxu0
        %2086 = vdwg.mxu0
        %v2087 = vmul.f32 %v2032, 0.35355338
        %v2088 = vmul.f32 %v2082, 0.35355338
        %v2089 = vadd.f32 %v2087, %v1241
        %v2090 = vadd.f32 %v2088, %v1241
        %v2091 = vsel %vm1318, %v2089, -inf
        %2092 = vmax.xlane.f32.xlu0 %v2091
        %v2093 = vpop.xlane.xlu0 %2092
        %v2094 = vsel %vm1318, %v2090, -inf
        %2095 = vmax.xlane.f32.xlu0 %v2094
        %v2096 = vpop.xlane.xlu0 %2095
        %v2097 = vsub.f32 %v2089, %v2093
        %v2098 = vsub.f32 %v2090, %v2096
        %v2099 = vmul.f32 %v2097, 1.442695
        %v2100 = vpow.pop %v2099
        %v2101 = vmul.f32 %v2098, 1.442695
        %v2102 = vpow.pop %v2101
        %v2103 = vsel %vm1318, %v2100, 0.0
        %2104 = vadd.xlane.f32.xlu0 %v2103
        %v2105 = vpop.xlane.xlu0 %2104
        %v2106 = vsel %vm1318, %v2102, 0.0
        %2107 = vadd.xlane.f32.xlu0 %v2106
        %v2108 = vpop.xlane.xlu0 %2107
        %v2109 = vrcp.pop %v2105
        %v2110 = vrcp.pop %v2108
        %v2111 = vmul.f32 %v2100, %v2109
        %v2112 = vmul.f32 %v2102, %v2110
        %v2113 = vpack.c.bf16 %v2111, %v2111
        %v2114 = vpack.c.bf16 %v2112, %v2112
        %2115 = vrot.lane.b32.xlu0 %v1313, 40
        %v2116 = vpop.permute.xlu0 %2115
        %v2118 = vsel %vm1318, %v2113, 0
        %v2121 = vsel %vm1447, %v2116, 0
        %2123 = vmatprep.subr.bf16.mxu0 0
        %2124 = vmatpush1.bf16.msra.mxu0 0
        %2125 = vmatprep.subr.bf16.mxu0 0
        %2126 = vmatpush1.bf16.msra.mxu0 0
        %2127 = vmatprep.subr.bf16.mxu0 0
        %2128 = vmatpush1.bf16.msra.mxu0 0
        %2129 = vmatprep.subr.bf16.mxu0 0
        %2130 = vmatpush1.bf16.msra.mxu0 0
        %2131 = vmatprep.subr.bf16.mxu0 0
        %2132 = vmatpush1.bf16.msra.mxu0 0
        %2133 = vmatprep.subr.bf16.mxu0 0
        %2134 = vmatpush1.bf16.msra.mxu0 0
        %2135 = vmatprep.subr.bf16.mxu0 0
        %2136 = vmatpush1.bf16.msra.mxu0 0
        %2137 = vmatprep.subr.bf16.mxu0 0
        %2138 = vmatpush1.bf16.msra.mxu0 %v2121
        %2139 = vmatprep.subr.bf16.mxu0 0
        %2140 = vmatpush2.bf16.msra.mxu0 0
        %2141 = vmatprep.subr.bf16.mxu0 0
        %2142 = vmatpush2.bf16.msra.mxu0 0
        %2143 = vmatprep.subr.bf16.mxu0 0
        %2144 = vmatpush2.bf16.msra.mxu0 0
        %2145 = vmatprep.subr.bf16.mxu0 0
        %2146 = vmatpush2.bf16.msra.mxu0 0
        %2147 = vmatprep.subr.bf16.mxu0 0
        %2148 = vmatpush2.bf16.msra.mxu0 0
        %2149 = vmatprep.subr.bf16.mxu0 0
        %2150 = vmatpush2.bf16.msra.mxu0 0
        %2151 = vmatprep.subr.bf16.mxu0 0
        %2152 = vmatpush2.bf16.msra.mxu0 0
        %2153 = vmatprep.subr.bf16.mxu0 0
        %2154 = vmatpush2.bf16.msra.mxu0 0
        %2155 = vmatprep.mubr.bf16.mxu0 0
        %2156 = vmatmul.mubr.bf16.gmra.mxu0 %v2118
        %v2157 = vpop.f32.mrf.mxu0
        %v2158 = vadd.f32 0.0, %v2157
        %v2159 = vpop.f32.mrf.mxu0
        %v2160 = vpop.f32.mrf.mxu0
        %v2161 = vpop.f32.mrf.mxu0
        %2162 = vdwg.mxu0
        %2163 = vrot.lane.b32.xlu0 %v1314, 40
        %v2164 = vpop.permute.xlu0 %2163
        %v2166 = vsel %vm1318, %v2114, 0
        %v2169 = vsel %vm1447, %v2164, 0
        %2171 = vmatprep.subr.bf16.mxu0 0
        %2172 = vmatpush1.bf16.msra.mxu0 0
        %2173 = vmatprep.subr.bf16.mxu0 0
        %2174 = vmatpush1.bf16.msra.mxu0 0
        %2175 = vmatprep.subr.bf16.mxu0 0
        %2176 = vmatpush1.bf16.msra.mxu0 0
        %2177 = vmatprep.subr.bf16.mxu0 0
        %2178 = vmatpush1.bf16.msra.mxu0 0
        %2179 = vmatprep.subr.bf16.mxu0 0
        %2180 = vmatpush1.bf16.msra.mxu0 0
        %2181 = vmatprep.subr.bf16.mxu0 0
        %2182 = vmatpush1.bf16.msra.mxu0 0
        %2183 = vmatprep.subr.bf16.mxu0 0
        %2184 = vmatpush1.bf16.msra.mxu0 0
        %2185 = vmatprep.subr.bf16.mxu0 0
        %2186 = vmatpush1.bf16.msra.mxu0 %v2169
        %2187 = vmatprep.subr.bf16.mxu0 0
        %2188 = vmatpush2.bf16.msra.mxu0 0
        %2189 = vmatprep.subr.bf16.mxu0 0
        %2190 = vmatpush2.bf16.msra.mxu0 0
        %2191 = vmatprep.subr.bf16.mxu0 0
        %2192 = vmatpush2.bf16.msra.mxu0 0
        %2193 = vmatprep.subr.bf16.mxu0 0
        %2194 = vmatpush2.bf16.msra.mxu0 0
        %2195 = vmatprep.subr.bf16.mxu0 0
        %2196 = vmatpush2.bf16.msra.mxu0 0
        %2197 = vmatprep.subr.bf16.mxu0 0
        %2198 = vmatpush2.bf16.msra.mxu0 0
        %2199 = vmatprep.subr.bf16.mxu0 0
        %2200 = vmatpush2.bf16.msra.mxu0 0
        %2201 = vmatprep.subr.bf16.mxu0 0
        %2202 = vmatpush2.bf16.msra.mxu0 0
        %2203 = vmatprep.mubr.bf16.mxu0 0
        %2204 = vmatmul.mubr.bf16.gmra.mxu0 %v2166
        %v2205 = vpop.f32.mrf.mxu0
        %v2206 = vadd.f32 0.0, %v2205
        %v2207 = vpop.f32.mrf.mxu0
        %v2208 = vpop.f32.mrf.mxu0
        %v2209 = vpop.f32.mrf.mxu0
        %2210 = vdwg.mxu0
        %2213 = vrot.lane.b32.xlu0 %v1710, 8
        %v2214 = vpop.permute.xlu0 %2213
        %2215 = vrot.lane.b32.xlu0 %v1758, 8
        %v2216 = vpop.permute.xlu0 %2215
        %2221 = vrot.lane.b32.xlu0 %v1934, 16
        %v2222 = vpop.permute.xlu0 %2221
        %2223 = vrot.lane.b32.xlu0 %v1982, 16
        %v2224 = vpop.permute.xlu0 %2223
        %2229 = vrot.lane.b32.xlu0 %v2158, 24
        %v2230 = vpop.permute.xlu0 %2229
        %2231 = vrot.lane.b32.xlu0 %v2206, 24
        %v2232 = vpop.permute.xlu0 %2231
        %v2235 = vsel %vm1318, %v1486, %v2214
        %v2236 = vsel %vm1318, %v1534, %v2216
        %vm2237 = vcmask 130048
        %v2238 = vsel %vm2237, %v2235, %v2222
        %v2239 = vsel %vm2237, %v2236, %v2224
        %vm2240 = vcmask 195584
        %v2241 = vsel %vm2240, %v2238, %v2230
        %v2242 = vsel %vm2240, %v2239, %v2232
        %v2243 = vpack.c.bf16 %v2242, %v2241
        %v2244 = vld [vmem:[%s1204] sm:$0xf]
        %v2245 = vld [vmem:[%s1204 + $0x4] sm:$0xf]
        %v2246 = vld [vmem:[%s1204 + $0x8] sm:$0xf]
        %v2247 = vld [vmem:[%s1204 + $0xc] sm:$0xf]
        %v2248 = vld [vmem:[%s992] sm:$0x1]
        %v2250 = vlaneseq
        %v2251 = vshrl.u32 %v2250, 7
        %v2252 = vsub.s32 0, %v2251
        %v2253 = vrot.slane %v2248, %v2252
        %v2259 = vunpack.c.l.b16 %v2244
        %v2260 = vunpack.c.l.b16 %v2245
        %v2261 = vunpack.c.l.b16 %v2246
        %v2262 = vunpack.c.l.b16 %v2247
        %v2263 = vpack.c.b16 %v2260, %v2259
        %v2264 = vpack.c.b16 %v2262, %v2261
        %v2268 = vsel %vm1268, %v2243, 0
        %2270 = vmatprep.subr.bf16.mxu0 0
        %2271 = vmatpush1.bf16.msra.mxu0 0
        %2272 = vmatprep.subr.bf16.mxu0 0
        %2273 = vmatpush1.bf16.msra.mxu0 0
        %2274 = vmatprep.subr.bf16.mxu0 0
        %2275 = vmatpush1.bf16.msra.mxu0 0
        %2276 = vmatprep.subr.bf16.mxu0 0
        %2277 = vmatpush1.bf16.msra.mxu0 0
        %2278 = vmatprep.subr.bf16.mxu0 0
        %2279 = vmatpush1.bf16.msra.mxu0 0
        %2280 = vmatprep.subr.bf16.mxu0 0
        %2281 = vmatpush1.bf16.msra.mxu0 0
        %2282 = vmatprep.subr.bf16.mxu0 0
        %2283 = vmatpush1.bf16.msra.mxu0 %v2264
        %2284 = vmatprep.subr.bf16.mxu0 0
        %2285 = vmatpush1.bf16.msra.mxu0 %v2263
        %2286 = vmatprep.subr.bf16.mxu0 0
        %2287 = vmatpush2.bf16.msra.mxu0 0
        %2288 = vmatprep.subr.bf16.mxu0 0
        %2289 = vmatpush2.bf16.msra.mxu0 0
        %2290 = vmatprep.subr.bf16.mxu0 0
        %2291 = vmatpush2.bf16.msra.mxu0 0
        %2292 = vmatprep.subr.bf16.mxu0 0
        %2293 = vmatpush2.bf16.msra.mxu0 0
        %2294 = vmatprep.subr.bf16.mxu0 0
        %2295 = vmatpush2.bf16.msra.mxu0 0
        %2296 = vmatprep.subr.bf16.mxu0 0
        %2297 = vmatpush2.bf16.msra.mxu0 0
        %2298 = vmatprep.subr.bf16.mxu0 0
        %2299 = vmatpush2.bf16.msra.mxu0 0
        %2300 = vmatprep.subr.bf16.mxu0 0
        %2301 = vmatpush2.bf16.msra.mxu0 0
        %2302 = vmatprep.mubr.bf16.mxu0 0
        %2303 = vmatmul.mubr.bf16.gmra.mxu0 %v2268
        %v2304 = vpop.f32.mrf.mxu0
        %v2305 = vadd.f32 %v2253, %v2304
        %v2306 = vpop.f32.mrf.mxu0
        %v2307 = vpop.f32.mrf.mxu0
        %v2308 = vadd.f32 %v2253, %v2307
        %v2309 = vpop.f32.mrf.mxu0
        %2310 = vdwg.mxu0
        %v2311 = vadd.f32 %v1237, %v2305
        %v2312 = vadd.f32 %v1238, %v2308
        %v2313 = vsel %vm1268, %v2311, 0.0
        %2314 = vadd.xlane.f32.xlu0 %v2313
        %v2315 = vpop.xlane.xlu0 %2314
        %v2316 = vsel %vm1268, %v2312, 0.0
        %2317 = vadd.xlane.f32.xlu0 %v2316
        %v2318 = vpop.xlane.xlu0 %2317
        %v2319 = vrcp.pop 32.0
        %v2320 = vmul.f32 %v2315, %v2319
        %v2321 = vmul.f32 %v2318, %v2319
        %v2322 = vsub.f32 %v2311, %v2320
        %v2323 = vsub.f32 %v2312, %v2321
        %v2324 = vmul.f32 %v2322, %v2322
        %v2325 = vmul.f32 %v2323, %v2323
        %v2326 = vsel %vm1268, %v2324, 0.0
        %2327 = vadd.xlane.f32.xlu0 %v2326
        %v2328 = vpop.xlane.xlu0 %2327
        %v2329 = vsel %vm1268, %v2325, 0.0
        %2330 = vadd.xlane.f32.xlu0 %v2329
        %v2331 = vpop.xlane.xlu0 %2330
        %v2332 = vmul.f32 %v2328, %v2319
        %v2333 = vmul.f32 %v2331, %v2319
        %v2334 = vadd.f32 %v2332, 1e-05
        %v2335 = vadd.f32 %v2333, 1e-05
        %v2336 = vrsqrt.pop %v2334
        %v2337 = vrsqrt.pop %v2335
        %v2338 = vmul.f32 %v2322, %v2336
        %v2339 = vmul.f32 %v2323, %v2337
        %v2340 = vld [vmem:[%s1025] sm:$0x1]
        %v2342 = vlaneseq
        %v2343 = vshrl.u32 %v2342, 7
        %v2344 = vsub.s32 0, %v2343
        %v2345 = vrot.slane %v2340, %v2344
        %v2347 = vmul.f32 %v2338, %v2345
        %v2348 = vmul.f32 %v2339, %v2345
        %v2349 = vld [vmem:[%s1033] sm:$0x1]
        %v2351 = vlaneseq
        %v2352 = vshrl.u32 %v2351, 7
        %v2353 = vsub.s32 0, %v2352
        %v2354 = vrot.slane %v2349, %v2353
        %v2356 = vadd.f32 %v2347, %v2354
        %v2357 = vadd.f32 %v2348, %v2354
        %v2358 = vld [vmem:[%s1209] sm:$0xf]
        %v2359 = vld [vmem:[%s1209 + $0x4] sm:$0xf]
        %v2360 = vld [vmem:[%s1209 + $0x8] sm:$0xf]
        %v2361 = vld [vmem:[%s1209 + $0xc] sm:$0xf]
        %v2362 = vpack.c.bf16 %v2357, %v2356
        %v2363 = vld [vmem:[%s1000] sm:$0x1]
        %v2365 = vlaneseq
        %v2366 = vshrl.u32 %v2365, 7
        %v2367 = vsub.s32 0, %v2366
        %v2368 = vrot.slane %v2363, %v2367
        %v2374 = vunpack.c.l.b16 %v2358
        %v2375 = vunpack.c.l.b16 %v2359
        %v2376 = vunpack.c.l.b16 %v2360
        %v2377 = vunpack.c.l.b16 %v2361
        %v2378 = vpack.c.b16 %v2375, %v2374
        %v2379 = vpack.c.b16 %v2377, %v2376
        %v2383 = vsel %vm1268, %v2362, 0
        %2385 = vmatprep.subr.bf16.mxu0 0
        %2386 = vmatpush1.bf16.msra.mxu0 0
        %2387 = vmatprep.subr.bf16.mxu0 0
        %2388 = vmatpush1.bf16.msra.mxu0 0
        %2389 = vmatprep.subr.bf16.mxu0 0
        %2390 = vmatpush1.bf16.msra.mxu0 0
        %2391 = vmatprep.subr.bf16.mxu0 0
        %2392 = vmatpush1.bf16.msra.mxu0 0
        %2393 = vmatprep.subr.bf16.mxu0 0
        %2394 = vmatpush1.bf16.msra.mxu0 0
        %2395 = vmatprep.subr.bf16.mxu0 0
        %2396 = vmatpush1.bf16.msra.mxu0 0
        %2397 = vmatprep.subr.bf16.mxu0 0
        %2398 = vmatpush1.bf16.msra.mxu0 %v2379
        %2399 = vmatprep.subr.bf16.mxu0 0
        %2400 = vmatpush1.bf16.msra.mxu0 %v2378
        %2401 = vmatprep.subr.bf16.mxu0 0
        %2402 = vmatpush2.bf16.msra.mxu0 0
        %2403 = vmatprep.subr.bf16.mxu0 0
        %2404 = vmatpush2.bf16.msra.mxu0 0
        %2405 = vmatprep.subr.bf16.mxu0 0
        %2406 = vmatpush2.bf16.msra.mxu0 0
        %2407 = vmatprep.subr.bf16.mxu0 0
        %2408 = vmatpush2.bf16.msra.mxu0 0
        %2409 = vmatprep.subr.bf16.mxu0 0
        %2410 = vmatpush2.bf16.msra.mxu0 0
        %2411 = vmatprep.subr.bf16.mxu0 0
        %2412 = vmatpush2.bf16.msra.mxu0 0
        %2413 = vmatprep.subr.bf16.mxu0 0
        %2414 = vmatpush2.bf16.msra.mxu0 0
        %2415 = vmatprep.subr.bf16.mxu0 0
        %2416 = vmatpush2.bf16.msra.mxu0 0
        %2417 = vmatprep.mubr.bf16.mxu0 0
        %2418 = vmatmul.mubr.bf16.gmra.mxu0 %v2383
        %v2419 = vpop.f32.mrf.mxu0
        %v2420 = vadd.f32 %v2368, %v2419
        %v2421 = vpop.f32.mrf.mxu0
        %v2422 = vpop.f32.mrf.mxu0
        %v2423 = vadd.f32 %v2368, %v2422
        %v2424 = vpop.f32.mrf.mxu0
        %2425 = vdwg.mxu0
        %v2426 = vpack.c.bf16 %v1240, %v1239
        %2427 = vrot.lane.b32.xlu0 %v2378, 96
        %v2428 = vpop.permute.xlu0 %2427
        %2429 = vrot.lane.b32.xlu0 %v2379, 96
        %v2430 = vpop.permute.xlu0 %2429
        %2433 = vrot.lane.b32.xlu0 %v2368, 96
        %v2434 = vpop.permute.xlu0 %2433
        %v2437 = vsel %vm1268, %v2426, 0
        %2439 = vmatprep.subr.bf16.mxu0 0
        %2440 = vmatpush1.bf16.msra.mxu0 0
        %2441 = vmatprep.subr.bf16.mxu0 0
        %2442 = vmatpush1.bf16.msra.mxu0 0
        %2443 = vmatprep.subr.bf16.mxu0 0
        %2444 = vmatpush1.bf16.msra.mxu0 0
        %2445 = vmatprep.subr.bf16.mxu0 0
        %2446 = vmatpush1.bf16.msra.mxu0 0
        %2447 = vmatprep.subr.bf16.mxu0 0
        %2448 = vmatpush1.bf16.msra.mxu0 0
        %2449 = vmatprep.subr.bf16.mxu0 0
        %2450 = vmatpush1.bf16.msra.mxu0 0
        %2451 = vmatprep.subr.bf16.mxu0 0
        %2452 = vmatpush1.bf16.msra.mxu0 %v2430
        %2453 = vmatprep.subr.bf16.mxu0 0
        %2454 = vmatpush1.bf16.msra.mxu0 %v2428
        %2455 = vmatprep.subr.bf16.mxu0 0
        %2456 = vmatpush2.bf16.msra.mxu0 0
        %2457 = vmatprep.subr.bf16.mxu0 0
        %2458 = vmatpush2.bf16.msra.mxu0 0
        %2459 = vmatprep.subr.bf16.mxu0 0
        %2460 = vmatpush2.bf16.msra.mxu0 0
        %2461 = vmatprep.subr.bf16.mxu0 0
        %2462 = vmatpush2.bf16.msra.mxu0 0
        %2463 = vmatprep.subr.bf16.mxu0 0
        %2464 = vmatpush2.bf16.msra.mxu0 0
        %2465 = vmatprep.subr.bf16.mxu0 0
        %2466 = vmatpush2.bf16.msra.mxu0 0
        %2467 = vmatprep.subr.bf16.mxu0 0
        %2468 = vmatpush2.bf16.msra.mxu0 0
        %2469 = vmatprep.subr.bf16.mxu0 0
        %2470 = vmatpush2.bf16.msra.mxu0 0
        %2471 = vmatprep.mubr.bf16.mxu0 0
        %2472 = vmatmul.mubr.bf16.gmra.mxu0 %v2437
        %v2473 = vpop.f32.mrf.mxu0
        %v2474 = vadd.f32 %v2434, %v2473
        %v2475 = vpop.f32.mrf.mxu0
        %v2476 = vpop.f32.mrf.mxu0
        %v2477 = vadd.f32 %v2434, %v2476
        %v2478 = vpop.f32.mrf.mxu0
        %2479 = vdwg.mxu0
        %v2480 = vpack.c.bf16 %v2420, %v2420
        %v2481 = vpack.c.bf16 %v2423, %v2423
        %v2482 = vpack.c.bf16 %v2474, %v2474
        %v2483 = vpack.c.bf16 %v2477, %v2477
        %v2485 = vsel %vm1318, %v2480, 0
        %v2488 = vsel %vm1318, %v2482, 0
        %2490 = vmatprep.subr.bf16.mxu0 0
        %2491 = vmatpush1.bf16.xpose.msra.mxu0 0
        %2492 = vmatprep.subr.bf16.mxu0 0
        %2493 = vmatpush1.bf16.xpose.msra.mxu0 0
        %2494 = vmatprep.subr.bf16.mxu0 0
        %2495 = vmatpush1.bf16.xpose.msra.mxu0 0
        %2496 = vmatprep.subr.bf16.mxu0 0
        %2497 = vmatpush1.bf16.xpose.msra.mxu0 0
        %2498 = vmatprep.subr.bf16.mxu0 0
        %2499 = vmatpush1.bf16.xpose.msra.mxu0 0
        %2500 = vmatprep.subr.bf16.mxu0 0
        %2501 = vmatpush1.bf16.xpose.msra.mxu0 0
        %2502 = vmatprep.subr.bf16.mxu0 0
        %2503 = vmatpush1.bf16.xpose.msra.mxu0 0
        %2504 = vmatprep.subr.bf16.mxu0 0
        %2505 = vmatpush1.bf16.xpose.msra.mxu0 %v2488
        %2506 = vmatprep.subr.bf16.mxu0 0
        %2507 = vmatpush2.bf16.xpose.msra.mxu0 0
        %2508 = vmatprep.subr.bf16.mxu0 0
        %2509 = vmatpush2.bf16.xpose.msra.mxu0 0
        %2510 = vmatprep.subr.bf16.mxu0 0
        %2511 = vmatpush2.bf16.xpose.msra.mxu0 0
        %2512 = vmatprep.subr.bf16.mxu0 0
        %2513 = vmatpush2.bf16.xpose.msra.mxu0 0
        %2514 = vmatprep.subr.bf16.mxu0 0
        %2515 = vmatpush2.bf16.xpose.msra.mxu0 0
        %2516 = vmatprep.subr.bf16.mxu0 0
        %2517 = vmatpush2.bf16.xpose.msra.mxu0 0
        %2518 = vmatprep.subr.bf16.mxu0 0
        %2519 = vmatpush2.bf16.xpose.msra.mxu0 0
        %2520 = vmatprep.subr.bf16.mxu0 0
        %2521 = vmatpush2.bf16.xpose.msra.mxu0 0
        %2522 = vmatprep.mubr.bf16.mxu0 0
        %2523 = vmatmul.mubr.bf16.gmra.mxu0 %v2485
        %v2524 = vpop.f32.mrf.mxu0
        %v2525 = vadd.f32 0.0, %v2524
        %v2526 = vpop.f32.mrf.mxu0
        %v2527 = vpop.f32.mrf.mxu0
        %v2528 = vpop.f32.mrf.mxu0
        %2529 = vdwg.mxu0
        %v2531 = vsel %vm1318, %v2481, 0
        %v2534 = vsel %vm1318, %v2483, 0
        %2536 = vmatprep.subr.bf16.mxu0 0
        %2537 = vmatpush1.bf16.xpose.msra.mxu0 0
        %2538 = vmatprep.subr.bf16.mxu0 0
        %2539 = vmatpush1.bf16.xpose.msra.mxu0 0
        %2540 = vmatprep.subr.bf16.mxu0 0
        %2541 = vmatpush1.bf16.xpose.msra.mxu0 0
        %2542 = vmatprep.subr.bf16.mxu0 0
        %2543 = vmatpush1.bf16.xpose.msra.mxu0 0
        %2544 = vmatprep.subr.bf16.mxu0 0
        %2545 = vmatpush1.bf16.xpose.msra.mxu0 0
        %2546 = vmatprep.subr.bf16.mxu0 0
        %2547 = vmatpush1.bf16.xpose.msra.mxu0 0
        %2548 = vmatprep.subr.bf16.mxu0 0
        %2549 = vmatpush1.bf16.xpose.msra.mxu0 0
        %2550 = vmatprep.subr.bf16.mxu0 0
        %2551 = vmatpush1.bf16.xpose.msra.mxu0 %v2534
        %2552 = vmatprep.subr.bf16.mxu0 0
        %2553 = vmatpush2.bf16.xpose.msra.mxu0 0
        %2554 = vmatprep.subr.bf16.mxu0 0
        %2555 = vmatpush2.bf16.xpose.msra.mxu0 0
        %2556 = vmatprep.subr.bf16.mxu0 0
        %2557 = vmatpush2.bf16.xpose.msra.mxu0 0
        %2558 = vmatprep.subr.bf16.mxu0 0
        %2559 = vmatpush2.bf16.xpose.msra.mxu0 0
        %2560 = vmatprep.subr.bf16.mxu0 0
        %2561 = vmatpush2.bf16.xpose.msra.mxu0 0
        %2562 = vmatprep.subr.bf16.mxu0 0
        %2563 = vmatpush2.bf16.xpose.msra.mxu0 0
        %2564 = vmatprep.subr.bf16.mxu0 0
        %2565 = vmatpush2.bf16.xpose.msra.mxu0 0
        %2566 = vmatprep.subr.bf16.mxu0 0
        %2567 = vmatpush2.bf16.xpose.msra.mxu0 0
        %2568 = vmatprep.mubr.bf16.mxu0 0
        %2569 = vmatmul.mubr.bf16.gmra.mxu0 %v2531
        %v2570 = vpop.f32.mrf.mxu0
        %v2571 = vadd.f32 0.0, %v2570
        %v2572 = vpop.f32.mrf.mxu0
        %v2573 = vpop.f32.mrf.mxu0
        %v2574 = vpop.f32.mrf.mxu0
        %2575 = vdwg.mxu0
        %v2576 = vmul.f32 %v2525, 0.35355338
        %v2577 = vmul.f32 %v2571, 0.35355338
        %v2580 = vlaneseq
        %v2581 = vshrl.u32 %v2580, 7
        %v2582 = vsub.s32 0, %v2581
        %v2583 = vrot.slane %v1242, %v2582
        %v2584 = vlaneseq
        %v2585 = vshrl.u32 %v2584, 7
        %v2586 = vsub.s32 0, %v2585
        %v2587 = vrot.slane %v1243, %v2586
        %v2590 = vadd.f32 %v2576, %v2583
        %v2591 = vadd.f32 %v2577, %v2587
        %v2592 = vsel %vm1318, %v2590, -inf
        %2593 = vmax.xlane.f32.xlu0 %v2592
        %v2594 = vpop.xlane.xlu0 %2593
        %v2595 = vsel %vm1318, %v2591, -inf
        %2596 = vmax.xlane.f32.xlu0 %v2595
        %v2597 = vpop.xlane.xlu0 %2596
        %v2598 = vsub.f32 %v2590, %v2594
        %v2599 = vsub.f32 %v2591, %v2597
        %v2600 = vmul.f32 %v2598, 1.442695
        %v2601 = vpow.pop %v2600
        %v2602 = vmul.f32 %v2599, 1.442695
        %v2603 = vpow.pop %v2602
        %v2604 = vsel %vm1318, %v2601, 0.0
        %2605 = vadd.xlane.f32.xlu0 %v2604
        %v2606 = vpop.xlane.xlu0 %2605
        %v2607 = vsel %vm1318, %v2603, 0.0
        %2608 = vadd.xlane.f32.xlu0 %v2607
        %v2609 = vpop.xlane.xlu0 %2608
        %v2610 = vrcp.pop %v2606
        %v2611 = vrcp.pop %v2609
        %v2612 = vmul.f32 %v2601, %v2610
        %v2613 = vmul.f32 %v2603, %v2611
        %v2614 = vpack.c.bf16 %v2612, %v2612
        %v2615 = vpack.c.bf16 %v2613, %v2613
        %2617 = vrot.lane.b32.xlu0 %v2482, 96
        %v2618 = vpop.permute.xlu0 %2617
        %v2620 = vsel %vm1318, %v2614, 0
        %v2623 = vsel %vm1447, %v2618, 0
        %2625 = vmatprep.subr.bf16.mxu0 0
        %2626 = vmatpush1.bf16.msra.mxu0 0
        %2627 = vmatprep.subr.bf16.mxu0 0
        %2628 = vmatpush1.bf16.msra.mxu0 0
        %2629 = vmatprep.subr.bf16.mxu0 0
        %2630 = vmatpush1.bf16.msra.mxu0 0
        %2631 = vmatprep.subr.bf16.mxu0 0
        %2632 = vmatpush1.bf16.msra.mxu0 0
        %2633 = vmatprep.subr.bf16.mxu0 0
        %2634 = vmatpush1.bf16.msra.mxu0 0
        %2635 = vmatprep.subr.bf16.mxu0 0
        %2636 = vmatpush1.bf16.msra.mxu0 0
        %2637 = vmatprep.subr.bf16.mxu0 0
        %2638 = vmatpush1.bf16.msra.mxu0 0
        %2639 = vmatprep.subr.bf16.mxu0 0
        %2640 = vmatpush1.bf16.msra.mxu0 %v2623
        %2641 = vmatprep.subr.bf16.mxu0 0
        %2642 = vmatpush2.bf16.msra.mxu0 0
        %2643 = vmatprep.subr.bf16.mxu0 0
        %2644 = vmatpush2.bf16.msra.mxu0 0
        %2645 = vmatprep.subr.bf16.mxu0 0
        %2646 = vmatpush2.bf16.msra.mxu0 0
        %2647 = vmatprep.subr.bf16.mxu0 0
        %2648 = vmatpush2.bf16.msra.mxu0 0
        %2649 = vmatprep.subr.bf16.mxu0 0
        %2650 = vmatpush2.bf16.msra.mxu0 0
        %2651 = vmatprep.subr.bf16.mxu0 0
        %2652 = vmatpush2.bf16.msra.mxu0 0
        %2653 = vmatprep.subr.bf16.mxu0 0
        %2654 = vmatpush2.bf16.msra.mxu0 0
        %2655 = vmatprep.subr.bf16.mxu0 0
        %2656 = vmatpush2.bf16.msra.mxu0 0
        %2657 = vmatprep.mubr.bf16.mxu0 0
        %2658 = vmatmul.mubr.bf16.gmra.mxu0 %v2620
        %v2659 = vpop.f32.mrf.mxu0
        %v2660 = vadd.f32 0.0, %v2659
        %v2661 = vpop.f32.mrf.mxu0
        %v2662 = vpop.f32.mrf.mxu0
        %v2663 = vpop.f32.mrf.mxu0
        %2664 = vdwg.mxu0
        %2666 = vrot.lane.b32.xlu0 %v2483, 96
        %v2667 = vpop.permute.xlu0 %2666
        %v2669 = vsel %vm1318, %v2615, 0
        %v2672 = vsel %vm1447, %v2667, 0
        %2674 = vmatprep.subr.bf16.mxu0 0
        %2675 = vmatpush1.bf16.msra.mxu0 0
        %2676 = vmatprep.subr.bf16.mxu0 0
        %2677 = vmatpush1.bf16.msra.mxu0 0
        %2678 = vmatprep.subr.bf16.mxu0 0
        %2679 = vmatpush1.bf16.msra.mxu0 0
        %2680 = vmatprep.subr.bf16.mxu0 0
        %2681 = vmatpush1.bf16.msra.mxu0 0
        %2682 = vmatprep.subr.bf16.mxu0 0
        %2683 = vmatpush1.bf16.msra.mxu0 0
        %2684 = vmatprep.subr.bf16.mxu0 0
        %2685 = vmatpush1.bf16.msra.mxu0 0
        %2686 = vmatprep.subr.bf16.mxu0 0
        %2687 = vmatpush1.bf16.msra.mxu0 0
        %2688 = vmatprep.subr.bf16.mxu0 0
        %2689 = vmatpush1.bf16.msra.mxu0 %v2672
        %2690 = vmatprep.subr.bf16.mxu0 0
        %2691 = vmatpush2.bf16.msra.mxu0 0
        %2692 = vmatprep.subr.bf16.mxu0 0
        %2693 = vmatpush2.bf16.msra.mxu0 0
        %2694 = vmatprep.subr.bf16.mxu0 0
        %2695 = vmatpush2.bf16.msra.mxu0 0
        %2696 = vmatprep.subr.bf16.mxu0 0
        %2697 = vmatpush2.bf16.msra.mxu0 0
        %2698 = vmatprep.subr.bf16.mxu0 0
        %2699 = vmatpush2.bf16.msra.mxu0 0
        %2700 = vmatprep.subr.bf16.mxu0 0
        %2701 = vmatpush2.bf16.msra.mxu0 0
        %2702 = vmatprep.subr.bf16.mxu0 0
        %2703 = vmatpush2.bf16.msra.mxu0 0
        %2704 = vmatprep.subr.bf16.mxu0 0
        %2705 = vmatpush2.bf16.msra.mxu0 0
        %2706 = vmatprep.mubr.bf16.mxu0 0
        %2707 = vmatmul.mubr.bf16.gmra.mxu0 %v2669
        %v2708 = vpop.f32.mrf.mxu0
        %v2709 = vadd.f32 0.0, %v2708
        %v2710 = vpop.f32.mrf.mxu0
        %v2711 = vpop.f32.mrf.mxu0
        %v2712 = vpop.f32.mrf.mxu0
        %2713 = vdwg.mxu0
        %2715 = vrot.lane.b32.xlu0 %v2480, 120
        %v2716 = vpop.permute.xlu0 %2715
        %2717 = vrot.lane.b32.xlu0 %v2482, 120
        %v2718 = vpop.permute.xlu0 %2717
        %v2720 = vsel %vm1318, %v2716, 0
        %v2723 = vsel %vm1318, %v2718, 0
        %2725 = vmatprep.subr.bf16.mxu0 0
        %2726 = vmatpush1.bf16.xpose.msra.mxu0 0
        %2727 = vmatprep.subr.bf16.mxu0 0
        %2728 = vmatpush1.bf16.xpose.msra.mxu0 0
        %2729 = vmatprep.subr.bf16.mxu0 0
        %2730 = vmatpush1.bf16.xpose.msra.mxu0 0
        %2731 = vmatprep.subr.bf16.mxu0 0
        %2732 = vmatpush1.bf16.xpose.msra.mxu0 0
        %2733 = vmatprep.subr.bf16.mxu0 0
        %2734 = vmatpush1.bf16.xpose.msra.mxu0 0
        %2735 = vmatprep.subr.bf16.mxu0 0
        %2736 = vmatpush1.bf16.xpose.msra.mxu0 0
        %2737 = vmatprep.subr.bf16.mxu0 0
        %2738 = vmatpush1.bf16.xpose.msra.mxu0 0
        %2739 = vmatprep.subr.bf16.mxu0 0
        %2740 = vmatpush1.bf16.xpose.msra.mxu0 %v2723
        %2741 = vmatprep.subr.bf16.mxu0 0
        %2742 = vmatpush2.bf16.xpose.msra.mxu0 0
        %2743 = vmatprep.subr.bf16.mxu0 0
        %2744 = vmatpush2.bf16.xpose.msra.mxu0 0
        %2745 = vmatprep.subr.bf16.mxu0 0
        %2746 = vmatpush2.bf16.xpose.msra.mxu0 0
        %2747 = vmatprep.subr.bf16.mxu0 0
        %2748 = vmatpush2.bf16.xpose.msra.mxu0 0
        %2749 = vmatprep.subr.bf16.mxu0 0
        %2750 = vmatpush2.bf16.xpose.msra.mxu0 0
        %2751 = vmatprep.subr.bf16.mxu0 0
        %2752 = vmatpush2.bf16.xpose.msra.mxu0 0
        %2753 = vmatprep.subr.bf16.mxu0 0
        %2754 = vmatpush2.bf16.xpose.msra.mxu0 0
        %2755 = vmatprep.subr.bf16.mxu0 0
        %2756 = vmatpush2.bf16.xpose.msra.mxu0 0
        %2757 = vmatprep.mubr.bf16.mxu0 0
        %2758 = vmatmul.mubr.bf16.gmra.mxu0 %v2720
        %v2759 = vpop.f32.mrf.mxu0
        %v2760 = vadd.f32 0.0, %v2759
        %v2761 = vpop.f32.mrf.mxu0
        %v2762 = vpop.f32.mrf.mxu0
        %v2763 = vpop.f32.mrf.mxu0
        %2764 = vdwg.mxu0
        %2766 = vrot.lane.b32.xlu0 %v2481, 120
        %v2767 = vpop.permute.xlu0 %2766
        %2768 = vrot.lane.b32.xlu0 %v2483, 120
        %v2769 = vpop.permute.xlu0 %2768
        %v2771 = vsel %vm1318, %v2767, 0
        %v2774 = vsel %vm1318, %v2769, 0
        %2776 = vmatprep.subr.bf16.mxu0 0
        %2777 = vmatpush1.bf16.xpose.msra.mxu0 0
        %2778 = vmatprep.subr.bf16.mxu0 0
        %2779 = vmatpush1.bf16.xpose.msra.mxu0 0
        %2780 = vmatprep.subr.bf16.mxu0 0
        %2781 = vmatpush1.bf16.xpose.msra.mxu0 0
        %2782 = vmatprep.subr.bf16.mxu0 0
        %2783 = vmatpush1.bf16.xpose.msra.mxu0 0
        %2784 = vmatprep.subr.bf16.mxu0 0
        %2785 = vmatpush1.bf16.xpose.msra.mxu0 0
        %2786 = vmatprep.subr.bf16.mxu0 0
        %2787 = vmatpush1.bf16.xpose.msra.mxu0 0
        %2788 = vmatprep.subr.bf16.mxu0 0
        %2789 = vmatpush1.bf16.xpose.msra.mxu0 0
        %2790 = vmatprep.subr.bf16.mxu0 0
        %2791 = vmatpush1.bf16.xpose.msra.mxu0 %v2774
        %2792 = vmatprep.subr.bf16.mxu0 0
        %2793 = vmatpush2.bf16.xpose.msra.mxu0 0
        %2794 = vmatprep.subr.bf16.mxu0 0
        %2795 = vmatpush2.bf16.xpose.msra.mxu0 0
        %2796 = vmatprep.subr.bf16.mxu0 0
        %2797 = vmatpush2.bf16.xpose.msra.mxu0 0
        %2798 = vmatprep.subr.bf16.mxu0 0
        %2799 = vmatpush2.bf16.xpose.msra.mxu0 0
        %2800 = vmatprep.subr.bf16.mxu0 0
        %2801 = vmatpush2.bf16.xpose.msra.mxu0 0
        %2802 = vmatprep.subr.bf16.mxu0 0
        %2803 = vmatpush2.bf16.xpose.msra.mxu0 0
        %2804 = vmatprep.subr.bf16.mxu0 0
        %2805 = vmatpush2.bf16.xpose.msra.mxu0 0
        %2806 = vmatprep.subr.bf16.mxu0 0
        %2807 = vmatpush2.bf16.xpose.msra.mxu0 0
        %2808 = vmatprep.mubr.bf16.mxu0 0
        %2809 = vmatmul.mubr.bf16.gmra.mxu0 %v2771
        %v2810 = vpop.f32.mrf.mxu0
        %v2811 = vadd.f32 0.0, %v2810
        %v2812 = vpop.f32.mrf.mxu0
        %v2813 = vpop.f32.mrf.mxu0
        %v2814 = vpop.f32.mrf.mxu0
        %2815 = vdwg.mxu0
        %v2816 = vmul.f32 %v2760, 0.35355338
        %v2817 = vmul.f32 %v2811, 0.35355338
        %v2818 = vadd.f32 %v2816, %v2583
        %v2819 = vadd.f32 %v2817, %v2587
        %v2820 = vsel %vm1318, %v2818, -inf
        %2821 = vmax.xlane.f32.xlu0 %v2820
        %v2822 = vpop.xlane.xlu0 %2821
        %v2823 = vsel %vm1318, %v2819, -inf
        %2824 = vmax.xlane.f32.xlu0 %v2823
        %v2825 = vpop.xlane.xlu0 %2824
        %v2826 = vsub.f32 %v2818, %v2822
        %v2827 = vsub.f32 %v2819, %v2825
        %v2828 = vmul.f32 %v2826, 1.442695
        %v2829 = vpow.pop %v2828
        %v2830 = vmul.f32 %v2827, 1.442695
        %v2831 = vpow.pop %v2830
        %v2832 = vsel %vm1318, %v2829, 0.0
        %2833 = vadd.xlane.f32.xlu0 %v2832
        %v2834 = vpop.xlane.xlu0 %2833
        %v2835 = vsel %vm1318, %v2831, 0.0
        %2836 = vadd.xlane.f32.xlu0 %v2835
        %v2837 = vpop.xlane.xlu0 %2836
        %v2838 = vrcp.pop %v2834
        %v2839 = vrcp.pop %v2837
        %v2840 = vmul.f32 %v2829, %v2838
        %v2841 = vmul.f32 %v2831, %v2839
        %v2842 = vpack.c.bf16 %v2840, %v2840
        %v2843 = vpack.c.bf16 %v2841, %v2841
        %2844 = vrot.lane.b32.xlu0 %v2482, 88
        %v2845 = vpop.permute.xlu0 %2844
        %v2847 = vsel %vm1318, %v2842, 0
        %v2850 = vsel %vm1447, %v2845, 0
        %2852 = vmatprep.subr.bf16.mxu0 0
        %2853 = vmatpush1.bf16.msra.mxu0 0
        %2854 = vmatprep.subr.bf16.mxu0 0
        %2855 = vmatpush1.bf16.msra.mxu0 0
        %2856 = vmatprep.subr.bf16.mxu0 0
        %2857 = vmatpush1.bf16.msra.mxu0 0
        %2858 = vmatprep.subr.bf16.mxu0 0
        %2859 = vmatpush1.bf16.msra.mxu0 0
        %2860 = vmatprep.subr.bf16.mxu0 0
        %2861 = vmatpush1.bf16.msra.mxu0 0
        %2862 = vmatprep.subr.bf16.mxu0 0
        %2863 = vmatpush1.bf16.msra.mxu0 0
        %2864 = vmatprep.subr.bf16.mxu0 0
        %2865 = vmatpush1.bf16.msra.mxu0 0
        %2866 = vmatprep.subr.bf16.mxu0 0
        %2867 = vmatpush1.bf16.msra.mxu0 %v2850
        %2868 = vmatprep.subr.bf16.mxu0 0
        %2869 = vmatpush2.bf16.msra.mxu0 0
        %2870 = vmatprep.subr.bf16.mxu0 0
        %2871 = vmatpush2.bf16.msra.mxu0 0
        %2872 = vmatprep.subr.bf16.mxu0 0
        %2873 = vmatpush2.bf16.msra.mxu0 0
        %2874 = vmatprep.subr.bf16.mxu0 0
        %2875 = vmatpush2.bf16.msra.mxu0 0
        %2876 = vmatprep.subr.bf16.mxu0 0
        %2877 = vmatpush2.bf16.msra.mxu0 0
        %2878 = vmatprep.subr.bf16.mxu0 0
        %2879 = vmatpush2.bf16.msra.mxu0 0
        %2880 = vmatprep.subr.bf16.mxu0 0
        %2881 = vmatpush2.bf16.msra.mxu0 0
        %2882 = vmatprep.subr.bf16.mxu0 0
        %2883 = vmatpush2.bf16.msra.mxu0 0
        %2884 = vmatprep.mubr.bf16.mxu0 0
        %2885 = vmatmul.mubr.bf16.gmra.mxu0 %v2847
        %v2886 = vpop.f32.mrf.mxu0
        %v2887 = vadd.f32 0.0, %v2886
        %v2888 = vpop.f32.mrf.mxu0
        %v2889 = vpop.f32.mrf.mxu0
        %v2890 = vpop.f32.mrf.mxu0
        %2891 = vdwg.mxu0
        %2892 = vrot.lane.b32.xlu0 %v2483, 88
        %v2893 = vpop.permute.xlu0 %2892
        %v2895 = vsel %vm1318, %v2843, 0
        %v2898 = vsel %vm1447, %v2893, 0
        %2900 = vmatprep.subr.bf16.mxu0 0
        %2901 = vmatpush1.bf16.msra.mxu0 0
        %2902 = vmatprep.subr.bf16.mxu0 0
        %2903 = vmatpush1.bf16.msra.mxu0 0
        %2904 = vmatprep.subr.bf16.mxu0 0
        %2905 = vmatpush1.bf16.msra.mxu0 0
        %2906 = vmatprep.subr.bf16.mxu0 0
        %2907 = vmatpush1.bf16.msra.mxu0 0
        %2908 = vmatprep.subr.bf16.mxu0 0
        %2909 = vmatpush1.bf16.msra.mxu0 0
        %2910 = vmatprep.subr.bf16.mxu0 0
        %2911 = vmatpush1.bf16.msra.mxu0 0
        %2912 = vmatprep.subr.bf16.mxu0 0
        %2913 = vmatpush1.bf16.msra.mxu0 0
        %2914 = vmatprep.subr.bf16.mxu0 0
        %2915 = vmatpush1.bf16.msra.mxu0 %v2898
        %2916 = vmatprep.subr.bf16.mxu0 0
        %2917 = vmatpush2.bf16.msra.mxu0 0
        %2918 = vmatprep.subr.bf16.mxu0 0
        %2919 = vmatpush2.bf16.msra.mxu0 0
        %2920 = vmatprep.subr.bf16.mxu0 0
        %2921 = vmatpush2.bf16.msra.mxu0 0
        %2922 = vmatprep.subr.bf16.mxu0 0
        %2923 = vmatpush2.bf16.msra.mxu0 0
        %2924 = vmatprep.subr.bf16.mxu0 0
        %2925 = vmatpush2.bf16.msra.mxu0 0
        %2926 = vmatprep.subr.bf16.mxu0 0
        %2927 = vmatpush2.bf16.msra.mxu0 0
        %2928 = vmatprep.subr.bf16.mxu0 0
        %2929 = vmatpush2.bf16.msra.mxu0 0
        %2930 = vmatprep.subr.bf16.mxu0 0
        %2931 = vmatpush2.bf16.msra.mxu0 0
        %2932 = vmatprep.mubr.bf16.mxu0 0
        %2933 = vmatmul.mubr.bf16.gmra.mxu0 %v2895
        %v2934 = vpop.f32.mrf.mxu0
        %v2935 = vadd.f32 0.0, %v2934
        %v2936 = vpop.f32.mrf.mxu0
        %v2937 = vpop.f32.mrf.mxu0
        %v2938 = vpop.f32.mrf.mxu0
        %2939 = vdwg.mxu0
        %2940 = vrot.lane.b32.xlu0 %v2480, 112
        %v2941 = vpop.permute.xlu0 %2940
        %2942 = vrot.lane.b32.xlu0 %v2482, 112
        %v2943 = vpop.permute.xlu0 %2942
        %v2945 = vsel %vm1318, %v2941, 0
        %v2948 = vsel %vm1318, %v2943, 0
        %2950 = vmatprep.subr.bf16.mxu0 0
        %2951 = vmatpush1.bf16.xpose.msra.mxu0 0
        %2952 = vmatprep.subr.bf16.mxu0 0
        %2953 = vmatpush1.bf16.xpose.msra.mxu0 0
        %2954 = vmatprep.subr.bf16.mxu0 0
        %2955 = vmatpush1.bf16.xpose.msra.mxu0 0
        %2956 = vmatprep.subr.bf16.mxu0 0
        %2957 = vmatpush1.bf16.xpose.msra.mxu0 0
        %2958 = vmatprep.subr.bf16.mxu0 0
        %2959 = vmatpush1.bf16.xpose.msra.mxu0 0
        %2960 = vmatprep.subr.bf16.mxu0 0
        %2961 = vmatpush1.bf16.xpose.msra.mxu0 0
        %2962 = vmatprep.subr.bf16.mxu0 0
        %2963 = vmatpush1.bf16.xpose.msra.mxu0 0
        %2964 = vmatprep.subr.bf16.mxu0 0
        %2965 = vmatpush1.bf16.xpose.msra.mxu0 %v2948
        %2966 = vmatprep.subr.bf16.mxu0 0
        %2967 = vmatpush2.bf16.xpose.msra.mxu0 0
        %2968 = vmatprep.subr.bf16.mxu0 0
        %2969 = vmatpush2.bf16.xpose.msra.mxu0 0
        %2970 = vmatprep.subr.bf16.mxu0 0
        %2971 = vmatpush2.bf16.xpose.msra.mxu0 0
        %2972 = vmatprep.subr.bf16.mxu0 0
        %2973 = vmatpush2.bf16.xpose.msra.mxu0 0
        %2974 = vmatprep.subr.bf16.mxu0 0
        %2975 = vmatpush2.bf16.xpose.msra.mxu0 0
        %2976 = vmatprep.subr.bf16.mxu0 0
        %2977 = vmatpush2.bf16.xpose.msra.mxu0 0
        %2978 = vmatprep.subr.bf16.mxu0 0
        %2979 = vmatpush2.bf16.xpose.msra.mxu0 0
        %2980 = vmatprep.subr.bf16.mxu0 0
        %2981 = vmatpush2.bf16.xpose.msra.mxu0 0
        %2982 = vmatprep.mubr.bf16.mxu0 0
        %2983 = vmatmul.mubr.bf16.gmra.mxu0 %v2945
        %v2984 = vpop.f32.mrf.mxu0
        %v2985 = vadd.f32 0.0, %v2984
        %v2986 = vpop.f32.mrf.mxu0
        %v2987 = vpop.f32.mrf.mxu0
        %v2988 = vpop.f32.mrf.mxu0
        %2989 = vdwg.mxu0
        %2990 = vrot.lane.b32.xlu0 %v2481, 112
        %v2991 = vpop.permute.xlu0 %2990
        %2992 = vrot.lane.b32.xlu0 %v2483, 112
        %v2993 = vpop.permute.xlu0 %2992
        %v2995 = vsel %vm1318, %v2991, 0
        %v2998 = vsel %vm1318, %v2993, 0
        %3000 = vmatprep.subr.bf16.mxu0 0
        %3001 = vmatpush1.bf16.xpose.msra.mxu0 0
        %3002 = vmatprep.subr.bf16.mxu0 0
        %3003 = vmatpush1.bf16.xpose.msra.mxu0 0
        %3004 = vmatprep.subr.bf16.mxu0 0
        %3005 = vmatpush1.bf16.xpose.msra.mxu0 0
        %3006 = vmatprep.subr.bf16.mxu0 0
        %3007 = vmatpush1.bf16.xpose.msra.mxu0 0
        %3008 = vmatprep.subr.bf16.mxu0 0
        %3009 = vmatpush1.bf16.xpose.msra.mxu0 0
        %3010 = vmatprep.subr.bf16.mxu0 0
        %3011 = vmatpush1.bf16.xpose.msra.mxu0 0
        %3012 = vmatprep.subr.bf16.mxu0 0
        %3013 = vmatpush1.bf16.xpose.msra.mxu0 0
        %3014 = vmatprep.subr.bf16.mxu0 0
        %3015 = vmatpush1.bf16.xpose.msra.mxu0 %v2998
        %3016 = vmatprep.subr.bf16.mxu0 0
        %3017 = vmatpush2.bf16.xpose.msra.mxu0 0
        %3018 = vmatprep.subr.bf16.mxu0 0
        %3019 = vmatpush2.bf16.xpose.msra.mxu0 0
        %3020 = vmatprep.subr.bf16.mxu0 0
        %3021 = vmatpush2.bf16.xpose.msra.mxu0 0
        %3022 = vmatprep.subr.bf16.mxu0 0
        %3023 = vmatpush2.bf16.xpose.msra.mxu0 0
        %3024 = vmatprep.subr.bf16.mxu0 0
        %3025 = vmatpush2.bf16.xpose.msra.mxu0 0
        %3026 = vmatprep.subr.bf16.mxu0 0
        %3027 = vmatpush2.bf16.xpose.msra.mxu0 0
        %3028 = vmatprep.subr.bf16.mxu0 0
        %3029 = vmatpush2.bf16.xpose.msra.mxu0 0
        %3030 = vmatprep.subr.bf16.mxu0 0
        %3031 = vmatpush2.bf16.xpose.msra.mxu0 0
        %3032 = vmatprep.mubr.bf16.mxu0 0
        %3033 = vmatmul.mubr.bf16.gmra.mxu0 %v2995
        %v3034 = vpop.f32.mrf.mxu0
        %v3035 = vadd.f32 0.0, %v3034
        %v3036 = vpop.f32.mrf.mxu0
        %v3037 = vpop.f32.mrf.mxu0
        %v3038 = vpop.f32.mrf.mxu0
        %3039 = vdwg.mxu0
        %v3040 = vmul.f32 %v2985, 0.35355338
        %v3041 = vmul.f32 %v3035, 0.35355338
        %v3042 = vadd.f32 %v3040, %v2583
        %v3043 = vadd.f32 %v3041, %v2587
        %v3044 = vsel %vm1318, %v3042, -inf
        %3045 = vmax.xlane.f32.xlu0 %v3044
        %v3046 = vpop.xlane.xlu0 %3045
        %v3047 = vsel %vm1318, %v3043, -inf
        %3048 = vmax.xlane.f32.xlu0 %v3047
        %v3049 = vpop.xlane.xlu0 %3048
        %v3050 = vsub.f32 %v3042, %v3046
        %v3051 = vsub.f32 %v3043, %v3049
        %v3052 = vmul.f32 %v3050, 1.442695
        %v3053 = vpow.pop %v3052
        %v3054 = vmul.f32 %v3051, 1.442695
        %v3055 = vpow.pop %v3054
        %v3056 = vsel %vm1318, %v3053, 0.0
        %3057 = vadd.xlane.f32.xlu0 %v3056
        %v3058 = vpop.xlane.xlu0 %3057
        %v3059 = vsel %vm1318, %v3055, 0.0
        %3060 = vadd.xlane.f32.xlu0 %v3059
        %v3061 = vpop.xlane.xlu0 %3060
        %v3062 = vrcp.pop %v3058
        %v3063 = vrcp.pop %v3061
        %v3064 = vmul.f32 %v3053, %v3062
        %v3065 = vmul.f32 %v3055, %v3063
        %v3066 = vpack.c.bf16 %v3064, %v3064
        %v3067 = vpack.c.bf16 %v3065, %v3065
        %3068 = vrot.lane.b32.xlu0 %v2482, 80
        %v3069 = vpop.permute.xlu0 %3068
        %v3071 = vsel %vm1318, %v3066, 0
        %v3074 = vsel %vm1447, %v3069, 0
        %3076 = vmatprep.subr.bf16.mxu0 0
        %3077 = vmatpush1.bf16.msra.mxu0 0
        %3078 = vmatprep.subr.bf16.mxu0 0
        %3079 = vmatpush1.bf16.msra.mxu0 0
        %3080 = vmatprep.subr.bf16.mxu0 0
        %3081 = vmatpush1.bf16.msra.mxu0 0
        %3082 = vmatprep.subr.bf16.mxu0 0
        %3083 = vmatpush1.bf16.msra.mxu0 0
        %3084 = vmatprep.subr.bf16.mxu0 0
        %3085 = vmatpush1.bf16.msra.mxu0 0
        %3086 = vmatprep.subr.bf16.mxu0 0
        %3087 = vmatpush1.bf16.msra.mxu0 0
        %3088 = vmatprep.subr.bf16.mxu0 0
        %3089 = vmatpush1.bf16.msra.mxu0 0
        %3090 = vmatprep.subr.bf16.mxu0 0
        %3091 = vmatpush1.bf16.msra.mxu0 %v3074
        %3092 = vmatprep.subr.bf16.mxu0 0
        %3093 = vmatpush2.bf16.msra.mxu0 0
        %3094 = vmatprep.subr.bf16.mxu0 0
        %3095 = vmatpush2.bf16.msra.mxu0 0
        %3096 = vmatprep.subr.bf16.mxu0 0
        %3097 = vmatpush2.bf16.msra.mxu0 0
        %3098 = vmatprep.subr.bf16.mxu0 0
        %3099 = vmatpush2.bf16.msra.mxu0 0
        %3100 = vmatprep.subr.bf16.mxu0 0
        %3101 = vmatpush2.bf16.msra.mxu0 0
        %3102 = vmatprep.subr.bf16.mxu0 0
        %3103 = vmatpush2.bf16.msra.mxu0 0
        %3104 = vmatprep.subr.bf16.mxu0 0
        %3105 = vmatpush2.bf16.msra.mxu0 0
        %3106 = vmatprep.subr.bf16.mxu0 0
        %3107 = vmatpush2.bf16.msra.mxu0 0
        %3108 = vmatprep.mubr.bf16.mxu0 0
        %3109 = vmatmul.mubr.bf16.gmra.mxu0 %v3071
        %v3110 = vpop.f32.mrf.mxu0
        %v3111 = vadd.f32 0.0, %v3110
        %v3112 = vpop.f32.mrf.mxu0
        %v3113 = vpop.f32.mrf.mxu0
        %v3114 = vpop.f32.mrf.mxu0
        %3115 = vdwg.mxu0
        %3116 = vrot.lane.b32.xlu0 %v2483, 80
        %v3117 = vpop.permute.xlu0 %3116
        %v3119 = vsel %vm1318, %v3067, 0
        %v3122 = vsel %vm1447, %v3117, 0
        %3124 = vmatprep.subr.bf16.mxu0 0
        %3125 = vmatpush1.bf16.msra.mxu0 0
        %3126 = vmatprep.subr.bf16.mxu0 0
        %3127 = vmatpush1.bf16.msra.mxu0 0
        %3128 = vmatprep.subr.bf16.mxu0 0
        %3129 = vmatpush1.bf16.msra.mxu0 0
        %3130 = vmatprep.subr.bf16.mxu0 0
        %3131 = vmatpush1.bf16.msra.mxu0 0
        %3132 = vmatprep.subr.bf16.mxu0 0
        %3133 = vmatpush1.bf16.msra.mxu0 0
        %3134 = vmatprep.subr.bf16.mxu0 0
        %3135 = vmatpush1.bf16.msra.mxu0 0
        %3136 = vmatprep.subr.bf16.mxu0 0
        %3137 = vmatpush1.bf16.msra.mxu0 0
        %3138 = vmatprep.subr.bf16.mxu0 0
        %3139 = vmatpush1.bf16.msra.mxu0 %v3122
        %3140 = vmatprep.subr.bf16.mxu0 0
        %3141 = vmatpush2.bf16.msra.mxu0 0
        %3142 = vmatprep.subr.bf16.mxu0 0
        %3143 = vmatpush2.bf16.msra.mxu0 0
        %3144 = vmatprep.subr.bf16.mxu0 0
        %3145 = vmatpush2.bf16.msra.mxu0 0
        %3146 = vmatprep.subr.bf16.mxu0 0
        %3147 = vmatpush2.bf16.msra.mxu0 0
        %3148 = vmatprep.subr.bf16.mxu0 0
        %3149 = vmatpush2.bf16.msra.mxu0 0
        %3150 = vmatprep.subr.bf16.mxu0 0
        %3151 = vmatpush2.bf16.msra.mxu0 0
        %3152 = vmatprep.subr.bf16.mxu0 0
        %3153 = vmatpush2.bf16.msra.mxu0 0
        %3154 = vmatprep.subr.bf16.mxu0 0
        %3155 = vmatpush2.bf16.msra.mxu0 0
        %3156 = vmatprep.mubr.bf16.mxu0 0
        %3157 = vmatmul.mubr.bf16.gmra.mxu0 %v3119
        %v3158 = vpop.f32.mrf.mxu0
        %v3159 = vadd.f32 0.0, %v3158
        %v3160 = vpop.f32.mrf.mxu0
        %v3161 = vpop.f32.mrf.mxu0
        %v3162 = vpop.f32.mrf.mxu0
        %3163 = vdwg.mxu0
        %3164 = vrot.lane.b32.xlu0 %v2480, 104
        %v3165 = vpop.permute.xlu0 %3164
        %3166 = vrot.lane.b32.xlu0 %v2482, 104
        %v3167 = vpop.permute.xlu0 %3166
        %v3169 = vsel %vm1318, %v3165, 0
        %v3172 = vsel %vm1318, %v3167, 0
        %3174 = vmatprep.subr.bf16.mxu0 0
        %3175 = vmatpush1.bf16.xpose.msra.mxu0 0
        %3176 = vmatprep.subr.bf16.mxu0 0
        %3177 = vmatpush1.bf16.xpose.msra.mxu0 0
        %3178 = vmatprep.subr.bf16.mxu0 0
        %3179 = vmatpush1.bf16.xpose.msra.mxu0 0
        %3180 = vmatprep.subr.bf16.mxu0 0
        %3181 = vmatpush1.bf16.xpose.msra.mxu0 0
        %3182 = vmatprep.subr.bf16.mxu0 0
        %3183 = vmatpush1.bf16.xpose.msra.mxu0 0
        %3184 = vmatprep.subr.bf16.mxu0 0
        %3185 = vmatpush1.bf16.xpose.msra.mxu0 0
        %3186 = vmatprep.subr.bf16.mxu0 0
        %3187 = vmatpush1.bf16.xpose.msra.mxu0 0
        %3188 = vmatprep.subr.bf16.mxu0 0
        %3189 = vmatpush1.bf16.xpose.msra.mxu0 %v3172
        %3190 = vmatprep.subr.bf16.mxu0 0
        %3191 = vmatpush2.bf16.xpose.msra.mxu0 0
        %3192 = vmatprep.subr.bf16.mxu0 0
        %3193 = vmatpush2.bf16.xpose.msra.mxu0 0
        %3194 = vmatprep.subr.bf16.mxu0 0
        %3195 = vmatpush2.bf16.xpose.msra.mxu0 0
        %3196 = vmatprep.subr.bf16.mxu0 0
        %3197 = vmatpush2.bf16.xpose.msra.mxu0 0
        %3198 = vmatprep.subr.bf16.mxu0 0
        %3199 = vmatpush2.bf16.xpose.msra.mxu0 0
        %3200 = vmatprep.subr.bf16.mxu0 0
        %3201 = vmatpush2.bf16.xpose.msra.mxu0 0
        %3202 = vmatprep.subr.bf16.mxu0 0
        %3203 = vmatpush2.bf16.xpose.msra.mxu0 0
        %3204 = vmatprep.subr.bf16.mxu0 0
        %3205 = vmatpush2.bf16.xpose.msra.mxu0 0
        %3206 = vmatprep.mubr.bf16.mxu0 0
        %3207 = vmatmul.mubr.bf16.gmra.mxu0 %v3169
        %v3208 = vpop.f32.mrf.mxu0
        %v3209 = vadd.f32 0.0, %v3208
        %v3210 = vpop.f32.mrf.mxu0
        %v3211 = vpop.f32.mrf.mxu0
        %v3212 = vpop.f32.mrf.mxu0
        %3213 = vdwg.mxu0
        %3214 = vrot.lane.b32.xlu0 %v2481, 104
        %v3215 = vpop.permute.xlu0 %3214
        %3216 = vrot.lane.b32.xlu0 %v2483, 104
        %v3217 = vpop.permute.xlu0 %3216
        %v3219 = vsel %vm1318, %v3215, 0
        %v3222 = vsel %vm1318, %v3217, 0
        %3224 = vmatprep.subr.bf16.mxu0 0
        %3225 = vmatpush1.bf16.xpose.msra.mxu0 0
        %3226 = vmatprep.subr.bf16.mxu0 0
        %3227 = vmatpush1.bf16.xpose.msra.mxu0 0
        %3228 = vmatprep.subr.bf16.mxu0 0
        %3229 = vmatpush1.bf16.xpose.msra.mxu0 0
        %3230 = vmatprep.subr.bf16.mxu0 0
        %3231 = vmatpush1.bf16.xpose.msra.mxu0 0
        %3232 = vmatprep.subr.bf16.mxu0 0
        %3233 = vmatpush1.bf16.xpose.msra.mxu0 0
        %3234 = vmatprep.subr.bf16.mxu0 0
        %3235 = vmatpush1.bf16.xpose.msra.mxu0 0
        %3236 = vmatprep.subr.bf16.mxu0 0
        %3237 = vmatpush1.bf16.xpose.msra.mxu0 0
        %3238 = vmatprep.subr.bf16.mxu0 0
        %3239 = vmatpush1.bf16.xpose.msra.mxu0 %v3222
        %3240 = vmatprep.subr.bf16.mxu0 0
        %3241 = vmatpush2.bf16.xpose.msra.mxu0 0
        %3242 = vmatprep.subr.bf16.mxu0 0
        %3243 = vmatpush2.bf16.xpose.msra.mxu0 0
        %3244 = vmatprep.subr.bf16.mxu0 0
        %3245 = vmatpush2.bf16.xpose.msra.mxu0 0
        %3246 = vmatprep.subr.bf16.mxu0 0
        %3247 = vmatpush2.bf16.xpose.msra.mxu0 0
        %3248 = vmatprep.subr.bf16.mxu0 0
        %3249 = vmatpush2.bf16.xpose.msra.mxu0 0
        %3250 = vmatprep.subr.bf16.mxu0 0
        %3251 = vmatpush2.bf16.xpose.msra.mxu0 0
        %3252 = vmatprep.subr.bf16.mxu0 0
        %3253 = vmatpush2.bf16.xpose.msra.mxu0 0
        %3254 = vmatprep.subr.bf16.mxu0 0
        %3255 = vmatpush2.bf16.xpose.msra.mxu0 0
        %3256 = vmatprep.mubr.bf16.mxu0 0
        %3257 = vmatmul.mubr.bf16.gmra.mxu0 %v3219
        %v3258 = vpop.f32.mrf.mxu0
        %v3259 = vadd.f32 0.0, %v3258
        %v3260 = vpop.f32.mrf.mxu0
        %v3261 = vpop.f32.mrf.mxu0
        %v3262 = vpop.f32.mrf.mxu0
        %3263 = vdwg.mxu0
        %v3264 = vmul.f32 %v3209, 0.35355338
        %v3265 = vmul.f32 %v3259, 0.35355338
        %v3266 = vadd.f32 %v3264, %v2583
        %v3267 = vadd.f32 %v3265, %v2587
        %v3268 = vsel %vm1318, %v3266, -inf
        %3269 = vmax.xlane.f32.xlu0 %v3268
        %v3270 = vpop.xlane.xlu0 %3269
        %v3271 = vsel %vm1318, %v3267, -inf
        %3272 = vmax.xlane.f32.xlu0 %v3271
        %v3273 = vpop.xlane.xlu0 %3272
        %v3274 = vsub.f32 %v3266, %v3270
        %v3275 = vsub.f32 %v3267, %v3273
        %v3276 = vmul.f32 %v3274, 1.442695
        %v3277 = vpow.pop %v3276
        %v3278 = vmul.f32 %v3275, 1.442695
        %v3279 = vpow.pop %v3278
        %v3280 = vsel %vm1318, %v3277, 0.0
        %3281 = vadd.xlane.f32.xlu0 %v3280
        %v3282 = vpop.xlane.xlu0 %3281
        %v3283 = vsel %vm1318, %v3279, 0.0
        %3284 = vadd.xlane.f32.xlu0 %v3283
        %v3285 = vpop.xlane.xlu0 %3284
        %v3286 = vrcp.pop %v3282
        %v3287 = vrcp.pop %v3285
        %v3288 = vmul.f32 %v3277, %v3286
        %v3289 = vmul.f32 %v3279, %v3287
        %v3290 = vpack.c.bf16 %v3288, %v3288
        %v3291 = vpack.c.bf16 %v3289, %v3289
        %3292 = vrot.lane.b32.xlu0 %v2482, 72
        %v3293 = vpop.permute.xlu0 %3292
        %v3295 = vsel %vm1318, %v3290, 0
        %v3298 = vsel %vm1447, %v3293, 0
        %3300 = vmatprep.subr.bf16.mxu0 0
        %3301 = vmatpush1.bf16.msra.mxu0 0
        %3302 = vmatprep.subr.bf16.mxu0 0
        %3303 = vmatpush1.bf16.msra.mxu0 0
        %3304 = vmatprep.subr.bf16.mxu0 0
        %3305 = vmatpush1.bf16.msra.mxu0 0
        %3306 = vmatprep.subr.bf16.mxu0 0
        %3307 = vmatpush1.bf16.msra.mxu0 0
        %3308 = vmatprep.subr.bf16.mxu0 0
        %3309 = vmatpush1.bf16.msra.mxu0 0
        %3310 = vmatprep.subr.bf16.mxu0 0
        %3311 = vmatpush1.bf16.msra.mxu0 0
        %3312 = vmatprep.subr.bf16.mxu0 0
        %3313 = vmatpush1.bf16.msra.mxu0 0
        %3314 = vmatprep.subr.bf16.mxu0 0
        %3315 = vmatpush1.bf16.msra.mxu0 %v3298
        %3316 = vmatprep.subr.bf16.mxu0 0
        %3317 = vmatpush2.bf16.msra.mxu0 0
        %3318 = vmatprep.subr.bf16.mxu0 0
        %3319 = vmatpush2.bf16.msra.mxu0 0
        %3320 = vmatprep.subr.bf16.mxu0 0
        %3321 = vmatpush2.bf16.msra.mxu0 0
        %3322 = vmatprep.subr.bf16.mxu0 0
        %3323 = vmatpush2.bf16.msra.mxu0 0
        %3324 = vmatprep.subr.bf16.mxu0 0
        %3325 = vmatpush2.bf16.msra.mxu0 0
        %3326 = vmatprep.subr.bf16.mxu0 0
        %3327 = vmatpush2.bf16.msra.mxu0 0
        %3328 = vmatprep.subr.bf16.mxu0 0
        %3329 = vmatpush2.bf16.msra.mxu0 0
        %3330 = vmatprep.subr.bf16.mxu0 0
        %3331 = vmatpush2.bf16.msra.mxu0 0
        %3332 = vmatprep.mubr.bf16.mxu0 0
        %3333 = vmatmul.mubr.bf16.gmra.mxu0 %v3295
        %v3334 = vpop.f32.mrf.mxu0
        %v3335 = vadd.f32 0.0, %v3334
        %v3336 = vpop.f32.mrf.mxu0
        %v3337 = vpop.f32.mrf.mxu0
        %v3338 = vpop.f32.mrf.mxu0
        %3339 = vdwg.mxu0
        %3340 = vrot.lane.b32.xlu0 %v2483, 72
        %v3341 = vpop.permute.xlu0 %3340
        %v3343 = vsel %vm1318, %v3291, 0
        %v3346 = vsel %vm1447, %v3341, 0
        %3348 = vmatprep.subr.bf16.mxu0 0
        %3349 = vmatpush1.bf16.msra.mxu0 0
        %3350 = vmatprep.subr.bf16.mxu0 0
        %3351 = vmatpush1.bf16.msra.mxu0 0
        %3352 = vmatprep.subr.bf16.mxu0 0
        %3353 = vmatpush1.bf16.msra.mxu0 0
        %3354 = vmatprep.subr.bf16.mxu0 0
        %3355 = vmatpush1.bf16.msra.mxu0 0
        %3356 = vmatprep.subr.bf16.mxu0 0
        %3357 = vmatpush1.bf16.msra.mxu0 0
        %3358 = vmatprep.subr.bf16.mxu0 0
        %3359 = vmatpush1.bf16.msra.mxu0 0
        %3360 = vmatprep.subr.bf16.mxu0 0
        %3361 = vmatpush1.bf16.msra.mxu0 0
        %3362 = vmatprep.subr.bf16.mxu0 0
        %3363 = vmatpush1.bf16.msra.mxu0 %v3346
        %3364 = vmatprep.subr.bf16.mxu0 0
        %3365 = vmatpush2.bf16.msra.mxu0 0
        %3366 = vmatprep.subr.bf16.mxu0 0
        %3367 = vmatpush2.bf16.msra.mxu0 0
        %3368 = vmatprep.subr.bf16.mxu0 0
        %3369 = vmatpush2.bf16.msra.mxu0 0
        %3370 = vmatprep.subr.bf16.mxu0 0
        %3371 = vmatpush2.bf16.msra.mxu0 0
        %3372 = vmatprep.subr.bf16.mxu0 0
        %3373 = vmatpush2.bf16.msra.mxu0 0
        %3374 = vmatprep.subr.bf16.mxu0 0
        %3375 = vmatpush2.bf16.msra.mxu0 0
        %3376 = vmatprep.subr.bf16.mxu0 0
        %3377 = vmatpush2.bf16.msra.mxu0 0
        %3378 = vmatprep.subr.bf16.mxu0 0
        %3379 = vmatpush2.bf16.msra.mxu0 0
        %3380 = vmatprep.mubr.bf16.mxu0 0
        %3381 = vmatmul.mubr.bf16.gmra.mxu0 %v3343
        %v3382 = vpop.f32.mrf.mxu0
        %v3383 = vadd.f32 0.0, %v3382
        %v3384 = vpop.f32.mrf.mxu0
        %v3385 = vpop.f32.mrf.mxu0
        %v3386 = vpop.f32.mrf.mxu0
        %3387 = vdwg.mxu0
        %3390 = vrot.lane.b32.xlu0 %v2887, 8
        %v3391 = vpop.permute.xlu0 %3390
        %3392 = vrot.lane.b32.xlu0 %v2935, 8
        %v3393 = vpop.permute.xlu0 %3392
        %3398 = vrot.lane.b32.xlu0 %v3111, 16
        %v3399 = vpop.permute.xlu0 %3398
        %3400 = vrot.lane.b32.xlu0 %v3159, 16
        %v3401 = vpop.permute.xlu0 %3400
        %3406 = vrot.lane.b32.xlu0 %v3335, 24
        %v3407 = vpop.permute.xlu0 %3406
        %3408 = vrot.lane.b32.xlu0 %v3383, 24
        %v3409 = vpop.permute.xlu0 %3408
        %v3412 = vsel %vm1318, %v2660, %v3391
        %v3413 = vsel %vm1318, %v2709, %v3393
        %v3414 = vsel %vm2237, %v3412, %v3399
        %v3415 = vsel %vm2237, %v3413, %v3401
        %v3416 = vsel %vm2240, %v3414, %v3407
        %v3417 = vsel %vm2240, %v3415, %v3409
        %v3418 = vpack.c.bf16 %v3417, %v3416
        %v3419 = vld [vmem:[%s1009] sm:$0xf]
        %v3420 = vld [vmem:[%s1009 + $0x4] sm:$0xf]
        %v3421 = vld [vmem:[%s1009 + $0x8] sm:$0xf]
        %v3422 = vld [vmem:[%s1009 + $0xc] sm:$0xf]
        %v3423 = vld [vmem:[%s1017] sm:$0x1]
        %v3425 = vlaneseq
        %v3426 = vshrl.u32 %v3425, 7
        %v3427 = vsub.s32 0, %v3426
        %v3428 = vrot.slane %v3423, %v3427
        %v3434 = vunpack.c.l.b16 %v3419
        %v3435 = vunpack.c.l.b16 %v3420
        %v3436 = vunpack.c.l.b16 %v3421
        %v3437 = vunpack.c.l.b16 %v3422
        %v3438 = vpack.c.b16 %v3435, %v3434
        %v3439 = vpack.c.b16 %v3437, %v3436
        %v3443 = vsel %vm1268, %v3418, 0
        %3445 = vmatprep.subr.bf16.mxu0 0
        %3446 = vmatpush1.bf16.msra.mxu0 0
        %3447 = vmatprep.subr.bf16.mxu0 0
        %3448 = vmatpush1.bf16.msra.mxu0 0
        %3449 = vmatprep.subr.bf16.mxu0 0
        %3450 = vmatpush1.bf16.msra.mxu0 0
        %3451 = vmatprep.subr.bf16.mxu0 0
        %3452 = vmatpush1.bf16.msra.mxu0 0
        %3453 = vmatprep.subr.bf16.mxu0 0
        %3454 = vmatpush1.bf16.msra.mxu0 0
        %3455 = vmatprep.subr.bf16.mxu0 0
        %3456 = vmatpush1.bf16.msra.mxu0 0
        %3457 = vmatprep.subr.bf16.mxu0 0
        %3458 = vmatpush1.bf16.msra.mxu0 %v3439
        %3459 = vmatprep.subr.bf16.mxu0 0
        %3460 = vmatpush1.bf16.msra.mxu0 %v3438
        %3461 = vmatprep.subr.bf16.mxu0 0
        %3462 = vmatpush2.bf16.msra.mxu0 0
        %3463 = vmatprep.subr.bf16.mxu0 0
        %3464 = vmatpush2.bf16.msra.mxu0 0
        %3465 = vmatprep.subr.bf16.mxu0 0
        %3466 = vmatpush2.bf16.msra.mxu0 0
        %3467 = vmatprep.subr.bf16.mxu0 0
        %3468 = vmatpush2.bf16.msra.mxu0 0
        %3469 = vmatprep.subr.bf16.mxu0 0
        %3470 = vmatpush2.bf16.msra.mxu0 0
        %3471 = vmatprep.subr.bf16.mxu0 0
        %3472 = vmatpush2.bf16.msra.mxu0 0
        %3473 = vmatprep.subr.bf16.mxu0 0
        %3474 = vmatpush2.bf16.msra.mxu0 0
        %3475 = vmatprep.subr.bf16.mxu0 0
        %3476 = vmatpush2.bf16.msra.mxu0 0
        %3477 = vmatprep.mubr.bf16.mxu0 0
        %3478 = vmatmul.mubr.bf16.gmra.mxu0 %v3443
        %v3479 = vpop.f32.mrf.mxu0
        %v3480 = vadd.f32 %v3428, %v3479
        %v3481 = vpop.f32.mrf.mxu0
        %v3482 = vpop.f32.mrf.mxu0
        %v3483 = vadd.f32 %v3428, %v3482
        %v3484 = vpop.f32.mrf.mxu0
        %3485 = vdwg.mxu0
        %v3486 = vadd.f32 %v2356, %v3480
        %v3487 = vadd.f32 %v2357, %v3483
        %v3488 = vsel %vm1268, %v3486, 0.0
        %3489 = vadd.xlane.f32.xlu0 %v3488
        %v3490 = vpop.xlane.xlu0 %3489
        %v3491 = vsel %vm1268, %v3487, 0.0
        %3492 = vadd.xlane.f32.xlu0 %v3491
        %v3493 = vpop.xlane.xlu0 %3492
        %v3494 = vmul.f32 %v3490, %v2319
        %v3495 = vmul.f32 %v3493, %v2319
        %v3496 = vsub.f32 %v3486, %v3494
        %v3497 = vsub.f32 %v3487, %v3495
        %v3498 = vmul.f32 %v3496, %v3496
        %v3499 = vmul.f32 %v3497, %v3497
        %v3500 = vsel %vm1268, %v3498, 0.0
        %3501 = vadd.xlane.f32.xlu0 %v3500
        %v3502 = vpop.xlane.xlu0 %3501
        %v3503 = vsel %vm1268, %v3499, 0.0
        %3504 = vadd.xlane.f32.xlu0 %v3503
        %v3505 = vpop.xlane.xlu0 %3504
        %v3506 = vmul.f32 %v3502, %v2319
        %v3507 = vmul.f32 %v3505, %v2319
        %v3508 = vadd.f32 %v3506, 1e-05
        %v3509 = vadd.f32 %v3507, 1e-05
        %v3510 = vrsqrt.pop %v3508
        %v3511 = vrsqrt.pop %v3509
        %v3512 = vmul.f32 %v3496, %v3510
        %v3513 = vmul.f32 %v3497, %v3511
        %v3514 = vld [vmem:[%s1041] sm:$0x1]
        %v3516 = vlaneseq
        %v3517 = vshrl.u32 %v3516, 7
        %v3518 = vsub.s32 0, %v3517
        %v3519 = vrot.slane %v3514, %v3518
        %v3521 = vmul.f32 %v3512, %v3519
        %v3522 = vmul.f32 %v3513, %v3519
        %v3523 = vld [vmem:[%s1049] sm:$0x1]
        %v3525 = vlaneseq
        %v3526 = vshrl.u32 %v3525, 7
        %v3527 = vsub.s32 0, %v3526
        %v3528 = vrot.slane %v3523, %v3527
        %v3530 = vadd.f32 %v3521, %v3528
        %v3531 = vadd.f32 %v3522, %v3528
        %v3532 = vpack.c.bf16 %v3531, %v3530
        %v3533 = vld [vmem:[%s1214] sm:$0xf]
        %v3534 = vld [vmem:[%s1214 + $0x4] sm:$0xf]
        %v3535 = vld [vmem:[%s1214 + $0x8] sm:$0xf]
        %v3536 = vld [vmem:[%s1214 + $0xc] sm:$0xf]
        %v3537 = vld [vmem:[%s1217] sm:$0x1]
        %v3539 = vlaneseq
        %v3540 = vshrl.u32 %v3539, 7
        %v3541 = vsub.s32 0, %v3540
        %v3542 = vrot.slane %v3537, %v3541
        %v3548 = vunpack.c.l.b16 %v3533
        %v3549 = vunpack.c.l.b16 %v3534
        %v3550 = vunpack.c.l.b16 %v3535
        %v3551 = vunpack.c.l.b16 %v3536
        %v3552 = vpack.c.b16 %v3549, %v3548
        %v3553 = vpack.c.b16 %v3551, %v3550
        %v3557 = vsel %vm1268, %v3532, 0
        %3559 = vmatprep.subr.bf16.mxu0 0
        %3560 = vmatpush1.bf16.msra.mxu0 0
        %3561 = vmatprep.subr.bf16.mxu0 0
        %3562 = vmatpush1.bf16.msra.mxu0 0
        %3563 = vmatprep.subr.bf16.mxu0 0
        %3564 = vmatpush1.bf16.msra.mxu0 0
        %3565 = vmatprep.subr.bf16.mxu0 0
        %3566 = vmatpush1.bf16.msra.mxu0 0
        %3567 = vmatprep.subr.bf16.mxu0 0
        %3568 = vmatpush1.bf16.msra.mxu0 0
        %3569 = vmatprep.subr.bf16.mxu0 0
        %3570 = vmatpush1.bf16.msra.mxu0 0
        %3571 = vmatprep.subr.bf16.mxu0 0
        %3572 = vmatpush1.bf16.msra.mxu0 %v3553
        %3573 = vmatprep.subr.bf16.mxu0 0
        %3574 = vmatpush1.bf16.msra.mxu0 %v3552
        %3575 = vmatprep.subr.bf16.mxu0 0
        %3576 = vmatpush2.bf16.msra.mxu0 0
        %3577 = vmatprep.subr.bf16.mxu0 0
        %3578 = vmatpush2.bf16.msra.mxu0 0
        %3579 = vmatprep.subr.bf16.mxu0 0
        %3580 = vmatpush2.bf16.msra.mxu0 0
        %3581 = vmatprep.subr.bf16.mxu0 0
        %3582 = vmatpush2.bf16.msra.mxu0 0
        %3583 = vmatprep.subr.bf16.mxu0 0
        %3584 = vmatpush2.bf16.msra.mxu0 0
        %3585 = vmatprep.subr.bf16.mxu0 0
        %3586 = vmatpush2.bf16.msra.mxu0 0
        %3587 = vmatprep.subr.bf16.mxu0 0
        %3588 = vmatpush2.bf16.msra.mxu0 0
        %3589 = vmatprep.subr.bf16.mxu0 0
        %3590 = vmatpush2.bf16.msra.mxu0 0
        %3591 = vmatprep.mubr.bf16.mxu0 0
        %3592 = vmatmul.mubr.bf16.gmra.mxu0 %v3557
        %v3593 = vpop.f32.mrf.mxu0
        %v3594 = vadd.f32 %v3542, %v3593
        %v3595 = vpop.f32.mrf.mxu0
        %v3596 = vpop.f32.mrf.mxu0
        %v3597 = vadd.f32 %v3542, %v3596
        %v3598 = vpop.f32.mrf.mxu0
        %3599 = vdwg.mxu0
        %v3600 = vmax.f32 %v3594, 0.0
        %v3601 = vmax.f32 %v3597, 0.0
        %v3602 = vpack.c.bf16 %v3601, %v3600
        %v3603 = vld [vmem:[%s1222] sm:$0xf]
        %v3604 = vld [vmem:[%s1222 + $0x4] sm:$0xf]
        %v3605 = vld [vmem:[%s1222 + $0x8] sm:$0xf]
        %v3606 = vld [vmem:[%s1222 + $0xc] sm:$0xf]
        %v3607 = vld [vmem:[%s1222 + $0x10] sm:$0xf]
        %v3608 = vld [vmem:[%s1222 + $0x14] sm:$0xf]
        %v3609 = vld [vmem:[%s1222 + $0x18] sm:$0xf]
        %v3610 = vld [vmem:[%s1222 + $0x1c] sm:$0xf]
        %v3611 = vld [vmem:[%s1225] sm:$0x1]
        %v3613 = vlaneseq
        %v3614 = vshrl.u32 %v3613, 7
        %v3615 = vsub.s32 0, %v3614
        %v3616 = vrot.slane %v3611, %v3615
        %v3626 = vunpack.c.l.b16 %v3603
        %v3627 = vunpack.c.l.b16 %v3604
        %v3628 = vunpack.c.l.b16 %v3605
        %v3629 = vunpack.c.l.b16 %v3606
        %v3630 = vunpack.c.l.b16 %v3607
        %v3631 = vunpack.c.l.b16 %v3608
        %v3632 = vunpack.c.l.b16 %v3609
        %v3633 = vunpack.c.l.b16 %v3610
        %v3634 = vpack.c.b16 %v3627, %v3626
        %v3635 = vpack.c.b16 %v3629, %v3628
        %v3636 = vpack.c.b16 %v3631, %v3630
        %v3637 = vpack.c.b16 %v3633, %v3632
        %vm3642 = vcmask 523264
        %v3644 = vsel %vm3642, %v3602, 0
        %3646 = vmatprep.subr.bf16.mxu0 0
        %3647 = vmatpush1.bf16.msra.mxu0 0
        %3648 = vmatprep.subr.bf16.mxu0 0
        %3649 = vmatpush1.bf16.msra.mxu0 0
        %3650 = vmatprep.subr.bf16.mxu0 0
        %3651 = vmatpush1.bf16.msra.mxu0 0
        %3652 = vmatprep.subr.bf16.mxu0 0
        %3653 = vmatpush1.bf16.msra.mxu0 0
        %3654 = vmatprep.subr.bf16.mxu0 0
        %3655 = vmatpush1.bf16.msra.mxu0 %v3637
        %3656 = vmatprep.subr.bf16.mxu0 0
        %3657 = vmatpush1.bf16.msra.mxu0 %v3636
        %3658 = vmatprep.subr.bf16.mxu0 0
        %3659 = vmatpush1.bf16.msra.mxu0 %v3635
        %3660 = vmatprep.subr.bf16.mxu0 0
        %3661 = vmatpush1.bf16.msra.mxu0 %v3634
        %3662 = vmatprep.subr.bf16.mxu0 0
        %3663 = vmatpush2.bf16.msra.mxu0 0
        %3664 = vmatprep.subr.bf16.mxu0 0
        %3665 = vmatpush2.bf16.msra.mxu0 0
        %3666 = vmatprep.subr.bf16.mxu0 0
        %3667 = vmatpush2.bf16.msra.mxu0 0
        %3668 = vmatprep.subr.bf16.mxu0 0
        %3669 = vmatpush2.bf16.msra.mxu0 0
        %3670 = vmatprep.subr.bf16.mxu0 0
        %3671 = vmatpush2.bf16.msra.mxu0 0
        %3672 = vmatprep.subr.bf16.mxu0 0
        %3673 = vmatpush2.bf16.msra.mxu0 0
        %3674 = vmatprep.subr.bf16.mxu0 0
        %3675 = vmatpush2.bf16.msra.mxu0 0
        %3676 = vmatprep.subr.bf16.mxu0 0
        %3677 = vmatpush2.bf16.msra.mxu0 0
        %3678 = vmatprep.mubr.bf16.mxu0 0
        %3679 = vmatmul.mubr.bf16.gmra.mxu0 %v3644
        %v3680 = vpop.f32.mrf.mxu0
        %v3681 = vadd.f32 %v3616, %v3680
        %v3682 = vpop.f32.mrf.mxu0
        %v3683 = vpop.f32.mrf.mxu0
        %v3684 = vadd.f32 %v3616, %v3683
        %v3685 = vpop.f32.mrf.mxu0
        %3686 = vdwg.mxu0
        %v3687 = vadd.f32 %v3530, %v3681
        %v3688 = vadd.f32 %v3531, %v3684
        %v3689 = vsel %vm1268, %v3687, 0.0
        %3690 = vadd.xlane.f32.xlu0 %v3689
        %v3691 = vpop.xlane.xlu0 %3690
        %v3692 = vsel %vm1268, %v3688, 0.0
        %3693 = vadd.xlane.f32.xlu0 %v3692
        %v3694 = vpop.xlane.xlu0 %3693
        %v3695 = vmul.f32 %v3691, %v2319
        %v3696 = vmul.f32 %v3694, %v2319
        %v3697 = vsub.f32 %v3687, %v3695
        %v3698 = vsub.f32 %v3688, %v3696
        %v3699 = vmul.f32 %v3697, %v3697
        %v3700 = vmul.f32 %v3698, %v3698
        %v3701 = vsel %vm1268, %v3699, 0.0
        %3702 = vadd.xlane.f32.xlu0 %v3701
        %v3703 = vpop.xlane.xlu0 %3702
        %v3704 = vsel %vm1268, %v3700, 0.0
        %3705 = vadd.xlane.f32.xlu0 %v3704
        %v3706 = vpop.xlane.xlu0 %3705
        %v3707 = vmul.f32 %v3703, %v2319
        %v3708 = vmul.f32 %v3706, %v2319
        %v3709 = vadd.f32 %v3707, 1e-05
        %v3710 = vadd.f32 %v3708, 1e-05
        %v3711 = vrsqrt.pop %v3709
        %v3712 = vrsqrt.pop %v3710
        %v3713 = vmul.f32 %v3697, %v3711
        %v3714 = vmul.f32 %v3698, %v3712
        %v3715 = vld [vmem:[%s1057] sm:$0x1]
        %v3717 = vlaneseq
        %v3718 = vshrl.u32 %v3717, 7
        %v3719 = vsub.s32 0, %v3718
        %v3720 = vrot.slane %v3715, %v3719
        %v3722 = vmul.f32 %v3713, %v3720
        %v3723 = vmul.f32 %v3714, %v3720
        %v3724 = vld [vmem:[%s1065] sm:$0x1]
        %v3726 = vlaneseq
        %v3727 = vshrl.u32 %v3726, 7
        %v3728 = vsub.s32 0, %v3727
        %v3729 = vrot.slane %v3724, %v3728
        %v3731 = vadd.f32 %v3722, %v3729
        %v3732 = vadd.f32 %v3723, %v3729
        %3733 = vst.msk [vmem:[#allocation2] sm:$0xff] %vm1268, %v3731
        %3734 = vst.msk [vmem:[#allocation2 + $0x8] sm:$0xff] %vm1268, %v3732
        %p3735 = scmp.eq.s32.totalorder %s42, 1
        // Predicated region
        $region173: #{tpu_custom_call.1} parent=107 // pred_check
          %p3736 = pneg %p3735
        $region174: #{tpu_custom_call.1} parent=107 // pred_check_branch
          %3738 = sbr.rel (%p3736) target = $region176
        $region175: #{tpu_custom_call.1} parent=107 // pred_region
          %3739 = vst.msk [vmem:[#allocation22] sm:$0xff] %vm1268, %v3731
          %3740 = vst.msk [vmem:[#allocation22 + $0x8] sm:$0xff] %vm1268, %v3732
        $region176: #{tpu_custom_call.1} parent=107 // pred_fallthru
          _
        // Predicated region
        $region177: #{tpu_custom_call.1} parent=107 // pred_check
          %p3741 = pneg %p634
        $region178: #{tpu_custom_call.1} parent=107 // pred_check_branch
          %3743 = sbr.rel (%p3741) target = $region180
        $region179: #{tpu_custom_call.1} parent=107 // pred_region
          %s3744 = smul.u32 2, %s41
          %s3746 = ssub.s32 256, 256
          %3747 = vsyncadd [#allocation5], %s3746
          %s3748 = smul.addr %s3744, 128
          %s3749 = scalar_lea.hbm %s22, %s3748
          %s3750 = sshll.u32 [#allocation22], 4
          %s3751 = int_to_ptr.vmem [resolvable:$true] %s3750
          %3756 = dma.vmem_to_hbm [thread:$0]  %s3751, 256, %s3749, [#allocation5], 128, 128, 8
        $region180: #{tpu_custom_call.1} parent=107 // pred_fallthru
          _
        // Predicated region
        $region181: #{tpu_custom_call.1} parent=107 // pred_check
          %p3757 = pneg %p634
        $region182: #{tpu_custom_call.1} parent=107 // pred_check_branch
          %3759 = sbr.rel (%p3757) target = $region184
        $region183: #{tpu_custom_call.1} parent=107 // pred_region
          %3760 = dma.done [#allocation5], 256
        $region184: #{tpu_custom_call.1} parent=107 // pred_fallthru
          _
      $region108: #{tpu_custom_call.1} parent=5 // pred_fallthru
        _
      %p3761 = scmp.le.s32.totalorder 2, %s32
      // Predicated region
      $region185: #{tpu_custom_call.1} parent=5 // pred_check
        %p3762 = pneg %p3761
      $region186: #{tpu_custom_call.1} parent=5 // pred_check_branch
        %3764 = sbr.rel (%p3762) target = $region188
      $region187: #{tpu_custom_call.1} parent=5 // pred_region
        %s3765 = ssub.s32 %s32, 2
      $region188: #{tpu_custom_call.1} parent=5 // pred_fallthru
        _
    $region6: #{tpu_custom_call.1} parent=1 // loop_footer
      %s36 = sadd.s32 1, %s32
    $region7: #{tpu_custom_call.1} parent=1 // loop_footer_branch
      %31 = sbr.rel target = $region3
    $region8: #{tpu_custom_call.1} parent=1 // loop_exit
      _
    %3766 = vsyncpa [#allocation4], 1
    %s3767 = scalar_lea.sflag [#allocation4], 1
    %3768 = vsyncpa %s3767, 1
    %3769 = vsyncpa [#allocation7], 1
    %3770 = vsyncpa [#allocation10], 1
    %3771 = vsyncpa [#allocation5], 1
    %s3772 = scalar_lea.sflag [#allocation5], 1
    %3773 = vsyncpa %s3772, 1

</llo_original>
